<compile_context>
chip_gen: v6e
topology: v6e:2x2x1
jax: 0.10.0
libtpu: 0.0.40
codegen_flags: <defaults>
</compile_context>

<pallas_src>
import numpy as np
import jax
import jax.numpy as jnp
from jax.experimental import pallas as pl
from jax.experimental.pallas import tpu as pltpu

NDF = 18
INPUT_NC = 4
KSIZE = 4
STRIDE = 2
PAD = 2
KK = KSIZE * KSIZE
LANE = 128            # TPU lane width; each conv tap's gathered slab is lane-aligned
LRELU_SLOPE = 0.01    # F.leaky_relu default
BN_EPS = 1e-5         # nn.BatchNorm2d default


def _conv_out(size):
    return (size + 2 * PAD - KSIZE) // STRIDE + 1


def _im2col_T(x):
    """x: (N, C, H, W) -> (C*k*k, N*Hout*Wout).

    Rows ordered (c, kh, kw) to match conv_weight.reshape(Cout, -1); columns ordered
    (n, oh, ow).  Only used for the first layer (on the network input)."""
    n, c, h, w = x.shape
    hout, wout = _conv_out(h), _conv_out(w)
    xp = jnp.pad(x, ((0, 0), (0, 0), (PAD, PAD), (PAD, PAD)))
    patches = []
    for kh in range(KSIZE):
        for kw in range(KSIZE):
            p = xp[:, :, kh::STRIDE, kw::STRIDE][:, :, :hout, :wout]
            patches.append(p)                            # (N, C, Hout, Wout)
    col = jnp.stack(patches, axis=2)                     # (N, C, k*k, Hout, Wout)
    col = col.transpose(1, 2, 0, 3, 4)                   # (C, k*k, N, Hout, Wout)
    return col.reshape(c * KK, n * hout * wout), hout, wout


def _big_selection(n, hin, win, in_cols):
    """One constant 0/1 gather matrix for a stride-2 / pad-2 4x4 conv layer.

    Shape (in_cols, KK*LANE).  Column block t = kh*K + kw (lane-aligned at t*LANE)
    selects, for every output position (b, oh, ow), the input pixel that conv tap t
    reads; taps landing in the zero padding stay zero.  Columns >= n*hout*wout within
    a block are zero, and rows >= n*hin*win (padded/junk activation lanes) are zero.
    So  act(C, in_cols) @ sel  -> (C, KK*LANE)  is the whole inner-layer im2col done
    on the MXU, with padded lanes automatically zeroed.
    """
    hout, wout = _conv_out(hin), _conv_out(win)
    pi, po = hin * win, hout * wout
    assert n * po <= LANE, "batch*spatial of a conv output must fit in one lane tile"
    assert n * pi <= in_cols
    sel = np.zeros((in_cols, KK * LANE), np.float32)
    for kh in range(KSIZE):
        for kw in range(KSIZE):
            t = kh * KSIZE + kw
            for b in range(n):
                for oh in range(hout):
                    ih = STRIDE * oh + kh - PAD
                    if not 0 <= ih < hin:
                        continue
                    for ow in range(wout):
                        iw = STRIDE * ow + kw - PAD
                        if not 0 <= iw < win:
                            continue
                        sel[b * pi + ih * win + iw,
                            t * LANE + b * po + oh * wout + ow] = 1.0
    return sel, hout, wout


def _make_fused_kernel(n, m1, m2, p3):
    def bn_lrelu(y, gamma, beta, count):
        # Train-mode batch stats in ONE pass (sum + sum-of-squares, biased var).
        # Padded lanes of y are exactly zero, so summing over the whole block while
        # dividing by the real column count is exact.
        inv = jnp.float32(1.0 / count)
        mean = jnp.sum(y, axis=1, keepdims=True) * inv
        var = jnp.sum(y * y, axis=1, keepdims=True) * inv - mean * mean
        z = (y - mean) * jax.lax.rsqrt(var + BN_EPS) * gamma + beta
        return jnp.where(z > 0, z, LRELU_SLOPE * z)

    def conv_taps(act_bf16, sel_ref, w_ref, cout):
        """Stride-2/pad-2 conv on a VMEM-resident activation (C_in, M_in)."""
        # One wide MXU gather = the whole im2col, tap blocks lane-aligned at t*LANE.
        g = jnp.dot(act_bf16, sel_ref[...],
                    preferred_element_type=jnp.float32).astype(jnp.bfloat16)
        # 16 small per-tap weight matmuls on static 128-aligned lane slices,
        # accumulated in f32.  Nothing leaves VMEM.
        acc = jnp.zeros((cout, LANE), jnp.float32)
        for t in range(KK):
            acc = acc + jnp.dot(w_ref[t], g[:, t * LANE:(t + 1) * LANE],
                                preferred_element_type=jnp.float32)
        return acc

    def kernel(x1t_ref, w1_ref, sel2_ref, w2_ref, sel3_ref, w3_ref,
               bn1_ref, bn2_ref, fcw_ref, fcb_ref, o_ref):
        # ---- conv1: one transposed MXU matmul (Cout on sublanes, M lane-dense) ----
        y1 = jnp.dot(w1_ref[...], x1t_ref[...],
                     preferred_element_type=jnp.float32)                 # (18, m1)
        bn1 = bn1_ref[...]
        a1 = bn_lrelu(y1, bn1[:, 0:1], bn1[:, 1:2], m1).astype(jnp.bfloat16)

        # ---- conv2 + BN2 + lrelu (activation never leaves VMEM) ----
        y2 = conv_taps(a1, sel2_ref, w2_ref, 2 * NDF)                    # (36, 128)
        bn2 = bn2_ref[...]
        a2 = bn_lrelu(y2, bn2[:, 0:1], bn2[:, 1:2], m2).astype(jnp.bfloat16)

        # ---- conv3 (junk post-BN lanes of a2 are killed by sel3's zero rows) ----
        y3 = conv_taps(a2, sel3_ref, w3_ref, NDF)                        # (18, 128)

        # ---- global max-pool per sample (lane blocks of p3) + fc ----
        lane = jax.lax.broadcasted_iota(jnp.int32, y3.shape, 1)
        pooled = jnp.concatenate(
            [jnp.max(jnp.where((lane >= b * p3) & (lane < (b + 1) * p3),
                               y3, jnp.float32(-1e30)),
                     axis=1, keepdims=True)
             for b in range(n)], axis=1)                                 # (18, N)
        o_ref[...] = (jnp.dot(fcw_ref[...], pooled,
                              preferred_element_type=jnp.float32)
                      + fcb_ref[...])                                    # (2, N)

    return kernel


def upps_net_forward(x, params):
    n = x.shape[0]

    # Layer-1 im2col on the network input (tiny, done in the wrapper); later layers
    # gather inside the kernel from the VMEM-resident activations via sel2/sel3.
    x1t, h1, w1 = _im2col_T(x)                                 # (Cin*16, m1)
    m1 = n * h1 * w1
    sel2, h2, w2 = _big_selection(n, h1, w1, in_cols=m1)       # (m1, 2048)
    m2 = n * h2 * w2
    sel3, h3, w3 = _big_selection(n, h2, w2, in_cols=LANE)     # (128, 2048)
    p3 = h3 * w3

    bf, f32 = jnp.bfloat16, jnp.float32
    operands = (
        x1t.astype(bf),                                                    # (64, m1)
        params["conv1"].reshape(NDF, -1).astype(bf),                       # (18, 64)
        jnp.asarray(sel2, bf),                                             # (m1, 2048)
        jnp.transpose(params["conv2"], (2, 3, 0, 1)).reshape(
            KK, 2 * NDF, NDF).astype(bf),                                  # (16, 36, 18)
        jnp.asarray(sel3, bf),                                             # (128, 2048)
        jnp.transpose(params["conv3"], (2, 3, 0, 1)).reshape(
            KK, NDF, 2 * NDF).astype(bf),                                  # (16, 18, 36)
        jnp.stack([params["bn1_gamma"], params["bn1_beta"]], 1).astype(f32),  # (18, 2)
        jnp.stack([params["bn2_gamma"], params["bn2_beta"]], 1).astype(f32),  # (36, 2)
        params["fc_w"].astype(f32),                                        # (2, 18)
        params["fc_b"].reshape(-1, 1).astype(f32),                         # (2, 1)
    )

    flops = 2 * (NDF * INPUT_NC * KK * m1          # conv1
                 + NDF * m1 * KK * LANE            # conv2 gather
                 + KK * 2 * NDF * NDF * LANE       # conv2 per-tap weights
                 + 2 * NDF * LANE * KK * LANE      # conv3 gather
                 + KK * NDF * 2 * NDF * LANE       # conv3 per-tap weights
                 + 2 * NDF * n)                    # fc
    bytes_accessed = sum(int(o.size) * o.dtype.itemsize for o in operands) + 2 * n * 4

    def full_spec(shape):
        r = len(shape)
        return pl.BlockSpec(shape, lambda i, _r=r: (0,) * _r)

    out = pl.pallas_call(
        _make_fused_kernel(n, m1, m2, p3),
        out_shape=jax.ShapeDtypeStruct((2, n), jnp.float32),
        grid=(1,),
        in_specs=[full_spec(o.shape) for o in operands],
        out_specs=full_spec((2, n)),
        compiler_params=pltpu.CompilerParams(
            dimension_semantics=("arbitrary",),
            vmem_limit_bytes=32 * 1024 * 1024),
        cost_estimate=pl.CostEstimate(
            flops=int(flops), transcendentals=3 * NDF,
            bytes_accessed=int(bytes_accessed)),
    )(*operands)
    return out.T                                               # (N, 2): batch-major


def upps_net_reference(x, params):
    """Pure-JAX f32 reference (independent of the Pallas path)."""

    def conv(inp, w):
        return jax.lax.conv_general_dilated(
            inp, w, (STRIDE, STRIDE), [(PAD, PAD), (PAD, PAD)],
            dimension_numbers=("NCHW", "OIHW", "NCHW"),
            precision=jax.lax.Precision.HIGHEST)

    def bn_train(inp, gamma, beta):
        mean = inp.mean(axis=(0, 2, 3), keepdims=True)
        var = inp.var(axis=(0, 2, 3), keepdims=True)   # biased, as PyTorch train mode
        xh = (inp - mean) / jnp.sqrt(var + BN_EPS)
        return xh * gamma.reshape(1, -1, 1, 1) + beta.reshape(1, -1, 1, 1)

    def lrelu(v):
        return jnp.where(v > 0, v, LRELU_SLOPE * v)

    h = lrelu(bn_train(conv(x, params["conv1"]),
                       params["bn1_gamma"], params["bn1_beta"]))
    h = lrelu(bn_train(conv(h, params["conv2"]),
                       params["bn2_gamma"], params["bn2_beta"]))
    h = conv(h, params["conv3"])
    pooled = h.max(axis=(2, 3))                                # (N, NDF)
    return pooled @ params["fc_w"].T + params["fc_b"]


def init_params(key):
    ks = jax.random.split(key, 5)
    s = 0.1
    return {
        "conv1": s * jax.random.normal(ks[0], (NDF, INPUT_NC, 4, 4), jnp.float32),
        "bn1_gamma": jnp.ones((NDF,), jnp.float32),
        "bn1_beta": jnp.zeros((NDF,), jnp.float32),
        "conv2": s * jax.random.normal(ks[1], (NDF * 2, NDF, 4, 4), jnp.float32),
        "bn2_gamma": jnp.ones((NDF * 2,), jnp.float32),
        "bn2_beta": jnp.zeros((NDF * 2,), jnp.float32),
        "conv3": s * jax.random.normal(ks[2], (NDF, NDF * 2, 4, 4), jnp.float32),
        "fc_w": s * jax.random.normal(ks[3], (2, NDF), jnp.float32),  # nn.Linear layout
        "fc_b": s * jax.random.normal(ks[4], (2,), jnp.float32),
    }


if __name__ == "__main__":
    key = jax.random.PRNGKey(0)
    kx, kp = jax.random.split(key)
    x = jax.random.normal(kx, (2, INPUT_NC, 16, 16), jnp.float32)  # NCHW like PyTorch
    params = init_params(kp)

    fwd = jax.jit(upps_net_forward)
    ref_fn = jax.jit(upps_net_reference)

    out = jax.block_until_ready(fwd(x, params))
    ref = jax.block_until_ready(ref_fn(x, params))

    assert out.shape == (2, 2), out.shape
    # bf16 MXU operands with f32 accumulation -> slightly looser tolerance than pure f32.
    np.testing.assert_allclose(np.asarray(out), np.asarray(ref), rtol=2e-2, atol=5e-2)
    print("KERNEL_OK")
</pallas_src>

<mosaic_0001>
module attributes {stable_mosaic.version = 11 : i64} {
  func.func @kernel(%arg0: i32, %arg1: memref<64x162xbf16, #tpu.memory_space<vmem>>, %arg2: memref<18x64xbf16, #tpu.memory_space<vmem>>, %arg3: memref<162x2048xbf16, #tpu.memory_space<vmem>>, %arg4: memref<16x36x18xbf16, #tpu.memory_space<vmem>>, %arg5: memref<128x2048xbf16, #tpu.memory_space<vmem>>, %arg6: memref<16x18x36xbf16, #tpu.memory_space<vmem>>, %arg7: memref<18x2xf32, #tpu.memory_space<vmem>>, %arg8: memref<36x2xf32, #tpu.memory_space<vmem>>, %arg9: memref<2x18xf32, #tpu.memory_space<vmem>>, %arg10: memref<2x1xf32, #tpu.memory_space<vmem>>, %arg11: memref<2x2xf32, #tpu.memory_space<vmem>>) attributes {dimension_semantics = [#tpu.dimension_semantics<arbitrary>], iteration_bounds = array<i64: 1>, scalar_prefetch = 0 : i64, scratch_operands = 0 : i64, tpu.core_type = #tpu.core_type<tc>, window_params = [{pipeline_mode = #tpu.pipeline_mode<synchronous>, transform_indices = @transform_0, window_bounds = array<i64: 64, 162>}, {pipeline_mode = #tpu.pipeline_mode<synchronous>, transform_indices = @transform_1, window_bounds = array<i64: 18, 64>}, {pipeline_mode = #tpu.pipeline_mode<synchronous>, transform_indices = @transform_2, window_bounds = array<i64: 162, 2048>}, {pipeline_mode = #tpu.pipeline_mode<synchronous>, transform_indices = @transform_3, window_bounds = array<i64: 16, 36, 18>}, {pipeline_mode = #tpu.pipeline_mode<synchronous>, transform_indices = @transform_4, window_bounds = array<i64: 128, 2048>}, {pipeline_mode = #tpu.pipeline_mode<synchronous>, transform_indices = @transform_5, window_bounds = array<i64: 16, 18, 36>}, {pipeline_mode = #tpu.pipeline_mode<synchronous>, transform_indices = @transform_6, window_bounds = array<i64: 18, 2>}, {pipeline_mode = #tpu.pipeline_mode<synchronous>, transform_indices = @transform_7, window_bounds = array<i64: 36, 2>}, {pipeline_mode = #tpu.pipeline_mode<synchronous>, transform_indices = @transform_8, window_bounds = array<i64: 2, 18>}, {pipeline_mode = #tpu.pipeline_mode<synchronous>, transform_indices = @transform_9, window_bounds = array<i64: 2, 1>}, {pipeline_mode = #tpu.pipeline_mode<synchronous>, transform_indices = @transform_10, window_bounds = array<i64: 2, 2>}]} {
    %c0 = arith.constant 0 : index
    %c0_0 = arith.constant 0 : index
    %0 = vector.load %arg2[%c0, %c0_0] : memref<18x64xbf16, #tpu.memory_space<vmem>>, vector<18x64xbf16>
    %c0_1 = arith.constant 0 : index
    %c0_2 = arith.constant 0 : index
    %1 = vector.load %arg1[%c0_1, %c0_2] : memref<64x162xbf16, #tpu.memory_space<vmem>>, vector<64x162xbf16>
    %cst = arith.constant dense<0.000000e+00> : vector<18x162xf32>
    %2 = tpu.matmul %0, %1, %cst {dimension_numbers = #tpu.dot_dimension_numbers<[1], [0], [0], [1], [0, 0, 1, 1], [], []>} : vector<18x64xbf16>, vector<64x162xbf16>, vector<18x162xf32> -> vector<18x162xf32>
    %c0_3 = arith.constant 0 : index
    %c0_4 = arith.constant 0 : index
    %3 = vector.load %arg7[%c0_3, %c0_4] : memref<18x2xf32, #tpu.memory_space<vmem>>, vector<18x2xf32>
    %4 = vector.extract_strided_slice %3 {offsets = [0, 0], sizes = [18, 1], strides = [1, 1]} : vector<18x2xf32> to vector<18x1xf32>
    %5 = vector.extract_strided_slice %3 {offsets = [0, 1], sizes = [18, 1], strides = [1, 1]} : vector<18x2xf32> to vector<18x1xf32>
    %cst_5 = arith.constant dense<0.000000e+00> : vector<18xf32>
    %6 = vector.multi_reduction <add>, %2, %cst_5 [1] : vector<18x162xf32> to vector<18xf32>
    %7 = vector.shape_cast %6 : vector<18xf32> to vector<18x1xf32>
    %cst_6 = arith.constant 0.00617283955 : f32
    %8 = vector.broadcast %cst_6 : f32 to vector<18x1xf32>
    %9 = arith.mulf %7, %8 : vector<18x1xf32>
    %10 = arith.mulf %2, %2 : vector<18x162xf32>
    %cst_7 = arith.constant dense<0.000000e+00> : vector<18xf32>
    %11 = vector.multi_reduction <add>, %10, %cst_7 [1] : vector<18x162xf32> to vector<18xf32>
    %12 = vector.shape_cast %11 : vector<18xf32> to vector<18x1xf32>
    %cst_8 = arith.constant 0.00617283955 : f32
    %13 = vector.broadcast %cst_8 : f32 to vector<18x1xf32>
    %14 = arith.mulf %12, %13 : vector<18x1xf32>
    %15 = arith.mulf %9, %9 : vector<18x1xf32>
    %16 = arith.subf %14, %15 : vector<18x1xf32>
    %17 = vector.broadcast %9 : vector<18x1xf32> to vector<18x162xf32>
    %18 = arith.subf %2, %17 : vector<18x162xf32>
    %cst_9 = arith.constant 9.99999974E-6 : f32
    %19 = vector.broadcast %cst_9 : f32 to vector<18x1xf32>
    %20 = arith.addf %16, %19 : vector<18x1xf32>
    %21 = math.rsqrt %20 : vector<18x1xf32>
    %22 = vector.broadcast %21 : vector<18x1xf32> to vector<18x162xf32>
    %23 = arith.mulf %18, %22 : vector<18x162xf32>
    %24 = vector.broadcast %4 : vector<18x1xf32> to vector<18x162xf32>
    %25 = arith.mulf %23, %24 : vector<18x162xf32>
    %26 = vector.broadcast %5 : vector<18x1xf32> to vector<18x162xf32>
    %27 = arith.addf %25, %26 : vector<18x162xf32>
    %cst_10 = arith.constant 0.000000e+00 : f32
    %28 = vector.broadcast %cst_10 : f32 to vector<18x162xf32>
    %29 = arith.cmpf ogt, %27, %28 : vector<18x162xf32>
    %cst_11 = arith.constant 0.00999999977 : f32
    %30 = vector.broadcast %cst_11 : f32 to vector<18x162xf32>
    %31 = arith.mulf %30, %27 : vector<18x162xf32>
    %32 = arith.select %29, %27, %31 : vector<18x162xi1>, vector<18x162xf32>
    %33 = arith.truncf %32 : vector<18x162xf32> to vector<18x162xbf16>
    %c0_12 = arith.constant 0 : index
    %c0_13 = arith.constant 0 : index
    %34 = vector.load %arg3[%c0_12, %c0_13] : memref<162x2048xbf16, #tpu.memory_space<vmem>>, vector<162x2048xbf16>
    %cst_14 = arith.constant dense<0.000000e+00> : vector<18x2048xf32>
    %35 = tpu.matmul %33, %34, %cst_14 {dimension_numbers = #tpu.dot_dimension_numbers<[1], [0], [0], [1], [0, 0, 1, 1], [], []>} : vector<18x162xbf16>, vector<162x2048xbf16>, vector<18x2048xf32> -> vector<18x2048xf32>
    %36 = arith.truncf %35 : vector<18x2048xf32> to vector<18x2048xbf16>
    %cst_15 = arith.constant 0.000000e+00 : f32
    %37 = vector.broadcast %cst_15 : f32 to vector<36x128xf32>
    %c0_16 = arith.constant 0 : index
    %c0_17 = arith.constant 0 : index
    %c0_18 = arith.constant 0 : index
    %38 = vector.load %arg4[%c0_16, %c0_17, %c0_18] : memref<16x36x18xbf16, #tpu.memory_space<vmem>>, vector<1x36x18xbf16>
    %39 = vector.shape_cast %38 : vector<1x36x18xbf16> to vector<36x18xbf16>
    %40 = vector.extract_strided_slice %36 {offsets = [0, 0], sizes = [18, 128], strides = [1, 1]} : vector<18x2048xbf16> to vector<18x128xbf16>
    %cst_19 = arith.constant dense<0.000000e+00> : vector<36x128xf32>
    %41 = tpu.matmul %39, %40, %cst_19 {dimension_numbers = #tpu.dot_dimension_numbers<[1], [0], [0], [1], [0, 0, 1, 1], [], []>} : vector<36x18xbf16>, vector<18x128xbf16>, vector<36x128xf32> -> vector<36x128xf32>
    %42 = arith.addf %37, %41 : vector<36x128xf32>
    %c1 = arith.constant 1 : index
    %c0_20 = arith.constant 0 : index
    %c0_21 = arith.constant 0 : index
    %43 = vector.load %arg4[%c1, %c0_20, %c0_21] : memref<16x36x18xbf16, #tpu.memory_space<vmem>>, vector<1x36x18xbf16>
    %44 = vector.shape_cast %43 : vector<1x36x18xbf16> to vector<36x18xbf16>
    %45 = vector.extract_strided_slice %36 {offsets = [0, 128], sizes = [18, 128], strides = [1, 1]} : vector<18x2048xbf16> to vector<18x128xbf16>
    %cst_22 = arith.constant dense<0.000000e+00> : vector<36x128xf32>
    %46 = tpu.matmul %44, %45, %cst_22 {dimension_numbers = #tpu.dot_dimension_numbers<[1], [0], [0], [1], [0, 0, 1, 1], [], []>} : vector<36x18xbf16>, vector<18x128xbf16>, vector<36x128xf32> -> vector<36x128xf32>
    %47 = arith.addf %42, %46 : vector<36x128xf32>
    %c2 = arith.constant 2 : index
    %c0_23 = arith.constant 0 : index
    %c0_24 = arith.constant 0 : index
    %48 = vector.load %arg4[%c2, %c0_23, %c0_24] : memref<16x36x18xbf16, #tpu.memory_space<vmem>>, vector<1x36x18xbf16>
    %49 = vector.shape_cast %48 : vector<1x36x18xbf16> to vector<36x18xbf16>
    %50 = vector.extract_strided_slice %36 {offsets = [0, 256], sizes = [18, 128], strides = [1, 1]} : vector<18x2048xbf16> to vector<18x128xbf16>
    %cst_25 = arith.constant dense<0.000000e+00> : vector<36x128xf32>
    %51 = tpu.matmul %49, %50, %cst_25 {dimension_numbers = #tpu.dot_dimension_numbers<[1], [0], [0], [1], [0, 0, 1, 1], [], []>} : vector<36x18xbf16>, vector<18x128xbf16>, vector<36x128xf32> -> vector<36x128xf32>
    %52 = arith.addf %47, %51 : vector<36x128xf32>
    %c3 = arith.constant 3 : index
    %c0_26 = arith.constant 0 : index
    %c0_27 = arith.constant 0 : index
    %53 = vector.load %arg4[%c3, %c0_26, %c0_27] : memref<16x36x18xbf16, #tpu.memory_space<vmem>>, vector<1x36x18xbf16>
    %54 = vector.shape_cast %53 : vector<1x36x18xbf16> to vector<36x18xbf16>
    %55 = vector.extract_strided_slice %36 {offsets = [0, 384], sizes = [18, 128], strides = [1, 1]} : vector<18x2048xbf16> to vector<18x128xbf16>
    %cst_28 = arith.constant dense<0.000000e+00> : vector<36x128xf32>
    %56 = tpu.matmul %54, %55, %cst_28 {dimension_numbers = #tpu.dot_dimension_numbers<[1], [0], [0], [1], [0, 0, 1, 1], [], []>} : vector<36x18xbf16>, vector<18x128xbf16>, vector<36x128xf32> -> vector<36x128xf32>
    %57 = arith.addf %52, %56 : vector<36x128xf32>
    %c4 = arith.constant 4 : index
    %c0_29 = arith.constant 0 : index
    %c0_30 = arith.constant 0 : index
    %58 = vector.load %arg4[%c4, %c0_29, %c0_30] : memref<16x36x18xbf16, #tpu.memory_space<vmem>>, vector<1x36x18xbf16>
    %59 = vector.shape_cast %58 : vector<1x36x18xbf16> to vector<36x18xbf16>
    %60 = vector.extract_strided_slice %36 {offsets = [0, 512], sizes = [18, 128], strides = [1, 1]} : vector<18x2048xbf16> to vector<18x128xbf16>
    %cst_31 = arith.constant dense<0.000000e+00> : vector<36x128xf32>
    %61 = tpu.matmul %59, %60, %cst_31 {dimension_numbers = #tpu.dot_dimension_numbers<[1], [0], [0], [1], [0, 0, 1, 1], [], []>} : vector<36x18xbf16>, vector<18x128xbf16>, vector<36x128xf32> -> vector<36x128xf32>
    %62 = arith.addf %57, %61 : vector<36x128xf32>
    %c5 = arith.constant 5 : index
    %c0_32 = arith.constant 0 : index
    %c0_33 = arith.constant 0 : index
    %63 = vector.load %arg4[%c5, %c0_32, %c0_33] : memref<16x36x18xbf16, #tpu.memory_space<vmem>>, vector<1x36x18xbf16>
    %64 = vector.shape_cast %63 : vector<1x36x18xbf16> to vector<36x18xbf16>
    %65 = vector.extract_strided_slice %36 {offsets = [0, 640], sizes = [18, 128], strides = [1, 1]} : vector<18x2048xbf16> to vector<18x128xbf16>
    %cst_34 = arith.constant dense<0.000000e+00> : vector<36x128xf32>
    %66 = tpu.matmul %64, %65, %cst_34 {dimension_numbers = #tpu.dot_dimension_numbers<[1], [0], [0], [1], [0, 0, 1, 1], [], []>} : vector<36x18xbf16>, vector<18x128xbf16>, vector<36x128xf32> -> vector<36x128xf32>
    %67 = arith.addf %62, %66 : vector<36x128xf32>
    %c6 = arith.constant 6 : index
    %c0_35 = arith.constant 0 : index
    %c0_36 = arith.constant 0 : index
    %68 = vector.load %arg4[%c6, %c0_35, %c0_36] : memref<16x36x18xbf16, #tpu.memory_space<vmem>>, vector<1x36x18xbf16>
    %69 = vector.shape_cast %68 : vector<1x36x18xbf16> to vector<36x18xbf16>
    %70 = vector.extract_strided_slice %36 {offsets = [0, 768], sizes = [18, 128], strides = [1, 1]} : vector<18x2048xbf16> to vector<18x128xbf16>
    %cst_37 = arith.constant dense<0.000000e+00> : vector<36x128xf32>
    %71 = tpu.matmul %69, %70, %cst_37 {dimension_numbers = #tpu.dot_dimension_numbers<[1], [0], [0], [1], [0, 0, 1, 1], [], []>} : vector<36x18xbf16>, vector<18x128xbf16>, vector<36x128xf32> -> vector<36x128xf32>
    %72 = arith.addf %67, %71 : vector<36x128xf32>
    %c7 = arith.constant 7 : index
    %c0_38 = arith.constant 0 : index
    %c0_39 = arith.constant 0 : index
    %73 = vector.load %arg4[%c7, %c0_38, %c0_39] : memref<16x36x18xbf16, #tpu.memory_space<vmem>>, vector<1x36x18xbf16>
    %74 = vector.shape_cast %73 : vector<1x36x18xbf16> to vector<36x18xbf16>
    %75 = vector.extract_strided_slice %36 {offsets = [0, 896], sizes = [18, 128], strides = [1, 1]} : vector<18x2048xbf16> to vector<18x128xbf16>
    %cst_40 = arith.constant dense<0.000000e+00> : vector<36x128xf32>
    %76 = tpu.matmul %74, %75, %cst_40 {dimension_numbers = #tpu.dot_dimension_numbers<[1], [0], [0], [1], [0, 0, 1, 1], [], []>} : vector<36x18xbf16>, vector<18x128xbf16>, vector<36x128xf32> -> vector<36x128xf32>
    %77 = arith.addf %72, %76 : vector<36x128xf32>
    %c8 = arith.constant 8 : index
    %c0_41 = arith.constant 0 : index
    %c0_42 = arith.constant 0 : index
    %78 = vector.load %arg4[%c8, %c0_41, %c0_42] : memref<16x36x18xbf16, #tpu.memory_space<vmem>>, vector<1x36x18xbf16>
    %79 = vector.shape_cast %78 : vector<1x36x18xbf16> to vector<36x18xbf16>
    %80 = vector.extract_strided_slice %36 {offsets = [0, 1024], sizes = [18, 128], strides = [1, 1]} : vector<18x2048xbf16> to vector<18x128xbf16>
    %cst_43 = arith.constant dense<0.000000e+00> : vector<36x128xf32>
    %81 = tpu.matmul %79, %80, %cst_43 {dimension_numbers = #tpu.dot_dimension_numbers<[1], [0], [0], [1], [0, 0, 1, 1], [], []>} : vector<36x18xbf16>, vector<18x128xbf16>, vector<36x128xf32> -> vector<36x128xf32>
    %82 = arith.addf %77, %81 : vector<36x128xf32>
    %c9 = arith.constant 9 : index
    %c0_44 = arith.constant 0 : index
    %c0_45 = arith.constant 0 : index
    %83 = vector.load %arg4[%c9, %c0_44, %c0_45] : memref<16x36x18xbf16, #tpu.memory_space<vmem>>, vector<1x36x18xbf16>
    %84 = vector.shape_cast %83 : vector<1x36x18xbf16> to vector<36x18xbf16>
    %85 = vector.extract_strided_slice %36 {offsets = [0, 1152], sizes = [18, 128], strides = [1, 1]} : vector<18x2048xbf16> to vector<18x128xbf16>
    %cst_46 = arith.constant dense<0.000000e+00> : vector<36x128xf32>
    %86 = tpu.matmul %84, %85, %cst_46 {dimension_numbers = #tpu.dot_dimension_numbers<[1], [0], [0], [1], [0, 0, 1, 1], [], []>} : vector<36x18xbf16>, vector<18x128xbf16>, vector<36x128xf32> -> vector<36x128xf32>
    %87 = arith.addf %82, %86 : vector<36x128xf32>
    %c10 = arith.constant 10 : index
    %c0_47 = arith.constant 0 : index
    %c0_48 = arith.constant 0 : index
    %88 = vector.load %arg4[%c10, %c0_47, %c0_48] : memref<16x36x18xbf16, #tpu.memory_space<vmem>>, vector<1x36x18xbf16>
    %89 = vector.shape_cast %88 : vector<1x36x18xbf16> to vector<36x18xbf16>
    %90 = vector.extract_strided_slice %36 {offsets = [0, 1280], sizes = [18, 128], strides = [1, 1]} : vector<18x2048xbf16> to vector<18x128xbf16>
    %cst_49 = arith.constant dense<0.000000e+00> : vector<36x128xf32>
    %91 = tpu.matmul %89, %90, %cst_49 {dimension_numbers = #tpu.dot_dimension_numbers<[1], [0], [0], [1], [0, 0, 1, 1], [], []>} : vector<36x18xbf16>, vector<18x128xbf16>, vector<36x128xf32> -> vector<36x128xf32>
    %92 = arith.addf %87, %91 : vector<36x128xf32>
    %c11 = arith.constant 11 : index
    %c0_50 = arith.constant 0 : index
    %c0_51 = arith.constant 0 : index
    %93 = vector.load %arg4[%c11, %c0_50, %c0_51] : memref<16x36x18xbf16, #tpu.memory_space<vmem>>, vector<1x36x18xbf16>
    %94 = vector.shape_cast %93 : vector<1x36x18xbf16> to vector<36x18xbf16>
    %95 = vector.extract_strided_slice %36 {offsets = [0, 1408], sizes = [18, 128], strides = [1, 1]} : vector<18x2048xbf16> to vector<18x128xbf16>
    %cst_52 = arith.constant dense<0.000000e+00> : vector<36x128xf32>
    %96 = tpu.matmul %94, %95, %cst_52 {dimension_numbers = #tpu.dot_dimension_numbers<[1], [0], [0], [1], [0, 0, 1, 1], [], []>} : vector<36x18xbf16>, vector<18x128xbf16>, vector<36x128xf32> -> vector<36x128xf32>
    %97 = arith.addf %92, %96 : vector<36x128xf32>
    %c12 = arith.constant 12 : index
    %c0_53 = arith.constant 0 : index
    %c0_54 = arith.constant 0 : index
    %98 = vector.load %arg4[%c12, %c0_53, %c0_54] : memref<16x36x18xbf16, #tpu.memory_space<vmem>>, vector<1x36x18xbf16>
    %99 = vector.shape_cast %98 : vector<1x36x18xbf16> to vector<36x18xbf16>
    %100 = vector.extract_strided_slice %36 {offsets = [0, 1536], sizes = [18, 128], strides = [1, 1]} : vector<18x2048xbf16> to vector<18x128xbf16>
    %cst_55 = arith.constant dense<0.000000e+00> : vector<36x128xf32>
    %101 = tpu.matmul %99, %100, %cst_55 {dimension_numbers = #tpu.dot_dimension_numbers<[1], [0], [0], [1], [0, 0, 1, 1], [], []>} : vector<36x18xbf16>, vector<18x128xbf16>, vector<36x128xf32> -> vector<36x128xf32>
    %102 = arith.addf %97, %101 : vector<36x128xf32>
    %c13 = arith.constant 13 : index
    %c0_56 = arith.constant 0 : index
    %c0_57 = arith.constant 0 : index
    %103 = vector.load %arg4[%c13, %c0_56, %c0_57] : memref<16x36x18xbf16, #tpu.memory_space<vmem>>, vector<1x36x18xbf16>
    %104 = vector.shape_cast %103 : vector<1x36x18xbf16> to vector<36x18xbf16>
    %105 = vector.extract_strided_slice %36 {offsets = [0, 1664], sizes = [18, 128], strides = [1, 1]} : vector<18x2048xbf16> to vector<18x128xbf16>
    %cst_58 = arith.constant dense<0.000000e+00> : vector<36x128xf32>
    %106 = tpu.matmul %104, %105, %cst_58 {dimension_numbers = #tpu.dot_dimension_numbers<[1], [0], [0], [1], [0, 0, 1, 1], [], []>} : vector<36x18xbf16>, vector<18x128xbf16>, vector<36x128xf32> -> vector<36x128xf32>
    %107 = arith.addf %102, %106 : vector<36x128xf32>
    %c14 = arith.constant 14 : index
    %c0_59 = arith.constant 0 : index
    %c0_60 = arith.constant 0 : index
    %108 = vector.load %arg4[%c14, %c0_59, %c0_60] : memref<16x36x18xbf16, #tpu.memory_space<vmem>>, vector<1x36x18xbf16>
    %109 = vector.shape_cast %108 : vector<1x36x18xbf16> to vector<36x18xbf16>
    %110 = vector.extract_strided_slice %36 {offsets = [0, 1792], sizes = [18, 128], strides = [1, 1]} : vector<18x2048xbf16> to vector<18x128xbf16>
    %cst_61 = arith.constant dense<0.000000e+00> : vector<36x128xf32>
    %111 = tpu.matmul %109, %110, %cst_61 {dimension_numbers = #tpu.dot_dimension_numbers<[1], [0], [0], [1], [0, 0, 1, 1], [], []>} : vector<36x18xbf16>, vector<18x128xbf16>, vector<36x128xf32> -> vector<36x128xf32>
    %112 = arith.addf %107, %111 : vector<36x128xf32>
    %c15 = arith.constant 15 : index
    %c0_62 = arith.constant 0 : index
    %c0_63 = arith.constant 0 : index
    %113 = vector.load %arg4[%c15, %c0_62, %c0_63] : memref<16x36x18xbf16, #tpu.memory_space<vmem>>, vector<1x36x18xbf16>
    %114 = vector.shape_cast %113 : vector<1x36x18xbf16> to vector<36x18xbf16>
    %115 = vector.extract_strided_slice %36 {offsets = [0, 1920], sizes = [18, 128], strides = [1, 1]} : vector<18x2048xbf16> to vector<18x128xbf16>
    %cst_64 = arith.constant dense<0.000000e+00> : vector<36x128xf32>
    %116 = tpu.matmul %114, %115, %cst_64 {dimension_numbers = #tpu.dot_dimension_numbers<[1], [0], [0], [1], [0, 0, 1, 1], [], []>} : vector<36x18xbf16>, vector<18x128xbf16>, vector<36x128xf32> -> vector<36x128xf32>
    %117 = arith.addf %112, %116 : vector<36x128xf32>
    %c0_65 = arith.constant 0 : index
    %c0_66 = arith.constant 0 : index
    %118 = vector.load %arg8[%c0_65, %c0_66] : memref<36x2xf32, #tpu.memory_space<vmem>>, vector<36x2xf32>
    %119 = vector.extract_strided_slice %118 {offsets = [0, 0], sizes = [36, 1], strides = [1, 1]} : vector<36x2xf32> to vector<36x1xf32>
    %120 = vector.extract_strided_slice %118 {offsets = [0, 1], sizes = [36, 1], strides = [1, 1]} : vector<36x2xf32> to vector<36x1xf32>
    %cst_67 = arith.constant dense<0.000000e+00> : vector<36xf32>
    %121 = vector.multi_reduction <add>, %117, %cst_67 [1] : vector<36x128xf32> to vector<36xf32>
    %122 = vector.shape_cast %121 : vector<36xf32> to vector<36x1xf32>
    %cst_68 = arith.constant 2.000000e-02 : f32
    %123 = vector.broadcast %cst_68 : f32 to vector<36x1xf32>
    %124 = arith.mulf %122, %123 : vector<36x1xf32>
    %125 = arith.mulf %117, %117 : vector<36x128xf32>
    %cst_69 = arith.constant dense<0.000000e+00> : vector<36xf32>
    %126 = vector.multi_reduction <add>, %125, %cst_69 [1] : vector<36x128xf32> to vector<36xf32>
    %127 = vector.shape_cast %126 : vector<36xf32> to vector<36x1xf32>
    %cst_70 = arith.constant 2.000000e-02 : f32
    %128 = vector.broadcast %cst_70 : f32 to vector<36x1xf32>
    %129 = arith.mulf %127, %128 : vector<36x1xf32>
    %130 = arith.mulf %124, %124 : vector<36x1xf32>
    %131 = arith.subf %129, %130 : vector<36x1xf32>
    %132 = vector.broadcast %124 : vector<36x1xf32> to vector<36x128xf32>
    %133 = arith.subf %117, %132 : vector<36x128xf32>
    %cst_71 = arith.constant 9.99999974E-6 : f32
    %134 = vector.broadcast %cst_71 : f32 to vector<36x1xf32>
    %135 = arith.addf %131, %134 : vector<36x1xf32>
    %136 = math.rsqrt %135 : vector<36x1xf32>
    %137 = vector.broadcast %136 : vector<36x1xf32> to vector<36x128xf32>
    %138 = arith.mulf %133, %137 : vector<36x128xf32>
    %139 = vector.broadcast %119 : vector<36x1xf32> to vector<36x128xf32>
    %140 = arith.mulf %138, %139 : vector<36x128xf32>
    %141 = vector.broadcast %120 : vector<36x1xf32> to vector<36x128xf32>
    %142 = arith.addf %140, %141 : vector<36x128xf32>
    %cst_72 = arith.constant 0.000000e+00 : f32
    %143 = vector.broadcast %cst_72 : f32 to vector<36x128xf32>
    %144 = arith.cmpf ogt, %142, %143 : vector<36x128xf32>
    %cst_73 = arith.constant 0.00999999977 : f32
    %145 = vector.broadcast %cst_73 : f32 to vector<36x128xf32>
    %146 = arith.mulf %145, %142 : vector<36x128xf32>
    %147 = arith.select %144, %142, %146 : vector<36x128xi1>, vector<36x128xf32>
    %148 = arith.truncf %147 : vector<36x128xf32> to vector<36x128xbf16>
    %c0_74 = arith.constant 0 : index
    %c0_75 = arith.constant 0 : index
    %149 = vector.load %arg5[%c0_74, %c0_75] : memref<128x2048xbf16, #tpu.memory_space<vmem>>, vector<128x2048xbf16>
    %cst_76 = arith.constant dense<0.000000e+00> : vector<36x2048xf32>
    %150 = tpu.matmul %148, %149, %cst_76 {dimension_numbers = #tpu.dot_dimension_numbers<[1], [0], [0], [1], [0, 0, 1, 1], [], []>} : vector<36x128xbf16>, vector<128x2048xbf16>, vector<36x2048xf32> -> vector<36x2048xf32>
    %151 = arith.truncf %150 : vector<36x2048xf32> to vector<36x2048xbf16>
    %cst_77 = arith.constant 0.000000e+00 : f32
    %152 = vector.broadcast %cst_77 : f32 to vector<18x128xf32>
    %c0_78 = arith.constant 0 : index
    %c0_79 = arith.constant 0 : index
    %c0_80 = arith.constant 0 : index
    %153 = vector.load %arg6[%c0_78, %c0_79, %c0_80] : memref<16x18x36xbf16, #tpu.memory_space<vmem>>, vector<1x18x36xbf16>
    %154 = vector.shape_cast %153 : vector<1x18x36xbf16> to vector<18x36xbf16>
    %155 = vector.extract_strided_slice %151 {offsets = [0, 0], sizes = [36, 128], strides = [1, 1]} : vector<36x2048xbf16> to vector<36x128xbf16>
    %cst_81 = arith.constant dense<0.000000e+00> : vector<18x128xf32>
    %156 = tpu.matmul %154, %155, %cst_81 {dimension_numbers = #tpu.dot_dimension_numbers<[1], [0], [0], [1], [0, 0, 1, 1], [], []>} : vector<18x36xbf16>, vector<36x128xbf16>, vector<18x128xf32> -> vector<18x128xf32>
    %157 = arith.addf %152, %156 : vector<18x128xf32>
    %c1_82 = arith.constant 1 : index
    %c0_83 = arith.constant 0 : index
    %c0_84 = arith.constant 0 : index
    %158 = vector.load %arg6[%c1_82, %c0_83, %c0_84] : memref<16x18x36xbf16, #tpu.memory_space<vmem>>, vector<1x18x36xbf16>
    %159 = vector.shape_cast %158 : vector<1x18x36xbf16> to vector<18x36xbf16>
    %160 = vector.extract_strided_slice %151 {offsets = [0, 128], sizes = [36, 128], strides = [1, 1]} : vector<36x2048xbf16> to vector<36x128xbf16>
    %cst_85 = arith.constant dense<0.000000e+00> : vector<18x128xf32>
    %161 = tpu.matmul %159, %160, %cst_85 {dimension_numbers = #tpu.dot_dimension_numbers<[1], [0], [0], [1], [0, 0, 1, 1], [], []>} : vector<18x36xbf16>, vector<36x128xbf16>, vector<18x128xf32> -> vector<18x128xf32>
    %162 = arith.addf %157, %161 : vector<18x128xf32>
    %c2_86 = arith.constant 2 : index
    %c0_87 = arith.constant 0 : index
    %c0_88 = arith.constant 0 : index
    %163 = vector.load %arg6[%c2_86, %c0_87, %c0_88] : memref<16x18x36xbf16, #tpu.memory_space<vmem>>, vector<1x18x36xbf16>
    %164 = vector.shape_cast %163 : vector<1x18x36xbf16> to vector<18x36xbf16>
    %165 = vector.extract_strided_slice %151 {offsets = [0, 256], sizes = [36, 128], strides = [1, 1]} : vector<36x2048xbf16> to vector<36x128xbf16>
    %cst_89 = arith.constant dense<0.000000e+00> : vector<18x128xf32>
    %166 = tpu.matmul %164, %165, %cst_89 {dimension_numbers = #tpu.dot_dimension_numbers<[1], [0], [0], [1], [0, 0, 1, 1], [], []>} : vector<18x36xbf16>, vector<36x128xbf16>, vector<18x128xf32> -> vector<18x128xf32>
    %167 = arith.addf %162, %166 : vector<18x128xf32>
    %c3_90 = arith.constant 3 : index
    %c0_91 = arith.constant 0 : index
    %c0_92 = arith.constant 0 : index
    %168 = vector.load %arg6[%c3_90, %c0_91, %c0_92] : memref<16x18x36xbf16, #tpu.memory_space<vmem>>, vector<1x18x36xbf16>
    %169 = vector.shape_cast %168 : vector<1x18x36xbf16> to vector<18x36xbf16>
    %170 = vector.extract_strided_slice %151 {offsets = [0, 384], sizes = [36, 128], strides = [1, 1]} : vector<36x2048xbf16> to vector<36x128xbf16>
    %cst_93 = arith.constant dense<0.000000e+00> : vector<18x128xf32>
    %171 = tpu.matmul %169, %170, %cst_93 {dimension_numbers = #tpu.dot_dimension_numbers<[1], [0], [0], [1], [0, 0, 1, 1], [], []>} : vector<18x36xbf16>, vector<36x128xbf16>, vector<18x128xf32> -> vector<18x128xf32>
    %172 = arith.addf %167, %171 : vector<18x128xf32>
    %c4_94 = arith.constant 4 : index
    %c0_95 = arith.constant 0 : index
    %c0_96 = arith.constant 0 : index
    %173 = vector.load %arg6[%c4_94, %c0_95, %c0_96] : memref<16x18x36xbf16, #tpu.memory_space<vmem>>, vector<1x18x36xbf16>
    %174 = vector.shape_cast %173 : vector<1x18x36xbf16> to vector<18x36xbf16>
    %175 = vector.extract_strided_slice %151 {offsets = [0, 512], sizes = [36, 128], strides = [1, 1]} : vector<36x2048xbf16> to vector<36x128xbf16>
    %cst_97 = arith.constant dense<0.000000e+00> : vector<18x128xf32>
    %176 = tpu.matmul %174, %175, %cst_97 {dimension_numbers = #tpu.dot_dimension_numbers<[1], [0], [0], [1], [0, 0, 1, 1], [], []>} : vector<18x36xbf16>, vector<36x128xbf16>, vector<18x128xf32> -> vector<18x128xf32>
    %177 = arith.addf %172, %176 : vector<18x128xf32>
    %c5_98 = arith.constant 5 : index
    %c0_99 = arith.constant 0 : index
    %c0_100 = arith.constant 0 : index
    %178 = vector.load %arg6[%c5_98, %c0_99, %c0_100] : memref<16x18x36xbf16, #tpu.memory_space<vmem>>, vector<1x18x36xbf16>
    %179 = vector.shape_cast %178 : vector<1x18x36xbf16> to vector<18x36xbf16>
    %180 = vector.extract_strided_slice %151 {offsets = [0, 640], sizes = [36, 128], strides = [1, 1]} : vector<36x2048xbf16> to vector<36x128xbf16>
    %cst_101 = arith.constant dense<0.000000e+00> : vector<18x128xf32>
    %181 = tpu.matmul %179, %180, %cst_101 {dimension_numbers = #tpu.dot_dimension_numbers<[1], [0], [0], [1], [0, 0, 1, 1], [], []>} : vector<18x36xbf16>, vector<36x128xbf16>, vector<18x128xf32> -> vector<18x128xf32>
    %182 = arith.addf %177, %181 : vector<18x128xf32>
    %c6_102 = arith.constant 6 : index
    %c0_103 = arith.constant 0 : index
    %c0_104 = arith.constant 0 : index
    %183 = vector.load %arg6[%c6_102, %c0_103, %c0_104] : memref<16x18x36xbf16, #tpu.memory_space<vmem>>, vector<1x18x36xbf16>
    %184 = vector.shape_cast %183 : vector<1x18x36xbf16> to vector<18x36xbf16>
    %185 = vector.extract_strided_slice %151 {offsets = [0, 768], sizes = [36, 128], strides = [1, 1]} : vector<36x2048xbf16> to vector<36x128xbf16>
    %cst_105 = arith.constant dense<0.000000e+00> : vector<18x128xf32>
    %186 = tpu.matmul %184, %185, %cst_105 {dimension_numbers = #tpu.dot_dimension_numbers<[1], [0], [0], [1], [0, 0, 1, 1], [], []>} : vector<18x36xbf16>, vector<36x128xbf16>, vector<18x128xf32> -> vector<18x128xf32>
    %187 = arith.addf %182, %186 : vector<18x128xf32>
    %c7_106 = arith.constant 7 : index
    %c0_107 = arith.constant 0 : index
    %c0_108 = arith.constant 0 : index
    %188 = vector.load %arg6[%c7_106, %c0_107, %c0_108] : memref<16x18x36xbf16, #tpu.memory_space<vmem>>, vector<1x18x36xbf16>
    %189 = vector.shape_cast %188 : vector<1x18x36xbf16> to vector<18x36xbf16>
    %190 = vector.extract_strided_slice %151 {offsets = [0, 896], sizes = [36, 128], strides = [1, 1]} : vector<36x2048xbf16> to vector<36x128xbf16>
    %cst_109 = arith.constant dense<0.000000e+00> : vector<18x128xf32>
    %191 = tpu.matmul %189, %190, %cst_109 {dimension_numbers = #tpu.dot_dimension_numbers<[1], [0], [0], [1], [0, 0, 1, 1], [], []>} : vector<18x36xbf16>, vector<36x128xbf16>, vector<18x128xf32> -> vector<18x128xf32>
    %192 = arith.addf %187, %191 : vector<18x128xf32>
    %c8_110 = arith.constant 8 : index
    %c0_111 = arith.constant 0 : index
    %c0_112 = arith.constant 0 : index
    %193 = vector.load %arg6[%c8_110, %c0_111, %c0_112] : memref<16x18x36xbf16, #tpu.memory_space<vmem>>, vector<1x18x36xbf16>
    %194 = vector.shape_cast %193 : vector<1x18x36xbf16> to vector<18x36xbf16>
    %195 = vector.extract_strided_slice %151 {offsets = [0, 1024], sizes = [36, 128], strides = [1, 1]} : vector<36x2048xbf16> to vector<36x128xbf16>
    %cst_113 = arith.constant dense<0.000000e+00> : vector<18x128xf32>
    %196 = tpu.matmul %194, %195, %cst_113 {dimension_numbers = #tpu.dot_dimension_numbers<[1], [0], [0], [1], [0, 0, 1, 1], [], []>} : vector<18x36xbf16>, vector<36x128xbf16>, vector<18x128xf32> -> vector<18x128xf32>
    %197 = arith.addf %192, %196 : vector<18x128xf32>
    %c9_114 = arith.constant 9 : index
    %c0_115 = arith.constant 0 : index
    %c0_116 = arith.constant 0 : index
    %198 = vector.load %arg6[%c9_114, %c0_115, %c0_116] : memref<16x18x36xbf16, #tpu.memory_space<vmem>>, vector<1x18x36xbf16>
    %199 = vector.shape_cast %198 : vector<1x18x36xbf16> to vector<18x36xbf16>
    %200 = vector.extract_strided_slice %151 {offsets = [0, 1152], sizes = [36, 128], strides = [1, 1]} : vector<36x2048xbf16> to vector<36x128xbf16>
    %cst_117 = arith.constant dense<0.000000e+00> : vector<18x128xf32>
    %201 = tpu.matmul %199, %200, %cst_117 {dimension_numbers = #tpu.dot_dimension_numbers<[1], [0], [0], [1], [0, 0, 1, 1], [], []>} : vector<18x36xbf16>, vector<36x128xbf16>, vector<18x128xf32> -> vector<18x128xf32>
    %202 = arith.addf %197, %201 : vector<18x128xf32>
    %c10_118 = arith.constant 10 : index
    %c0_119 = arith.constant 0 : index
    %c0_120 = arith.constant 0 : index
    %203 = vector.load %arg6[%c10_118, %c0_119, %c0_120] : memref<16x18x36xbf16, #tpu.memory_space<vmem>>, vector<1x18x36xbf16>
    %204 = vector.shape_cast %203 : vector<1x18x36xbf16> to vector<18x36xbf16>
    %205 = vector.extract_strided_slice %151 {offsets = [0, 1280], sizes = [36, 128], strides = [1, 1]} : vector<36x2048xbf16> to vector<36x128xbf16>
    %cst_121 = arith.constant dense<0.000000e+00> : vector<18x128xf32>
    %206 = tpu.matmul %204, %205, %cst_121 {dimension_numbers = #tpu.dot_dimension_numbers<[1], [0], [0], [1], [0, 0, 1, 1], [], []>} : vector<18x36xbf16>, vector<36x128xbf16>, vector<18x128xf32> -> vector<18x128xf32>
    %207 = arith.addf %202, %206 : vector<18x128xf32>
    %c11_122 = arith.constant 11 : index
    %c0_123 = arith.constant 0 : index
    %c0_124 = arith.constant 0 : index
    %208 = vector.load %arg6[%c11_122, %c0_123, %c0_124] : memref<16x18x36xbf16, #tpu.memory_space<vmem>>, vector<1x18x36xbf16>
    %209 = vector.shape_cast %208 : vector<1x18x36xbf16> to vector<18x36xbf16>
    %210 = vector.extract_strided_slice %151 {offsets = [0, 1408], sizes = [36, 128], strides = [1, 1]} : vector<36x2048xbf16> to vector<36x128xbf16>
    %cst_125 = arith.constant dense<0.000000e+00> : vector<18x128xf32>
    %211 = tpu.matmul %209, %210, %cst_125 {dimension_numbers = #tpu.dot_dimension_numbers<[1], [0], [0], [1], [0, 0, 1, 1], [], []>} : vector<18x36xbf16>, vector<36x128xbf16>, vector<18x128xf32> -> vector<18x128xf32>
    %212 = arith.addf %207, %211 : vector<18x128xf32>
    %c12_126 = arith.constant 12 : index
    %c0_127 = arith.constant 0 : index
    %c0_128 = arith.constant 0 : index
    %213 = vector.load %arg6[%c12_126, %c0_127, %c0_128] : memref<16x18x36xbf16, #tpu.memory_space<vmem>>, vector<1x18x36xbf16>
    %214 = vector.shape_cast %213 : vector<1x18x36xbf16> to vector<18x36xbf16>
    %215 = vector.extract_strided_slice %151 {offsets = [0, 1536], sizes = [36, 128], strides = [1, 1]} : vector<36x2048xbf16> to vector<36x128xbf16>
    %cst_129 = arith.constant dense<0.000000e+00> : vector<18x128xf32>
    %216 = tpu.matmul %214, %215, %cst_129 {dimension_numbers = #tpu.dot_dimension_numbers<[1], [0], [0], [1], [0, 0, 1, 1], [], []>} : vector<18x36xbf16>, vector<36x128xbf16>, vector<18x128xf32> -> vector<18x128xf32>
    %217 = arith.addf %212, %216 : vector<18x128xf32>
    %c13_130 = arith.constant 13 : index
    %c0_131 = arith.constant 0 : index
    %c0_132 = arith.constant 0 : index
    %218 = vector.load %arg6[%c13_130, %c0_131, %c0_132] : memref<16x18x36xbf16, #tpu.memory_space<vmem>>, vector<1x18x36xbf16>
    %219 = vector.shape_cast %218 : vector<1x18x36xbf16> to vector<18x36xbf16>
    %220 = vector.extract_strided_slice %151 {offsets = [0, 1664], sizes = [36, 128], strides = [1, 1]} : vector<36x2048xbf16> to vector<36x128xbf16>
    %cst_133 = arith.constant dense<0.000000e+00> : vector<18x128xf32>
    %221 = tpu.matmul %219, %220, %cst_133 {dimension_numbers = #tpu.dot_dimension_numbers<[1], [0], [0], [1], [0, 0, 1, 1], [], []>} : vector<18x36xbf16>, vector<36x128xbf16>, vector<18x128xf32> -> vector<18x128xf32>
    %222 = arith.addf %217, %221 : vector<18x128xf32>
    %c14_134 = arith.constant 14 : index
    %c0_135 = arith.constant 0 : index
    %c0_136 = arith.constant 0 : index
    %223 = vector.load %arg6[%c14_134, %c0_135, %c0_136] : memref<16x18x36xbf16, #tpu.memory_space<vmem>>, vector<1x18x36xbf16>
    %224 = vector.shape_cast %223 : vector<1x18x36xbf16> to vector<18x36xbf16>
    %225 = vector.extract_strided_slice %151 {offsets = [0, 1792], sizes = [36, 128], strides = [1, 1]} : vector<36x2048xbf16> to vector<36x128xbf16>
    %cst_137 = arith.constant dense<0.000000e+00> : vector<18x128xf32>
    %226 = tpu.matmul %224, %225, %cst_137 {dimension_numbers = #tpu.dot_dimension_numbers<[1], [0], [0], [1], [0, 0, 1, 1], [], []>} : vector<18x36xbf16>, vector<36x128xbf16>, vector<18x128xf32> -> vector<18x128xf32>
    %227 = arith.addf %222, %226 : vector<18x128xf32>
    %c15_138 = arith.constant 15 : index
    %c0_139 = arith.constant 0 : index
    %c0_140 = arith.constant 0 : index
    %228 = vector.load %arg6[%c15_138, %c0_139, %c0_140] : memref<16x18x36xbf16, #tpu.memory_space<vmem>>, vector<1x18x36xbf16>
    %229 = vector.shape_cast %228 : vector<1x18x36xbf16> to vector<18x36xbf16>
    %230 = vector.extract_strided_slice %151 {offsets = [0, 1920], sizes = [36, 128], strides = [1, 1]} : vector<36x2048xbf16> to vector<36x128xbf16>
    %cst_141 = arith.constant dense<0.000000e+00> : vector<18x128xf32>
    %231 = tpu.matmul %229, %230, %cst_141 {dimension_numbers = #tpu.dot_dimension_numbers<[1], [0], [0], [1], [0, 0, 1, 1], [], []>} : vector<18x36xbf16>, vector<36x128xbf16>, vector<18x128xf32> -> vector<18x128xf32>
    %232 = arith.addf %227, %231 : vector<18x128xf32>
    %233 = tpu.iota {dimensions = array<i32: 1>} : vector<18x128xi32>
    %c0_i32 = arith.constant 0 : i32
    %234 = vector.broadcast %c0_i32 : i32 to vector<18x128xi32>
    %235 = arith.cmpi sge, %233, %234 : vector<18x128xi32>
    %c9_i32 = arith.constant 9 : i32
    %236 = vector.broadcast %c9_i32 : i32 to vector<18x128xi32>
    %237 = arith.cmpi slt, %233, %236 : vector<18x128xi32>
    %238 = arith.andi %235, %237 : vector<18x128xi1>
    %cst_142 = arith.constant -1.000000e+30 : f32
    %239 = vector.broadcast %cst_142 : f32 to vector<18x128xf32>
    %240 = arith.select %238, %232, %239 : vector<18x128xi1>, vector<18x128xf32>
    %cst_143 = arith.constant dense<0xFF800000> : vector<18xf32>
    %241 = vector.multi_reduction <maximumf>, %240, %cst_143 [1] : vector<18x128xf32> to vector<18xf32>
    %242 = vector.shape_cast %241 : vector<18xf32> to vector<18x1xf32>
    %c9_i32_144 = arith.constant 9 : i32
    %243 = vector.broadcast %c9_i32_144 : i32 to vector<18x128xi32>
    %244 = arith.cmpi sge, %233, %243 : vector<18x128xi32>
    %c18_i32 = arith.constant 18 : i32
    %245 = vector.broadcast %c18_i32 : i32 to vector<18x128xi32>
    %246 = arith.cmpi slt, %233, %245 : vector<18x128xi32>
    %247 = arith.andi %244, %246 : vector<18x128xi1>
    %cst_145 = arith.constant -1.000000e+30 : f32
    %248 = vector.broadcast %cst_145 : f32 to vector<18x128xf32>
    %249 = arith.select %247, %232, %248 : vector<18x128xi1>, vector<18x128xf32>
    %cst_146 = arith.constant dense<0xFF800000> : vector<18xf32>
    %250 = vector.multi_reduction <maximumf>, %249, %cst_146 [1] : vector<18x128xf32> to vector<18xf32>
    %251 = vector.shape_cast %250 : vector<18xf32> to vector<18x1xf32>
    %252 = tpu.concatenate %242, %251 in 1 : vector<18x1xf32>, vector<18x1xf32> -> vector<18x2xf32>
    %c0_147 = arith.constant 0 : index
    %c0_148 = arith.constant 0 : index
    %253 = vector.load %arg9[%c0_147, %c0_148] : memref<2x18xf32, #tpu.memory_space<vmem>>, vector<2x18xf32>
    %cst_149 = arith.constant dense<0.000000e+00> : vector<2x2xf32>
    %254 = tpu.matmul %253, %252, %cst_149 {dimension_numbers = #tpu.dot_dimension_numbers<[1], [0], [0], [1], [0, 0, 1, 1], [], []>} : vector<2x18xf32>, vector<18x2xf32>, vector<2x2xf32> -> vector<2x2xf32>
    %c0_150 = arith.constant 0 : index
    %c0_151 = arith.constant 0 : index
    %255 = vector.load %arg10[%c0_150, %c0_151] : memref<2x1xf32, #tpu.memory_space<vmem>>, vector<2x1xf32>
    %256 = vector.broadcast %255 : vector<2x1xf32> to vector<2x2xf32>
    %257 = arith.addf %254, %256 : vector<2x2xf32>
    %c0_152 = arith.constant 0 : index
    %c0_153 = arith.constant 0 : index
    %258 = vector.load %arg11[%c0_152, %c0_153] : memref<2x2xf32, #tpu.memory_space<vmem>>, vector<2x2xf32>
    tpu.vector_store %arg11[%c0_152, %c0_153], %257 {strides = array<i32>} : memref<2x2xf32, #tpu.memory_space<vmem>>, vector<2x2xf32>,
    return
  }
  func.func @transform_0(%arg0: i32) -> (i32, i32) {
    %c0_i32 = arith.constant 0 : i32
    %c0_i32_0 = arith.constant 0 : i32
    %c0_i32_1 = arith.constant 0 : i32
    return %c0_i32, %c0_i32_0 : i32, i32
  }
  func.func @transform_1(%arg0: i32) -> (i32, i32) {
    %c0_i32 = arith.constant 0 : i32
    %c0_i32_0 = arith.constant 0 : i32
    %c0_i32_1 = arith.constant 0 : i32
    return %c0_i32, %c0_i32_0 : i32, i32
  }
  func.func @transform_2(%arg0: i32) -> (i32, i32) {
    %c0_i32 = arith.constant 0 : i32
    %c0_i32_0 = arith.constant 0 : i32
    %c0_i32_1 = arith.constant 0 : i32
    return %c0_i32, %c0_i32_0 : i32, i32
  }
  func.func @transform_3(%arg0: i32) -> (i32, i32, i32) {
    %c0_i32 = arith.constant 0 : i32
    %c0_i32_0 = arith.constant 0 : i32
    %c0_i32_1 = arith.constant 0 : i32
    %c0_i32_2 = arith.constant 0 : i32
    return %c0_i32, %c0_i32_0, %c0_i32_1 : i32, i32, i32
  }
  func.func @transform_4(%arg0: i32) -> (i32, i32) {
    %c0_i32 = arith.constant 0 : i32
    %c0_i32_0 = arith.constant 0 : i32
    %c0_i32_1 = arith.constant 0 : i32
    return %c0_i32, %c0_i32_0 : i32, i32
  }
  func.func @transform_5(%arg0: i32) -> (i32, i32, i32) {
    %c0_i32 = arith.constant 0 : i32
    %c0_i32_0 = arith.constant 0 : i32
    %c0_i32_1 = arith.constant 0 : i32
    %c0_i32_2 = arith.constant 0 : i32
    return %c0_i32, %c0_i32_0, %c0_i32_1 : i32, i32, i32
  }
  func.func @transform_6(%arg0: i32) -> (i32, i32) {
    %c0_i32 = arith.constant 0 : i32
    %c0_i32_0 = arith.constant 0 : i32
    %c0_i32_1 = arith.constant 0 : i32
    return %c0_i32, %c0_i32_0 : i32, i32
  }
  func.func @transform_7(%arg0: i32) -> (i32, i32) {
    %c0_i32 = arith.constant 0 : i32
    %c0_i32_0 = arith.constant 0 : i32
    %c0_i32_1 = arith.constant 0 : i32
    return %c0_i32, %c0_i32_0 : i32, i32
  }
  func.func @transform_8(%arg0: i32) -> (i32, i32) {
    %c0_i32 = arith.constant 0 : i32
    %c0_i32_0 = arith.constant 0 : i32
    %c0_i32_1 = arith.constant 0 : i32
    return %c0_i32, %c0_i32_0 : i32, i32
  }
  func.func @transform_9(%arg0: i32) -> (i32, i32) {
    %c0_i32 = arith.constant 0 : i32
    %c0_i32_0 = arith.constant 0 : i32
    %c0_i32_1 = arith.constant 0 : i32
    return %c0_i32, %c0_i32_0 : i32, i32
  }
  func.func @transform_10(%arg0: i32) -> (i32, i32) {
    %c0_i32 = arith.constant 0 : i32
    %c0_i32_0 = arith.constant 0 : i32
    %c0_i32_1 = arith.constant 0 : i32
    return %c0_i32, %c0_i32_0 : i32, i32
  }
}

</mosaic_0001>

<llo_original>
// kernel: upps_net_forward.1
$region0: #{upps_net_forward.1}
  #allocation0 [shape = 'u32[]', space=smem, size = 0x4, offset = 0x4, fixed_abs, tag = 'smem constant byte address 0x4 - core index']
  #allocation1 [shape = 'u32[144,128]{1,0:T(1,128)}', space=vmem, size = 0x12000, scoped, tag = 'internal scratch']
  %s0 = inlined_call_operand.vmem [shape: bf16[64,162], index: 0, kind: input, shape index: {}]
  %s1 = inlined_call_operand.vmem [shape: bf16[18,64], index: 1, kind: input, shape index: {}]
  %s2 = inlined_call_operand.vmem [shape: bf16[162,2048], index: 2, kind: input, shape index: {}]
  %s3 = inlined_call_operand.vmem [shape: bf16[16,36,18], index: 3, kind: input, shape index: {}]
  %s4 = inlined_call_operand.vmem [shape: bf16[128,2048], index: 4, kind: input, shape index: {}]
  %s5 = inlined_call_operand.vmem [shape: bf16[16,18,36], index: 5, kind: input, shape index: {}]
  %s6 = inlined_call_operand.vmem [shape: f32[18,2], index: 6, kind: input, shape index: {}]
  %s7 = inlined_call_operand.vmem [shape: f32[36,2], index: 7, kind: input, shape index: {}]
  %s8 = inlined_call_operand.vmem [shape: f32[2,18], index: 8, kind: input, shape index: {}]
  %s9 = inlined_call_operand.vmem [shape: f32[2,1], index: 9, kind: input, shape index: {}]
  %s10 = inlined_call_operand.vmem [shape: f32[2,2], index: 10, kind: output, shape index: {}]
  %s11 = sld [smem:[#allocation0]]
  $region50: #{upps_net_forward.1} parent=0
    _
  %s13 = ssub.s32 1, %s11
  %s14 = scalar_select 0, %s13, %s11
  // Predicated region
  $region2: #{upps_net_forward.1} parent=0 // pred_check
    _
  $region3: #{upps_net_forward.1} parent=0 // pred_check_branch
    %16 = sbr.rel (0) target = $region5
  $region4: #{upps_net_forward.1} parent=0 // pred_region
    _
  $region5: #{upps_net_forward.1} parent=0 // pred_fallthru
    _
  // Predicated region
  $region6: #{upps_net_forward.1} parent=0 // pred_check
    _
  $region7: #{upps_net_forward.1} parent=0 // pred_check_branch
    %18 = sbr.rel (0) target = $region9
  $region8: #{upps_net_forward.1} parent=0 // pred_region
    _
  $region9: #{upps_net_forward.1} parent=0 // pred_fallthru
    _
  // Predicated region
  $region10: #{upps_net_forward.1} parent=0 // pred_check
    _
  $region11: #{upps_net_forward.1} parent=0 // pred_check_branch
    %20 = sbr.rel (0) target = $region13
  $region12: #{upps_net_forward.1} parent=0 // pred_region
    _
  $region13: #{upps_net_forward.1} parent=0 // pred_fallthru
    _
  // Predicated region
  $region14: #{upps_net_forward.1} parent=0 // pred_check
    _
  $region15: #{upps_net_forward.1} parent=0 // pred_check_branch
    %22 = sbr.rel (0) target = $region17
  $region16: #{upps_net_forward.1} parent=0 // pred_region
    _
  $region17: #{upps_net_forward.1} parent=0 // pred_fallthru
    _
  // Predicated region
  $region18: #{upps_net_forward.1} parent=0 // pred_check
    _
  $region19: #{upps_net_forward.1} parent=0 // pred_check_branch
    %24 = sbr.rel (0) target = $region21
  $region20: #{upps_net_forward.1} parent=0 // pred_region
    _
  $region21: #{upps_net_forward.1} parent=0 // pred_fallthru
    _
  // Predicated region
  $region22: #{upps_net_forward.1} parent=0 // pred_check
    _
  $region23: #{upps_net_forward.1} parent=0 // pred_check_branch
    %26 = sbr.rel (0) target = $region25
  $region24: #{upps_net_forward.1} parent=0 // pred_region
    _
  $region25: #{upps_net_forward.1} parent=0 // pred_fallthru
    _
  // Predicated region
  $region26: #{upps_net_forward.1} parent=0 // pred_check
    _
  $region27: #{upps_net_forward.1} parent=0 // pred_check_branch
    %28 = sbr.rel (0) target = $region29
  $region28: #{upps_net_forward.1} parent=0 // pred_region
    _
  $region29: #{upps_net_forward.1} parent=0 // pred_fallthru
    _
  // Predicated region
  $region30: #{upps_net_forward.1} parent=0 // pred_check
    _
  $region31: #{upps_net_forward.1} parent=0 // pred_check_branch
    %30 = sbr.rel (0) target = $region33
  $region32: #{upps_net_forward.1} parent=0 // pred_region
    _
  $region33: #{upps_net_forward.1} parent=0 // pred_fallthru
    _
  // Predicated region
  $region34: #{upps_net_forward.1} parent=0 // pred_check
    _
  $region35: #{upps_net_forward.1} parent=0 // pred_check_branch
    %32 = sbr.rel (0) target = $region37
  $region36: #{upps_net_forward.1} parent=0 // pred_region
    _
  $region37: #{upps_net_forward.1} parent=0 // pred_fallthru
    _
  // Predicated region
  $region38: #{upps_net_forward.1} parent=0 // pred_check
    _
  $region39: #{upps_net_forward.1} parent=0 // pred_check_branch
    %34 = sbr.rel (0) target = $region41
  $region40: #{upps_net_forward.1} parent=0 // pred_region
    _
  $region41: #{upps_net_forward.1} parent=0 // pred_fallthru
    _
  %v36 = vld [vmem:[%s1] sm:$0xf]
  %v37 = vld [vmem:[%s1 + $0x4] sm:$0xf]
  %v38 = vld [vmem:[%s1 + $0x8] sm:$0x1]
  %v39 = vld [vmem:[%s0] sm:$0xff]
  %v40 = vld [vmem:[%s0 + $0x8] sm:$0xff]
  %v41 = vld [vmem:[%s0 + $0x10] sm:$0xff]
  %v42 = vld [vmem:[%s0 + $0x18] sm:$0xff]
  %v43 = vld [vmem:[%s0 + $0x20] sm:$0xff]
  %v44 = vld [vmem:[%s0 + $0x28] sm:$0xff]
  %v45 = vld [vmem:[%s0 + $0x30] sm:$0xff]
  %v46 = vld [vmem:[%s0 + $0x38] sm:$0xff]
  %v50 = vunpack.c.l.b16 %v36
  %v51 = vunpack.c.l.b16 %v37
  %v52 = vunpack.c.l.b16 %v38
  %v53 = vpack.c.b16 %v51, %v50
  %v54 = vpack.c.b16 %v52, %v52
  %v63 = vunpack.c.l.b16 %v39
  %v64 = vunpack.c.h.b16 %v39
  %v65 = vunpack.c.l.b16 %v40
  %v66 = vunpack.c.h.b16 %v40
  %v67 = vunpack.c.l.b16 %v41
  %v68 = vunpack.c.h.b16 %v41
  %v69 = vunpack.c.l.b16 %v42
  %v70 = vunpack.c.h.b16 %v42
  %v71 = vunpack.c.l.b16 %v43
  %v72 = vunpack.c.h.b16 %v43
  %v73 = vunpack.c.l.b16 %v44
  %v74 = vunpack.c.h.b16 %v44
  %v75 = vunpack.c.l.b16 %v45
  %v76 = vunpack.c.h.b16 %v45
  %v77 = vunpack.c.l.b16 %v46
  %v78 = vunpack.c.h.b16 %v46
  %v79 = vpack.c.b16 %v65, %v63
  %v80 = vpack.c.b16 %v66, %v64
  %v81 = vpack.c.b16 %v69, %v67
  %v82 = vpack.c.b16 %v70, %v68
  %v83 = vpack.c.b16 %v73, %v71
  %v84 = vpack.c.b16 %v74, %v72
  %v85 = vpack.c.b16 %v77, %v75
  %v86 = vpack.c.b16 %v78, %v76
  %vm95 = vcmask 523264
  %v97 = vsel %vm95, %v53, 0
  %v100 = vsel %vm95, %v54, 0
  %102 = vmatprep.subr.bf16.mxu0 0
  %103 = vmatpush1.bf16.msra.mxu0 0
  %104 = vmatprep.subr.bf16.mxu0 0
  %105 = vmatpush1.bf16.msra.mxu0 0
  %106 = vmatprep.subr.bf16.mxu0 0
  %107 = vmatpush1.bf16.msra.mxu0 0
  %108 = vmatprep.subr.bf16.mxu0 0
  %109 = vmatpush1.bf16.msra.mxu0 0
  %110 = vmatprep.subr.bf16.mxu0 %v86
  %111 = vmatpush1.bf16.msra.mxu0 %v85
  %112 = vmatprep.subr.bf16.mxu0 %v84
  %113 = vmatpush1.bf16.msra.mxu0 %v83
  %114 = vmatprep.subr.bf16.mxu0 %v82
  %115 = vmatpush1.bf16.msra.mxu0 %v81
  %116 = vmatprep.subr.bf16.mxu0 %v80
  %117 = vmatpush1.bf16.msra.mxu0 %v79
  %118 = vmatprep.subr.bf16.mxu0 0
  %119 = vmatpush2.bf16.msra.mxu0 0
  %120 = vmatprep.subr.bf16.mxu0 0
  %121 = vmatpush2.bf16.msra.mxu0 0
  %122 = vmatprep.subr.bf16.mxu0 0
  %123 = vmatpush2.bf16.msra.mxu0 0
  %124 = vmatprep.subr.bf16.mxu0 0
  %125 = vmatpush2.bf16.msra.mxu0 0
  %126 = vmatprep.subr.bf16.mxu0 0
  %127 = vmatpush2.bf16.msra.mxu0 0
  %128 = vmatprep.subr.bf16.mxu0 0
  %129 = vmatpush2.bf16.msra.mxu0 0
  %130 = vmatprep.subr.bf16.mxu0 0
  %131 = vmatpush2.bf16.msra.mxu0 0
  %132 = vmatprep.subr.bf16.mxu0 0
  %133 = vmatpush2.bf16.msra.mxu0 0
  %134 = vmatprep.mubr.bf16.mxu0 0
  %135 = vmatmul.mubr.bf16.gmra.mxu0 %v97
  %v136 = vpop.f32.mrf.mxu0
  %v137 = vadd.f32 0.0, %v136
  %v138 = vpop.f32.mrf.mxu0
  %v139 = vadd.f32 0.0, %v138
  %v140 = vpop.f32.mrf.mxu0
  %v141 = vadd.f32 0.0, %v140
  %v142 = vpop.f32.mrf.mxu0
  %v143 = vadd.f32 0.0, %v142
  %144 = vmatprep.mubr.bf16.mxu0 0
  %145 = vmatmul.mubr.bf16.gmra.mxu0 %v100
  %v146 = vpop.f32.mrf.mxu0
  %v147 = vadd.f32 0.0, %v146
  %v148 = vpop.f32.mrf.mxu0
  %v149 = vadd.f32 0.0, %v148
  %v150 = vpop.f32.mrf.mxu0
  %v151 = vpop.f32.mrf.mxu0
  %152 = vdwg.mxu0
  %v153 = vld [vmem:[%s6] sm:$0xff]
  %v154 = vld [vmem:[%s6 + $0x8] sm:$0xff]
  %v155 = vld [vmem:[%s6 + $0x10] sm:$0x3]
  %vm156 = vcmask 277504
  %v157 = vsel %vm156, %v139, 0.0
  %v158 = vadd.f32 %v137, %v157
  %159 = vadd.xlane.f32.xlu0 %v158
  %v160 = vpop.xlane.xlu0 %159
  %v161 = vsel %vm156, %v143, 0.0
  %v162 = vadd.f32 %v141, %v161
  %163 = vadd.xlane.f32.xlu0 %v162
  %v164 = vpop.xlane.xlu0 %163
  %vm165 = vcmask 1041408
  %v166 = vsel %vm165, %v147, 0.0
  %vm167 = vcmask 271360
  %v168 = vsel %vm167, %v149, 0.0
  %v169 = vadd.f32 %v166, %v168
  %170 = vadd.xlane.f32.xlu0 %v169
  %v171 = vpop.xlane.xlu0 %170
  %v172 = vmul.f32 %v160, 0.0061728396
  %v173 = vmul.f32 %v164, 0.0061728396
  %v174 = vmul.f32 %v171, 0.0061728396
  %v175 = vmul.f32 %v137, %v137
  %v176 = vmul.f32 %v139, %v139
  %v177 = vmul.f32 %v141, %v141
  %v178 = vmul.f32 %v143, %v143
  %v179 = vmul.f32 %v147, %v147
  %v180 = vmul.f32 %v149, %v149
  %v181 = vsel %vm156, %v176, 0.0
  %v182 = vadd.f32 %v175, %v181
  %183 = vadd.xlane.f32.xlu0 %v182
  %v184 = vpop.xlane.xlu0 %183
  %v185 = vsel %vm156, %v178, 0.0
  %v186 = vadd.f32 %v177, %v185
  %187 = vadd.xlane.f32.xlu0 %v186
  %v188 = vpop.xlane.xlu0 %187
  %v189 = vsel %vm165, %v179, 0.0
  %v190 = vsel %vm167, %v180, 0.0
  %v191 = vadd.f32 %v189, %v190
  %192 = vadd.xlane.f32.xlu0 %v191
  %v193 = vpop.xlane.xlu0 %192
  %v194 = vmul.f32 %v184, 0.0061728396
  %v195 = vmul.f32 %v188, 0.0061728396
  %v196 = vmul.f32 %v193, 0.0061728396
  %v197 = vmul.f32 %v172, %v172
  %v198 = vmul.f32 %v173, %v173
  %v199 = vmul.f32 %v174, %v174
  %v200 = vsub.f32 %v194, %v197
  %v201 = vsub.f32 %v195, %v198
  %v202 = vsub.f32 %v196, %v199
  %v203 = vsub.f32 %v137, %v172
  %v204 = vsub.f32 %v139, %v172
  %v205 = vsub.f32 %v141, %v173
  %v206 = vsub.f32 %v143, %v173
  %v207 = vsub.f32 %v147, %v174
  %v208 = vsub.f32 %v149, %v174
  %v209 = vadd.f32 %v200, 1e-05
  %v210 = vadd.f32 %v201, 1e-05
  %v211 = vadd.f32 %v202, 1e-05
  %v212 = vrsqrt.pop %v209
  %v213 = vrsqrt.pop %v210
  %v214 = vrsqrt.pop %v211
  %v215 = vmul.f32 %v203, %v212
  %v216 = vmul.f32 %v204, %v212
  %v217 = vmul.f32 %v205, %v213
  %v218 = vmul.f32 %v206, %v213
  %v219 = vmul.f32 %v207, %v214
  %v220 = vmul.f32 %v208, %v214
  %222 = vset.pattern.permute.xlu0 0
  %223 = vperm.xlu0 %222, %v153
  %v224 = vpop.permute.xlu0 %223
  %227 = vset.pattern.permute.xlu0 0
  %228 = vperm.xlu0 %227, %v154
  %v229 = vpop.permute.xlu0 %228
  %232 = vset.pattern.permute.xlu0 0
  %233 = vperm.xlu0 %232, %v155
  %v234 = vpop.permute.xlu0 %233
  %v236 = vmul.f32 %v215, %v224
  %v237 = vmul.f32 %v216, %v224
  %v238 = vmul.f32 %v217, %v229
  %v239 = vmul.f32 %v218, %v229
  %v240 = vmul.f32 %v219, %v234
  %v241 = vmul.f32 %v220, %v234
  %242 = vset.pattern.permute.xlu0 1
  %243 = vperm.xlu0 %242, %v153
  %v244 = vpop.permute.xlu0 %243
  %246 = vset.pattern.permute.xlu0 1
  %247 = vperm.xlu0 %246, %v154
  %v248 = vpop.permute.xlu0 %247
  %250 = vset.pattern.permute.xlu0 1
  %251 = vperm.xlu0 %250, %v155
  %v252 = vpop.permute.xlu0 %251
  %v254 = vadd.f32 %v236, %v244
  %v255 = vadd.f32 %v237, %v244
  %v256 = vadd.f32 %v238, %v248
  %v257 = vadd.f32 %v239, %v248
  %v258 = vadd.f32 %v240, %v252
  %v259 = vadd.f32 %v241, %v252
  %vm260 = vcmp.gt.f32.partialorder %v254, 0.0
  %vm261 = vcmp.gt.f32.partialorder %v255, 0.0
  %vm262 = vcmp.gt.f32.partialorder %v256, 0.0
  %vm263 = vcmp.gt.f32.partialorder %v257, 0.0
  %vm264 = vcmp.gt.f32.partialorder %v258, 0.0
  %vm265 = vcmp.gt.f32.partialorder %v259, 0.0
  %v266 = vmul.f32 %v254, 0.01
  %v267 = vmul.f32 %v255, 0.01
  %v268 = vmul.f32 %v256, 0.01
  %v269 = vmul.f32 %v257, 0.01
  %v270 = vmul.f32 %v258, 0.01
  %v271 = vmul.f32 %v259, 0.01
  %v272 = vsel %vm260, %v254, %v266
  %v273 = vsel %vm261, %v255, %v267
  %v274 = vsel %vm262, %v256, %v268
  %v275 = vsel %vm263, %v257, %v269
  %v276 = vsel %vm264, %v258, %v270
  %v277 = vsel %vm265, %v259, %v271
  %v278 = vpack.c.bf16 %v274, %v272
  %v279 = vpack.c.bf16 %v275, %v273
  %v280 = vpack.c.bf16 %v276, %v276
  %v281 = vpack.c.bf16 %v277, %v277
  %v282 = vld [vmem:[%s2] sm:$0xff]
  %v283 = vld [vmem:[%s2 + $0x8] sm:$0xff]
  %v284 = vld [vmem:[%s2 + $0x10] sm:$0xff]
  %v285 = vld [vmem:[%s2 + $0x18] sm:$0xff]
  %v286 = vld [vmem:[%s2 + $0x20] sm:$0xff]
  %v287 = vld [vmem:[%s2 + $0x28] sm:$0xff]
  %v288 = vld [vmem:[%s2 + $0x30] sm:$0xff]
  %v289 = vld [vmem:[%s2 + $0x38] sm:$0xff]
  %v290 = vld [vmem:[%s2 + $0x40] sm:$0xff]
  %v291 = vld [vmem:[%s2 + $0x48] sm:$0xff]
  %v292 = vld [vmem:[%s2 + $0x50] sm:$0xff]
  %v293 = vld [vmem:[%s2 + $0x58] sm:$0xff]
  %v294 = vld [vmem:[%s2 + $0x60] sm:$0xff]
  %v295 = vld [vmem:[%s2 + $0x68] sm:$0xff]
  %v296 = vld [vmem:[%s2 + $0x70] sm:$0xff]
  %v297 = vld [vmem:[%s2 + $0x78] sm:$0xff]
  %v298 = vld [vmem:[%s2 + $0x80] sm:$0xff]
  %v299 = vld [vmem:[%s2 + $0x88] sm:$0xff]
  %v300 = vld [vmem:[%s2 + $0x90] sm:$0xff]
  %v301 = vld [vmem:[%s2 + $0x98] sm:$0xff]
  %v302 = vld [vmem:[%s2 + $0xa0] sm:$0xff]
  %v303 = vld [vmem:[%s2 + $0xa8] sm:$0xff]
  %v304 = vld [vmem:[%s2 + $0xb0] sm:$0xff]
  %v305 = vld [vmem:[%s2 + $0xb8] sm:$0xff]
  %v306 = vld [vmem:[%s2 + $0xc0] sm:$0xff]
  %v307 = vld [vmem:[%s2 + $0xc8] sm:$0xff]
  %v308 = vld [vmem:[%s2 + $0xd0] sm:$0xff]
  %v309 = vld [vmem:[%s2 + $0xd8] sm:$0xff]
  %v310 = vld [vmem:[%s2 + $0xe0] sm:$0xff]
  %v311 = vld [vmem:[%s2 + $0xe8] sm:$0xff]
  %v312 = vld [vmem:[%s2 + $0xf0] sm:$0xff]
  %v313 = vld [vmem:[%s2 + $0xf8] sm:$0xff]
  %v314 = vld [vmem:[%s2 + $0x100] sm:$0xff]
  %v315 = vld [vmem:[%s2 + $0x108] sm:$0xff]
  %v316 = vld [vmem:[%s2 + $0x110] sm:$0xff]
  %v317 = vld [vmem:[%s2 + $0x118] sm:$0xff]
  %v318 = vld [vmem:[%s2 + $0x120] sm:$0xff]
  %v319 = vld [vmem:[%s2 + $0x128] sm:$0xff]
  %v320 = vld [vmem:[%s2 + $0x130] sm:$0xff]
  %v321 = vld [vmem:[%s2 + $0x138] sm:$0xff]
  %v322 = vld [vmem:[%s2 + $0x140] sm:$0xff]
  %v323 = vld [vmem:[%s2 + $0x148] sm:$0xff]
  %v324 = vld [vmem:[%s2 + $0x150] sm:$0xff]
  %v325 = vld [vmem:[%s2 + $0x158] sm:$0xff]
  %v326 = vld [vmem:[%s2 + $0x160] sm:$0xff]
  %v327 = vld [vmem:[%s2 + $0x168] sm:$0xff]
  %v328 = vld [vmem:[%s2 + $0x170] sm:$0xff]
  %v329 = vld [vmem:[%s2 + $0x178] sm:$0xff]
  %v330 = vld [vmem:[%s2 + $0x180] sm:$0xff]
  %v331 = vld [vmem:[%s2 + $0x188] sm:$0xff]
  %v332 = vld [vmem:[%s2 + $0x190] sm:$0xff]
  %v333 = vld [vmem:[%s2 + $0x198] sm:$0xff]
  %v334 = vld [vmem:[%s2 + $0x1a0] sm:$0xff]
  %v335 = vld [vmem:[%s2 + $0x1a8] sm:$0xff]
  %v336 = vld [vmem:[%s2 + $0x1b0] sm:$0xff]
  %v337 = vld [vmem:[%s2 + $0x1b8] sm:$0xff]
  %v338 = vld [vmem:[%s2 + $0x1c0] sm:$0xff]
  %v339 = vld [vmem:[%s2 + $0x1c8] sm:$0xff]
  %v340 = vld [vmem:[%s2 + $0x1d0] sm:$0xff]
  %v341 = vld [vmem:[%s2 + $0x1d8] sm:$0xff]
  %v342 = vld [vmem:[%s2 + $0x1e0] sm:$0xff]
  %v343 = vld [vmem:[%s2 + $0x1e8] sm:$0xff]
  %v344 = vld [vmem:[%s2 + $0x1f0] sm:$0xff]
  %v345 = vld [vmem:[%s2 + $0x1f8] sm:$0xff]
  %v346 = vld [vmem:[%s2 + $0x200] sm:$0xff]
  %v347 = vld [vmem:[%s2 + $0x208] sm:$0xff]
  %v348 = vld [vmem:[%s2 + $0x210] sm:$0xff]
  %v349 = vld [vmem:[%s2 + $0x218] sm:$0xff]
  %v350 = vld [vmem:[%s2 + $0x220] sm:$0xff]
  %v351 = vld [vmem:[%s2 + $0x228] sm:$0xff]
  %v352 = vld [vmem:[%s2 + $0x230] sm:$0xff]
  %v353 = vld [vmem:[%s2 + $0x238] sm:$0xff]
  %v354 = vld [vmem:[%s2 + $0x240] sm:$0xff]
  %v355 = vld [vmem:[%s2 + $0x248] sm:$0xff]
  %v356 = vld [vmem:[%s2 + $0x250] sm:$0xff]
  %v357 = vld [vmem:[%s2 + $0x258] sm:$0xff]
  %v358 = vld [vmem:[%s2 + $0x260] sm:$0xff]
  %v359 = vld [vmem:[%s2 + $0x268] sm:$0xff]
  %v360 = vld [vmem:[%s2 + $0x270] sm:$0xff]
  %v361 = vld [vmem:[%s2 + $0x278] sm:$0xff]
  %v362 = vld [vmem:[%s2 + $0x280] sm:$0xff]
  %v363 = vld [vmem:[%s2 + $0x288] sm:$0xff]
  %v364 = vld [vmem:[%s2 + $0x290] sm:$0xff]
  %v365 = vld [vmem:[%s2 + $0x298] sm:$0xff]
  %v366 = vld [vmem:[%s2 + $0x2a0] sm:$0xff]
  %v367 = vld [vmem:[%s2 + $0x2a8] sm:$0xff]
  %v368 = vld [vmem:[%s2 + $0x2b0] sm:$0xff]
  %v369 = vld [vmem:[%s2 + $0x2b8] sm:$0xff]
  %v370 = vld [vmem:[%s2 + $0x2c0] sm:$0xff]
  %v371 = vld [vmem:[%s2 + $0x2c8] sm:$0xff]
  %v372 = vld [vmem:[%s2 + $0x2d0] sm:$0xff]
  %v373 = vld [vmem:[%s2 + $0x2d8] sm:$0xff]
  %v374 = vld [vmem:[%s2 + $0x2e0] sm:$0xff]
  %v375 = vld [vmem:[%s2 + $0x2e8] sm:$0xff]
  %v376 = vld [vmem:[%s2 + $0x2f0] sm:$0xff]
  %v377 = vld [vmem:[%s2 + $0x2f8] sm:$0xff]
  %v378 = vld [vmem:[%s2 + $0x300] sm:$0xff]
  %v379 = vld [vmem:[%s2 + $0x308] sm:$0xff]
  %v380 = vld [vmem:[%s2 + $0x310] sm:$0xff]
  %v381 = vld [vmem:[%s2 + $0x318] sm:$0xff]
  %v382 = vld [vmem:[%s2 + $0x320] sm:$0xff]
  %v383 = vld [vmem:[%s2 + $0x328] sm:$0xff]
  %v384 = vld [vmem:[%s2 + $0x330] sm:$0xff]
  %v385 = vld [vmem:[%s2 + $0x338] sm:$0xff]
  %v386 = vld [vmem:[%s2 + $0x340] sm:$0xff]
  %v387 = vld [vmem:[%s2 + $0x348] sm:$0xff]
  %v388 = vld [vmem:[%s2 + $0x350] sm:$0xff]
  %v389 = vld [vmem:[%s2 + $0x358] sm:$0xff]
  %v390 = vld [vmem:[%s2 + $0x360] sm:$0xff]
  %v391 = vld [vmem:[%s2 + $0x368] sm:$0xff]
  %v392 = vld [vmem:[%s2 + $0x370] sm:$0xff]
  %v393 = vld [vmem:[%s2 + $0x378] sm:$0xff]
  %v394 = vld [vmem:[%s2 + $0x380] sm:$0xff]
  %v395 = vld [vmem:[%s2 + $0x388] sm:$0xff]
  %v396 = vld [vmem:[%s2 + $0x390] sm:$0xff]
  %v397 = vld [vmem:[%s2 + $0x398] sm:$0xff]
  %v398 = vld [vmem:[%s2 + $0x3a0] sm:$0xff]
  %v399 = vld [vmem:[%s2 + $0x3a8] sm:$0xff]
  %v400 = vld [vmem:[%s2 + $0x3b0] sm:$0xff]
  %v401 = vld [vmem:[%s2 + $0x3b8] sm:$0xff]
  %v402 = vld [vmem:[%s2 + $0x3c0] sm:$0xff]
  %v403 = vld [vmem:[%s2 + $0x3c8] sm:$0xff]
  %v404 = vld [vmem:[%s2 + $0x3d0] sm:$0xff]
  %v405 = vld [vmem:[%s2 + $0x3d8] sm:$0xff]
  %v406 = vld [vmem:[%s2 + $0x3e0] sm:$0xff]
  %v407 = vld [vmem:[%s2 + $0x3e8] sm:$0xff]
  %v408 = vld [vmem:[%s2 + $0x3f0] sm:$0xff]
  %v409 = vld [vmem:[%s2 + $0x3f8] sm:$0xff]
  %v410 = vld [vmem:[%s2 + $0x400] sm:$0xff]
  %v411 = vld [vmem:[%s2 + $0x408] sm:$0xff]
  %v412 = vld [vmem:[%s2 + $0x410] sm:$0xff]
  %v413 = vld [vmem:[%s2 + $0x418] sm:$0xff]
  %v414 = vld [vmem:[%s2 + $0x420] sm:$0xff]
  %v415 = vld [vmem:[%s2 + $0x428] sm:$0xff]
  %v416 = vld [vmem:[%s2 + $0x430] sm:$0xff]
  %v417 = vld [vmem:[%s2 + $0x438] sm:$0xff]
  %v418 = vld [vmem:[%s2 + $0x440] sm:$0xff]
  %v419 = vld [vmem:[%s2 + $0x448] sm:$0xff]
  %v420 = vld [vmem:[%s2 + $0x450] sm:$0xff]
  %v421 = vld [vmem:[%s2 + $0x458] sm:$0xff]
  %v422 = vld [vmem:[%s2 + $0x460] sm:$0xff]
  %v423 = vld [vmem:[%s2 + $0x468] sm:$0xff]
  %v424 = vld [vmem:[%s2 + $0x470] sm:$0xff]
  %v425 = vld [vmem:[%s2 + $0x478] sm:$0xff]
  %v426 = vld [vmem:[%s2 + $0x480] sm:$0xff]
  %v427 = vld [vmem:[%s2 + $0x488] sm:$0xff]
  %v428 = vld [vmem:[%s2 + $0x490] sm:$0xff]
  %v429 = vld [vmem:[%s2 + $0x498] sm:$0xff]
  %v430 = vld [vmem:[%s2 + $0x4a0] sm:$0xff]
  %v431 = vld [vmem:[%s2 + $0x4a8] sm:$0xff]
  %v432 = vld [vmem:[%s2 + $0x4b0] sm:$0xff]
  %v433 = vld [vmem:[%s2 + $0x4b8] sm:$0xff]
  %v434 = vld [vmem:[%s2 + $0x4c0] sm:$0xff]
  %v435 = vld [vmem:[%s2 + $0x4c8] sm:$0xff]
  %v436 = vld [vmem:[%s2 + $0x4d0] sm:$0xff]
  %v437 = vld [vmem:[%s2 + $0x4d8] sm:$0xff]
  %v438 = vld [vmem:[%s2 + $0x4e0] sm:$0xff]
  %v439 = vld [vmem:[%s2 + $0x4e8] sm:$0xff]
  %v440 = vld [vmem:[%s2 + $0x4f0] sm:$0xff]
  %v441 = vld [vmem:[%s2 + $0x4f8] sm:$0xff]
  %v442 = vld [vmem:[%s2 + $0x500] sm:$0x11]
  %v443 = vld [vmem:[%s2 + $0x508] sm:$0x11]
  %v444 = vld [vmem:[%s2 + $0x510] sm:$0x11]
  %v445 = vld [vmem:[%s2 + $0x518] sm:$0x11]
  %v446 = vld [vmem:[%s2 + $0x520] sm:$0x11]
  %v447 = vld [vmem:[%s2 + $0x528] sm:$0x11]
  %v448 = vld [vmem:[%s2 + $0x530] sm:$0x11]
  %v449 = vld [vmem:[%s2 + $0x538] sm:$0x11]
  %v618 = vunpack.c.l.b16 %v282
  %v619 = vunpack.c.h.b16 %v282
  %v620 = vunpack.c.l.b16 %v283
  %v621 = vunpack.c.h.b16 %v283
  %v622 = vunpack.c.l.b16 %v284
  %v623 = vunpack.c.h.b16 %v284
  %v624 = vunpack.c.l.b16 %v285
  %v625 = vunpack.c.h.b16 %v285
  %v626 = vunpack.c.l.b16 %v286
  %v627 = vunpack.c.h.b16 %v286
  %v628 = vunpack.c.l.b16 %v287
  %v629 = vunpack.c.h.b16 %v287
  %v630 = vunpack.c.l.b16 %v288
  %v631 = vunpack.c.h.b16 %v288
  %v632 = vunpack.c.l.b16 %v289
  %v633 = vunpack.c.h.b16 %v289
  %v634 = vunpack.c.l.b16 %v290
  %v635 = vunpack.c.h.b16 %v290
  %v636 = vunpack.c.l.b16 %v291
  %v637 = vunpack.c.h.b16 %v291
  %v638 = vunpack.c.l.b16 %v292
  %v639 = vunpack.c.h.b16 %v292
  %v640 = vunpack.c.l.b16 %v293
  %v641 = vunpack.c.h.b16 %v293
  %v642 = vunpack.c.l.b16 %v294
  %v643 = vunpack.c.h.b16 %v294
  %v644 = vunpack.c.l.b16 %v295
  %v645 = vunpack.c.h.b16 %v295
  %v646 = vunpack.c.l.b16 %v296
  %v647 = vunpack.c.h.b16 %v296
  %v648 = vunpack.c.l.b16 %v297
  %v649 = vunpack.c.h.b16 %v297
  %v650 = vunpack.c.l.b16 %v298
  %v651 = vunpack.c.h.b16 %v298
  %v652 = vunpack.c.l.b16 %v299
  %v653 = vunpack.c.h.b16 %v299
  %v654 = vunpack.c.l.b16 %v300
  %v655 = vunpack.c.h.b16 %v300
  %v656 = vunpack.c.l.b16 %v301
  %v657 = vunpack.c.h.b16 %v301
  %v658 = vunpack.c.l.b16 %v302
  %v659 = vunpack.c.h.b16 %v302
  %v660 = vunpack.c.l.b16 %v303
  %v661 = vunpack.c.h.b16 %v303
  %v662 = vunpack.c.l.b16 %v304
  %v663 = vunpack.c.h.b16 %v304
  %v664 = vunpack.c.l.b16 %v305
  %v665 = vunpack.c.h.b16 %v305
  %v666 = vunpack.c.l.b16 %v306
  %v667 = vunpack.c.h.b16 %v306
  %v668 = vunpack.c.l.b16 %v307
  %v669 = vunpack.c.h.b16 %v307
  %v670 = vunpack.c.l.b16 %v308
  %v671 = vunpack.c.h.b16 %v308
  %v672 = vunpack.c.l.b16 %v309
  %v673 = vunpack.c.h.b16 %v309
  %v674 = vunpack.c.l.b16 %v310
  %v675 = vunpack.c.h.b16 %v310
  %v676 = vunpack.c.l.b16 %v311
  %v677 = vunpack.c.h.b16 %v311
  %v678 = vunpack.c.l.b16 %v312
  %v679 = vunpack.c.h.b16 %v312
  %v680 = vunpack.c.l.b16 %v313
  %v681 = vunpack.c.h.b16 %v313
  %v682 = vunpack.c.l.b16 %v314
  %v683 = vunpack.c.h.b16 %v314
  %v684 = vunpack.c.l.b16 %v315
  %v685 = vunpack.c.h.b16 %v315
  %v686 = vunpack.c.l.b16 %v316
  %v687 = vunpack.c.h.b16 %v316
  %v688 = vunpack.c.l.b16 %v317
  %v689 = vunpack.c.h.b16 %v317
  %v690 = vunpack.c.l.b16 %v318
  %v691 = vunpack.c.h.b16 %v318
  %v692 = vunpack.c.l.b16 %v319
  %v693 = vunpack.c.h.b16 %v319
  %v694 = vunpack.c.l.b16 %v320
  %v695 = vunpack.c.h.b16 %v320
  %v696 = vunpack.c.l.b16 %v321
  %v697 = vunpack.c.h.b16 %v321
  %v698 = vunpack.c.l.b16 %v322
  %v699 = vunpack.c.h.b16 %v322
  %v700 = vunpack.c.l.b16 %v323
  %v701 = vunpack.c.h.b16 %v323
  %v702 = vunpack.c.l.b16 %v324
  %v703 = vunpack.c.h.b16 %v324
  %v704 = vunpack.c.l.b16 %v325
  %v705 = vunpack.c.h.b16 %v325
  %v706 = vunpack.c.l.b16 %v326
  %v707 = vunpack.c.h.b16 %v326
  %v708 = vunpack.c.l.b16 %v327
  %v709 = vunpack.c.h.b16 %v327
  %v710 = vunpack.c.l.b16 %v328
  %v711 = vunpack.c.h.b16 %v328
  %v712 = vunpack.c.l.b16 %v329
  %v713 = vunpack.c.h.b16 %v329
  %v714 = vunpack.c.l.b16 %v330
  %v715 = vunpack.c.h.b16 %v330
  %v716 = vunpack.c.l.b16 %v331
  %v717 = vunpack.c.h.b16 %v331
  %v718 = vunpack.c.l.b16 %v332
  %v719 = vunpack.c.h.b16 %v332
  %v720 = vunpack.c.l.b16 %v333
  %v721 = vunpack.c.h.b16 %v333
  %v722 = vunpack.c.l.b16 %v334
  %v723 = vunpack.c.h.b16 %v334
  %v724 = vunpack.c.l.b16 %v335
  %v725 = vunpack.c.h.b16 %v335
  %v726 = vunpack.c.l.b16 %v336
  %v727 = vunpack.c.h.b16 %v336
  %v728 = vunpack.c.l.b16 %v337
  %v729 = vunpack.c.h.b16 %v337
  %v730 = vunpack.c.l.b16 %v338
  %v731 = vunpack.c.h.b16 %v338
  %v732 = vunpack.c.l.b16 %v339
  %v733 = vunpack.c.h.b16 %v339
  %v734 = vunpack.c.l.b16 %v340
  %v735 = vunpack.c.h.b16 %v340
  %v736 = vunpack.c.l.b16 %v341
  %v737 = vunpack.c.h.b16 %v341
  %v738 = vunpack.c.l.b16 %v342
  %v739 = vunpack.c.h.b16 %v342
  %v740 = vunpack.c.l.b16 %v343
  %v741 = vunpack.c.h.b16 %v343
  %v742 = vunpack.c.l.b16 %v344
  %v743 = vunpack.c.h.b16 %v344
  %v744 = vunpack.c.l.b16 %v345
  %v745 = vunpack.c.h.b16 %v345
  %v746 = vunpack.c.l.b16 %v346
  %v747 = vunpack.c.h.b16 %v346
  %v748 = vunpack.c.l.b16 %v347
  %v749 = vunpack.c.h.b16 %v347
  %v750 = vunpack.c.l.b16 %v348
  %v751 = vunpack.c.h.b16 %v348
  %v752 = vunpack.c.l.b16 %v349
  %v753 = vunpack.c.h.b16 %v349
  %v754 = vunpack.c.l.b16 %v350
  %v755 = vunpack.c.h.b16 %v350
  %v756 = vunpack.c.l.b16 %v351
  %v757 = vunpack.c.h.b16 %v351
  %v758 = vunpack.c.l.b16 %v352
  %v759 = vunpack.c.h.b16 %v352
  %v760 = vunpack.c.l.b16 %v353
  %v761 = vunpack.c.h.b16 %v353
  %v762 = vunpack.c.l.b16 %v354
  %v763 = vunpack.c.h.b16 %v354
  %v764 = vunpack.c.l.b16 %v355
  %v765 = vunpack.c.h.b16 %v355
  %v766 = vunpack.c.l.b16 %v356
  %v767 = vunpack.c.h.b16 %v356
  %v768 = vunpack.c.l.b16 %v357
  %v769 = vunpack.c.h.b16 %v357
  %v770 = vunpack.c.l.b16 %v358
  %v771 = vunpack.c.h.b16 %v358
  %v772 = vunpack.c.l.b16 %v359
  %v773 = vunpack.c.h.b16 %v359
  %v774 = vunpack.c.l.b16 %v360
  %v775 = vunpack.c.h.b16 %v360
  %v776 = vunpack.c.l.b16 %v361
  %v777 = vunpack.c.h.b16 %v361
  %v778 = vunpack.c.l.b16 %v362
  %v779 = vunpack.c.h.b16 %v362
  %v780 = vunpack.c.l.b16 %v363
  %v781 = vunpack.c.h.b16 %v363
  %v782 = vunpack.c.l.b16 %v364
  %v783 = vunpack.c.h.b16 %v364
  %v784 = vunpack.c.l.b16 %v365
  %v785 = vunpack.c.h.b16 %v365
  %v786 = vunpack.c.l.b16 %v366
  %v787 = vunpack.c.h.b16 %v366
  %v788 = vunpack.c.l.b16 %v367
  %v789 = vunpack.c.h.b16 %v367
  %v790 = vunpack.c.l.b16 %v368
  %v791 = vunpack.c.h.b16 %v368
  %v792 = vunpack.c.l.b16 %v369
  %v793 = vunpack.c.h.b16 %v369
  %v794 = vunpack.c.l.b16 %v370
  %v795 = vunpack.c.h.b16 %v370
  %v796 = vunpack.c.l.b16 %v371
  %v797 = vunpack.c.h.b16 %v371
  %v798 = vunpack.c.l.b16 %v372
  %v799 = vunpack.c.h.b16 %v372
  %v800 = vunpack.c.l.b16 %v373
  %v801 = vunpack.c.h.b16 %v373
  %v802 = vunpack.c.l.b16 %v374
  %v803 = vunpack.c.h.b16 %v374
  %v804 = vunpack.c.l.b16 %v375
  %v805 = vunpack.c.h.b16 %v375
  %v806 = vunpack.c.l.b16 %v376
  %v807 = vunpack.c.h.b16 %v376
  %v808 = vunpack.c.l.b16 %v377
  %v809 = vunpack.c.h.b16 %v377
  %v810 = vunpack.c.l.b16 %v378
  %v811 = vunpack.c.h.b16 %v378
  %v812 = vunpack.c.l.b16 %v379
  %v813 = vunpack.c.h.b16 %v379
  %v814 = vunpack.c.l.b16 %v380
  %v815 = vunpack.c.h.b16 %v380
  %v816 = vunpack.c.l.b16 %v381
  %v817 = vunpack.c.h.b16 %v381
  %v818 = vunpack.c.l.b16 %v382
  %v819 = vunpack.c.h.b16 %v382
  %v820 = vunpack.c.l.b16 %v383
  %v821 = vunpack.c.h.b16 %v383
  %v822 = vunpack.c.l.b16 %v384
  %v823 = vunpack.c.h.b16 %v384
  %v824 = vunpack.c.l.b16 %v385
  %v825 = vunpack.c.h.b16 %v385
  %v826 = vunpack.c.l.b16 %v386
  %v827 = vunpack.c.h.b16 %v386
  %v828 = vunpack.c.l.b16 %v387
  %v829 = vunpack.c.h.b16 %v387
  %v830 = vunpack.c.l.b16 %v388
  %v831 = vunpack.c.h.b16 %v388
  %v832 = vunpack.c.l.b16 %v389
  %v833 = vunpack.c.h.b16 %v389
  %v834 = vunpack.c.l.b16 %v390
  %v835 = vunpack.c.h.b16 %v390
  %v836 = vunpack.c.l.b16 %v391
  %v837 = vunpack.c.h.b16 %v391
  %v838 = vunpack.c.l.b16 %v392
  %v839 = vunpack.c.h.b16 %v392
  %v840 = vunpack.c.l.b16 %v393
  %v841 = vunpack.c.h.b16 %v393
  %v842 = vunpack.c.l.b16 %v394
  %v843 = vunpack.c.h.b16 %v394
  %v844 = vunpack.c.l.b16 %v395
  %v845 = vunpack.c.h.b16 %v395
  %v846 = vunpack.c.l.b16 %v396
  %v847 = vunpack.c.h.b16 %v396
  %v848 = vunpack.c.l.b16 %v397
  %v849 = vunpack.c.h.b16 %v397
  %v850 = vunpack.c.l.b16 %v398
  %v851 = vunpack.c.h.b16 %v398
  %v852 = vunpack.c.l.b16 %v399
  %v853 = vunpack.c.h.b16 %v399
  %v854 = vunpack.c.l.b16 %v400
  %v855 = vunpack.c.h.b16 %v400
  %v856 = vunpack.c.l.b16 %v401
  %v857 = vunpack.c.h.b16 %v401
  %v858 = vunpack.c.l.b16 %v402
  %v859 = vunpack.c.h.b16 %v402
  %v860 = vunpack.c.l.b16 %v403
  %v861 = vunpack.c.h.b16 %v403
  %v862 = vunpack.c.l.b16 %v404
  %v863 = vunpack.c.h.b16 %v404
  %v864 = vunpack.c.l.b16 %v405
  %v865 = vunpack.c.h.b16 %v405
  %v866 = vunpack.c.l.b16 %v406
  %v867 = vunpack.c.h.b16 %v406
  %v868 = vunpack.c.l.b16 %v407
  %v869 = vunpack.c.h.b16 %v407
  %v870 = vunpack.c.l.b16 %v408
  %v871 = vunpack.c.h.b16 %v408
  %v872 = vunpack.c.l.b16 %v409
  %v873 = vunpack.c.h.b16 %v409
  %v874 = vunpack.c.l.b16 %v410
  %v875 = vunpack.c.h.b16 %v410
  %v876 = vunpack.c.l.b16 %v411
  %v877 = vunpack.c.h.b16 %v411
  %v878 = vunpack.c.l.b16 %v412
  %v879 = vunpack.c.h.b16 %v412
  %v880 = vunpack.c.l.b16 %v413
  %v881 = vunpack.c.h.b16 %v413
  %v882 = vunpack.c.l.b16 %v414
  %v883 = vunpack.c.h.b16 %v414
  %v884 = vunpack.c.l.b16 %v415
  %v885 = vunpack.c.h.b16 %v415
  %v886 = vunpack.c.l.b16 %v416
  %v887 = vunpack.c.h.b16 %v416
  %v888 = vunpack.c.l.b16 %v417
  %v889 = vunpack.c.h.b16 %v417
  %v890 = vunpack.c.l.b16 %v418
  %v891 = vunpack.c.h.b16 %v418
  %v892 = vunpack.c.l.b16 %v419
  %v893 = vunpack.c.h.b16 %v419
  %v894 = vunpack.c.l.b16 %v420
  %v895 = vunpack.c.h.b16 %v420
  %v896 = vunpack.c.l.b16 %v421
  %v897 = vunpack.c.h.b16 %v421
  %v898 = vunpack.c.l.b16 %v422
  %v899 = vunpack.c.h.b16 %v422
  %v900 = vunpack.c.l.b16 %v423
  %v901 = vunpack.c.h.b16 %v423
  %v902 = vunpack.c.l.b16 %v424
  %v903 = vunpack.c.h.b16 %v424
  %v904 = vunpack.c.l.b16 %v425
  %v905 = vunpack.c.h.b16 %v425
  %v906 = vunpack.c.l.b16 %v426
  %v907 = vunpack.c.h.b16 %v426
  %v908 = vunpack.c.l.b16 %v427
  %v909 = vunpack.c.h.b16 %v427
  %v910 = vunpack.c.l.b16 %v428
  %v911 = vunpack.c.h.b16 %v428
  %v912 = vunpack.c.l.b16 %v429
  %v913 = vunpack.c.h.b16 %v429
  %v914 = vunpack.c.l.b16 %v430
  %v915 = vunpack.c.h.b16 %v430
  %v916 = vunpack.c.l.b16 %v431
  %v917 = vunpack.c.h.b16 %v431
  %v918 = vunpack.c.l.b16 %v432
  %v919 = vunpack.c.h.b16 %v432
  %v920 = vunpack.c.l.b16 %v433
  %v921 = vunpack.c.h.b16 %v433
  %v922 = vunpack.c.l.b16 %v434
  %v923 = vunpack.c.h.b16 %v434
  %v924 = vunpack.c.l.b16 %v435
  %v925 = vunpack.c.h.b16 %v435
  %v926 = vunpack.c.l.b16 %v436
  %v927 = vunpack.c.h.b16 %v436
  %v928 = vunpack.c.l.b16 %v437
  %v929 = vunpack.c.h.b16 %v437
  %v930 = vunpack.c.l.b16 %v438
  %v931 = vunpack.c.h.b16 %v438
  %v932 = vunpack.c.l.b16 %v439
  %v933 = vunpack.c.h.b16 %v439
  %v934 = vunpack.c.l.b16 %v440
  %v935 = vunpack.c.h.b16 %v440
  %v936 = vunpack.c.l.b16 %v441
  %v937 = vunpack.c.h.b16 %v441
  %v938 = vunpack.c.l.b16 %v442
  %v939 = vunpack.c.h.b16 %v442
  %v940 = vunpack.c.l.b16 %v443
  %v941 = vunpack.c.h.b16 %v443
  %v942 = vunpack.c.l.b16 %v444
  %v943 = vunpack.c.h.b16 %v444
  %v944 = vunpack.c.l.b16 %v445
  %v945 = vunpack.c.h.b16 %v445
  %v946 = vunpack.c.l.b16 %v446
  %v947 = vunpack.c.h.b16 %v446
  %v948 = vunpack.c.l.b16 %v447
  %v949 = vunpack.c.h.b16 %v447
  %v950 = vunpack.c.l.b16 %v448
  %v951 = vunpack.c.h.b16 %v448
  %v952 = vunpack.c.l.b16 %v449
  %v953 = vunpack.c.h.b16 %v449
  %v954 = vpack.c.b16 %v634, %v618
  %v955 = vpack.c.b16 %v635, %v619
  %v956 = vpack.c.b16 %v636, %v620
  %v957 = vpack.c.b16 %v637, %v621
  %v958 = vpack.c.b16 %v638, %v622
  %v959 = vpack.c.b16 %v639, %v623
  %v960 = vpack.c.b16 %v640, %v624
  %v961 = vpack.c.b16 %v641, %v625
  %v962 = vpack.c.b16 %v642, %v626
  %v963 = vpack.c.b16 %v643, %v627
  %v964 = vpack.c.b16 %v644, %v628
  %v965 = vpack.c.b16 %v645, %v629
  %v966 = vpack.c.b16 %v646, %v630
  %v967 = vpack.c.b16 %v647, %v631
  %v968 = vpack.c.b16 %v648, %v632
  %v969 = vpack.c.b16 %v649, %v633
  %v970 = vpack.c.b16 %v666, %v650
  %v971 = vpack.c.b16 %v667, %v651
  %v972 = vpack.c.b16 %v668, %v652
  %v973 = vpack.c.b16 %v669, %v653
  %v974 = vpack.c.b16 %v670, %v654
  %v975 = vpack.c.b16 %v671, %v655
  %v976 = vpack.c.b16 %v672, %v656
  %v977 = vpack.c.b16 %v673, %v657
  %v978 = vpack.c.b16 %v674, %v658
  %v979 = vpack.c.b16 %v675, %v659
  %v980 = vpack.c.b16 %v676, %v660
  %v981 = vpack.c.b16 %v677, %v661
  %v982 = vpack.c.b16 %v678, %v662
  %v983 = vpack.c.b16 %v679, %v663
  %v984 = vpack.c.b16 %v680, %v664
  %v985 = vpack.c.b16 %v681, %v665
  %v986 = vpack.c.b16 %v698, %v682
  %v987 = vpack.c.b16 %v699, %v683
  %v988 = vpack.c.b16 %v700, %v684
  %v989 = vpack.c.b16 %v701, %v685
  %v990 = vpack.c.b16 %v702, %v686
  %v991 = vpack.c.b16 %v703, %v687
  %v992 = vpack.c.b16 %v704, %v688
  %v993 = vpack.c.b16 %v705, %v689
  %v994 = vpack.c.b16 %v706, %v690
  %v995 = vpack.c.b16 %v707, %v691
  %v996 = vpack.c.b16 %v708, %v692
  %v997 = vpack.c.b16 %v709, %v693
  %v998 = vpack.c.b16 %v710, %v694
  %v999 = vpack.c.b16 %v711, %v695
  %v1000 = vpack.c.b16 %v712, %v696
  %v1001 = vpack.c.b16 %v713, %v697
  %v1002 = vpack.c.b16 %v730, %v714
  %v1003 = vpack.c.b16 %v731, %v715
  %v1004 = vpack.c.b16 %v732, %v716
  %v1005 = vpack.c.b16 %v733, %v717
  %v1006 = vpack.c.b16 %v734, %v718
  %v1007 = vpack.c.b16 %v735, %v719
  %v1008 = vpack.c.b16 %v736, %v720
  %v1009 = vpack.c.b16 %v737, %v721
  %v1010 = vpack.c.b16 %v738, %v722
  %v1011 = vpack.c.b16 %v739, %v723
  %v1012 = vpack.c.b16 %v740, %v724
  %v1013 = vpack.c.b16 %v741, %v725
  %v1014 = vpack.c.b16 %v742, %v726
  %v1015 = vpack.c.b16 %v743, %v727
  %v1016 = vpack.c.b16 %v744, %v728
  %v1017 = vpack.c.b16 %v745, %v729
  %v1018 = vpack.c.b16 %v762, %v746
  %v1019 = vpack.c.b16 %v763, %v747
  %v1020 = vpack.c.b16 %v764, %v748
  %v1021 = vpack.c.b16 %v765, %v749
  %v1022 = vpack.c.b16 %v766, %v750
  %v1023 = vpack.c.b16 %v767, %v751
  %v1024 = vpack.c.b16 %v768, %v752
  %v1025 = vpack.c.b16 %v769, %v753
  %v1026 = vpack.c.b16 %v770, %v754
  %v1027 = vpack.c.b16 %v771, %v755
  %v1028 = vpack.c.b16 %v772, %v756
  %v1029 = vpack.c.b16 %v773, %v757
  %v1030 = vpack.c.b16 %v774, %v758
  %v1031 = vpack.c.b16 %v775, %v759
  %v1032 = vpack.c.b16 %v776, %v760
  %v1033 = vpack.c.b16 %v777, %v761
  %v1034 = vpack.c.b16 %v794, %v778
  %v1035 = vpack.c.b16 %v795, %v779
  %v1036 = vpack.c.b16 %v796, %v780
  %v1037 = vpack.c.b16 %v797, %v781
  %v1038 = vpack.c.b16 %v798, %v782
  %v1039 = vpack.c.b16 %v799, %v783
  %v1040 = vpack.c.b16 %v800, %v784
  %v1041 = vpack.c.b16 %v801, %v785
  %v1042 = vpack.c.b16 %v802, %v786
  %v1043 = vpack.c.b16 %v803, %v787
  %v1044 = vpack.c.b16 %v804, %v788
  %v1045 = vpack.c.b16 %v805, %v789
  %v1046 = vpack.c.b16 %v806, %v790
  %v1047 = vpack.c.b16 %v807, %v791
  %v1048 = vpack.c.b16 %v808, %v792
  %v1049 = vpack.c.b16 %v809, %v793
  %v1050 = vpack.c.b16 %v826, %v810
  %v1051 = vpack.c.b16 %v827, %v811
  %v1052 = vpack.c.b16 %v828, %v812
  %v1053 = vpack.c.b16 %v829, %v813
  %v1054 = vpack.c.b16 %v830, %v814
  %v1055 = vpack.c.b16 %v831, %v815
  %v1056 = vpack.c.b16 %v832, %v816
  %v1057 = vpack.c.b16 %v833, %v817
  %v1058 = vpack.c.b16 %v834, %v818
  %v1059 = vpack.c.b16 %v835, %v819
  %v1060 = vpack.c.b16 %v836, %v820
  %v1061 = vpack.c.b16 %v837, %v821
  %v1062 = vpack.c.b16 %v838, %v822
  %v1063 = vpack.c.b16 %v839, %v823
  %v1064 = vpack.c.b16 %v840, %v824
  %v1065 = vpack.c.b16 %v841, %v825
  %v1066 = vpack.c.b16 %v858, %v842
  %v1067 = vpack.c.b16 %v859, %v843
  %v1068 = vpack.c.b16 %v860, %v844
  %v1069 = vpack.c.b16 %v861, %v845
  %v1070 = vpack.c.b16 %v862, %v846
  %v1071 = vpack.c.b16 %v863, %v847
  %v1072 = vpack.c.b16 %v864, %v848
  %v1073 = vpack.c.b16 %v865, %v849
  %v1074 = vpack.c.b16 %v866, %v850
  %v1075 = vpack.c.b16 %v867, %v851
  %v1076 = vpack.c.b16 %v868, %v852
  %v1077 = vpack.c.b16 %v869, %v853
  %v1078 = vpack.c.b16 %v870, %v854
  %v1079 = vpack.c.b16 %v871, %v855
  %v1080 = vpack.c.b16 %v872, %v856
  %v1081 = vpack.c.b16 %v873, %v857
  %v1082 = vpack.c.b16 %v890, %v874
  %v1083 = vpack.c.b16 %v891, %v875
  %v1084 = vpack.c.b16 %v892, %v876
  %v1085 = vpack.c.b16 %v893, %v877
  %v1086 = vpack.c.b16 %v894, %v878
  %v1087 = vpack.c.b16 %v895, %v879
  %v1088 = vpack.c.b16 %v896, %v880
  %v1089 = vpack.c.b16 %v897, %v881
  %v1090 = vpack.c.b16 %v898, %v882
  %v1091 = vpack.c.b16 %v899, %v883
  %v1092 = vpack.c.b16 %v900, %v884
  %v1093 = vpack.c.b16 %v901, %v885
  %v1094 = vpack.c.b16 %v902, %v886
  %v1095 = vpack.c.b16 %v903, %v887
  %v1096 = vpack.c.b16 %v904, %v888
  %v1097 = vpack.c.b16 %v905, %v889
  %v1098 = vpack.c.b16 %v922, %v906
  %v1099 = vpack.c.b16 %v923, %v907
  %v1100 = vpack.c.b16 %v924, %v908
  %v1101 = vpack.c.b16 %v925, %v909
  %v1102 = vpack.c.b16 %v926, %v910
  %v1103 = vpack.c.b16 %v927, %v911
  %v1104 = vpack.c.b16 %v928, %v912
  %v1105 = vpack.c.b16 %v929, %v913
  %v1106 = vpack.c.b16 %v930, %v914
  %v1107 = vpack.c.b16 %v931, %v915
  %v1108 = vpack.c.b16 %v932, %v916
  %v1109 = vpack.c.b16 %v933, %v917
  %v1110 = vpack.c.b16 %v934, %v918
  %v1111 = vpack.c.b16 %v935, %v919
  %v1112 = vpack.c.b16 %v936, %v920
  %v1113 = vpack.c.b16 %v937, %v921
  %v1114 = vpack.c.b16 %v938, %v938
  %v1115 = vpack.c.b16 %v939, %v939
  %v1116 = vpack.c.b16 %v940, %v940
  %v1117 = vpack.c.b16 %v941, %v941
  %v1118 = vpack.c.b16 %v942, %v942
  %v1119 = vpack.c.b16 %v943, %v943
  %v1120 = vpack.c.b16 %v944, %v944
  %v1121 = vpack.c.b16 %v945, %v945
  %v1122 = vpack.c.b16 %v946, %v946
  %v1123 = vpack.c.b16 %v947, %v947
  %v1124 = vpack.c.b16 %v948, %v948
  %v1125 = vpack.c.b16 %v949, %v949
  %v1126 = vpack.c.b16 %v950, %v950
  %v1127 = vpack.c.b16 %v951, %v951
  %v1128 = vpack.c.b16 %v952, %v952
  %v1129 = vpack.c.b16 %v953, %v953
  %v1291 = vsel %vm156, %v279, 0
  %v1294 = vsel %vm156, %v281, 0
  %vm1296 = vcmask 1040384
  %v1298 = vsel %vm1296, %v1114, 0
  %v1301 = vsel %vm1296, %v1115, 0
  %v1304 = vsel %vm1296, %v1116, 0
  %v1307 = vsel %vm1296, %v1117, 0
  %v1310 = vsel %vm1296, %v1118, 0
  %v1313 = vsel %vm1296, %v1119, 0
  %v1316 = vsel %vm1296, %v1120, 0
  %v1319 = vsel %vm1296, %v1121, 0
  %v1322 = vsel %vm1296, %v1122, 0
  %v1325 = vsel %vm1296, %v1123, 0
  %v1328 = vsel %vm1296, %v1124, 0
  %v1331 = vsel %vm1296, %v1125, 0
  %v1334 = vsel %vm1296, %v1126, 0
  %v1337 = vsel %vm1296, %v1127, 0
  %v1340 = vsel %vm1296, %v1128, 0
  %v1343 = vsel %vm1296, %v1129, 0
  %1345 = vmatprep.subr.bf16.mxu0 %v1067
  %1346 = vmatpush1.bf16.msra.mxu0 %v1066
  %1347 = vmatprep.subr.bf16.mxu0 %v1051
  %1348 = vmatpush1.bf16.msra.mxu0 %v1050
  %1349 = vmatprep.subr.bf16.mxu0 %v1035
  %1350 = vmatpush1.bf16.msra.mxu0 %v1034
  %1351 = vmatprep.subr.bf16.mxu0 %v1019
  %1352 = vmatpush1.bf16.msra.mxu0 %v1018
  %1353 = vmatprep.subr.bf16.mxu0 %v1003
  %1354 = vmatpush1.bf16.msra.mxu0 %v1002
  %1355 = vmatprep.subr.bf16.mxu0 %v987
  %1356 = vmatpush1.bf16.msra.mxu0 %v986
  %1357 = vmatprep.subr.bf16.mxu0 %v971
  %1358 = vmatpush1.bf16.msra.mxu0 %v970
  %1359 = vmatprep.subr.bf16.mxu0 %v955
  %1360 = vmatpush1.bf16.msra.mxu0 %v954
  %1361 = vmatprep.subr.bf16.mxu0 0
  %1362 = vmatpush2.bf16.msra.mxu0 0
  %1363 = vmatprep.subr.bf16.mxu0 0
  %1364 = vmatpush2.bf16.msra.mxu0 0
  %1365 = vmatprep.subr.bf16.mxu0 0
  %1366 = vmatpush2.bf16.msra.mxu0 0
  %1367 = vmatprep.subr.bf16.mxu0 0
  %1368 = vmatpush2.bf16.msra.mxu0 0
  %1369 = vmatprep.subr.bf16.mxu0 0
  %1370 = vmatpush2.bf16.msra.mxu0 0
  %1371 = vmatprep.subr.bf16.mxu0 %v1301
  %1372 = vmatpush2.bf16.msra.mxu0 %v1298
  %1373 = vmatprep.subr.bf16.mxu0 %v1099
  %1374 = vmatpush2.bf16.msra.mxu0 %v1098
  %1375 = vmatprep.subr.bf16.mxu0 %v1083
  %1376 = vmatpush2.bf16.msra.mxu0 %v1082
  %1377 = vmatprep.mubr.bf16.mxu0 %v1291
  %1378 = vmatmul.mubr.bf16.gmra.mxu0 %v278
  %v1379 = vpop.f32.mrf.mxu0
  %v1380 = vadd.f32 0.0, %v1379
  %v1381 = vpop.f32.mrf.mxu0
  %v1382 = vadd.f32 0.0, %v1381
  %v1383 = vpop.f32.mrf.mxu0
  %v1384 = vadd.f32 0.0, %v1383
  %v1385 = vpop.f32.mrf.mxu0
  %v1386 = vadd.f32 0.0, %v1385
  %1387 = vmatprep.mubr.bf16.mxu0 %v1294
  %1388 = vmatmul.mubr.bf16.gmra.mxu0 %v280
  %v1389 = vpop.f32.mrf.mxu0
  %v1390 = vadd.f32 0.0, %v1389
  %v1391 = vpop.f32.mrf.mxu0
  %v1392 = vadd.f32 0.0, %v1391
  %v1393 = vpop.f32.mrf.mxu0
  %v1394 = vpop.f32.mrf.mxu0
  %1395 = vdwg.mxu0
  %1396 = vmatprep.subr.bf16.mxu0 %v1069
  %1397 = vmatpush1.bf16.msra.mxu0 %v1068
  %1398 = vmatprep.subr.bf16.mxu0 %v1053
  %1399 = vmatpush1.bf16.msra.mxu0 %v1052
  %1400 = vmatprep.subr.bf16.mxu0 %v1037
  %1401 = vmatpush1.bf16.msra.mxu0 %v1036
  %1402 = vmatprep.subr.bf16.mxu0 %v1021
  %1403 = vmatpush1.bf16.msra.mxu0 %v1020
  %1404 = vmatprep.subr.bf16.mxu0 %v1005
  %1405 = vmatpush1.bf16.msra.mxu0 %v1004
  %1406 = vmatprep.subr.bf16.mxu0 %v989
  %1407 = vmatpush1.bf16.msra.mxu0 %v988
  %1408 = vmatprep.subr.bf16.mxu0 %v973
  %1409 = vmatpush1.bf16.msra.mxu0 %v972
  %1410 = vmatprep.subr.bf16.mxu0 %v957
  %1411 = vmatpush1.bf16.msra.mxu0 %v956
  %1412 = vmatprep.subr.bf16.mxu0 0
  %1413 = vmatpush2.bf16.msra.mxu0 0
  %1414 = vmatprep.subr.bf16.mxu0 0
  %1415 = vmatpush2.bf16.msra.mxu0 0
  %1416 = vmatprep.subr.bf16.mxu0 0
  %1417 = vmatpush2.bf16.msra.mxu0 0
  %1418 = vmatprep.subr.bf16.mxu0 0
  %1419 = vmatpush2.bf16.msra.mxu0 0
  %1420 = vmatprep.subr.bf16.mxu0 0
  %1421 = vmatpush2.bf16.msra.mxu0 0
  %1422 = vmatprep.subr.bf16.mxu0 %v1307
  %1423 = vmatpush2.bf16.msra.mxu0 %v1304
  %1424 = vmatprep.subr.bf16.mxu0 %v1101
  %1425 = vmatpush2.bf16.msra.mxu0 %v1100
  %1426 = vmatprep.subr.bf16.mxu0 %v1085
  %1427 = vmatpush2.bf16.msra.mxu0 %v1084
  %1428 = vmatprep.mubr.bf16.mxu0 %v1291
  %1429 = vmatmul.mubr.bf16.gmra.mxu0 %v278
  %v1430 = vpop.f32.mrf.mxu0
  %v1431 = vadd.f32 0.0, %v1430
  %v1432 = vpop.f32.mrf.mxu0
  %v1433 = vadd.f32 0.0, %v1432
  %v1434 = vpop.f32.mrf.mxu0
  %v1435 = vadd.f32 0.0, %v1434
  %v1436 = vpop.f32.mrf.mxu0
  %v1437 = vadd.f32 0.0, %v1436
  %1438 = vmatprep.mubr.bf16.mxu0 %v1294
  %1439 = vmatmul.mubr.bf16.gmra.mxu0 %v280
  %v1440 = vpop.f32.mrf.mxu0
  %v1441 = vadd.f32 0.0, %v1440
  %v1442 = vpop.f32.mrf.mxu0
  %v1443 = vadd.f32 0.0, %v1442
  %v1444 = vpop.f32.mrf.mxu0
  %v1445 = vpop.f32.mrf.mxu0
  %1446 = vdwg.mxu0
  %1447 = vmatprep.subr.bf16.mxu0 %v1071
  %1448 = vmatpush1.bf16.msra.mxu0 %v1070
  %1449 = vmatprep.subr.bf16.mxu0 %v1055
  %1450 = vmatpush1.bf16.msra.mxu0 %v1054
  %1451 = vmatprep.subr.bf16.mxu0 %v1039
  %1452 = vmatpush1.bf16.msra.mxu0 %v1038
  %1453 = vmatprep.subr.bf16.mxu0 %v1023
  %1454 = vmatpush1.bf16.msra.mxu0 %v1022
  %1455 = vmatprep.subr.bf16.mxu0 %v1007
  %1456 = vmatpush1.bf16.msra.mxu0 %v1006
  %1457 = vmatprep.subr.bf16.mxu0 %v991
  %1458 = vmatpush1.bf16.msra.mxu0 %v990
  %1459 = vmatprep.subr.bf16.mxu0 %v975
  %1460 = vmatpush1.bf16.msra.mxu0 %v974
  %1461 = vmatprep.subr.bf16.mxu0 %v959
  %1462 = vmatpush1.bf16.msra.mxu0 %v958
  %1463 = vmatprep.subr.bf16.mxu0 0
  %1464 = vmatpush2.bf16.msra.mxu0 0
  %1465 = vmatprep.subr.bf16.mxu0 0
  %1466 = vmatpush2.bf16.msra.mxu0 0
  %1467 = vmatprep.subr.bf16.mxu0 0
  %1468 = vmatpush2.bf16.msra.mxu0 0
  %1469 = vmatprep.subr.bf16.mxu0 0
  %1470 = vmatpush2.bf16.msra.mxu0 0
  %1471 = vmatprep.subr.bf16.mxu0 0
  %1472 = vmatpush2.bf16.msra.mxu0 0
  %1473 = vmatprep.subr.bf16.mxu0 %v1313
  %1474 = vmatpush2.bf16.msra.mxu0 %v1310
  %1475 = vmatprep.subr.bf16.mxu0 %v1103
  %1476 = vmatpush2.bf16.msra.mxu0 %v1102
  %1477 = vmatprep.subr.bf16.mxu0 %v1087
  %1478 = vmatpush2.bf16.msra.mxu0 %v1086
  %1479 = vmatprep.mubr.bf16.mxu0 %v1291
  %1480 = vmatmul.mubr.bf16.gmra.mxu0 %v278
  %v1481 = vpop.f32.mrf.mxu0
  %v1482 = vadd.f32 0.0, %v1481
  %v1483 = vpop.f32.mrf.mxu0
  %v1484 = vadd.f32 0.0, %v1483
  %v1485 = vpop.f32.mrf.mxu0
  %v1486 = vadd.f32 0.0, %v1485
  %v1487 = vpop.f32.mrf.mxu0
  %v1488 = vadd.f32 0.0, %v1487
  %1489 = vmatprep.mubr.bf16.mxu0 %v1294
  %1490 = vmatmul.mubr.bf16.gmra.mxu0 %v280
  %v1491 = vpop.f32.mrf.mxu0
  %v1492 = vadd.f32 0.0, %v1491
  %v1493 = vpop.f32.mrf.mxu0
  %v1494 = vadd.f32 0.0, %v1493
  %v1495 = vpop.f32.mrf.mxu0
  %v1496 = vpop.f32.mrf.mxu0
  %1497 = vdwg.mxu0
  %1498 = vmatprep.subr.bf16.mxu0 %v1073
  %1499 = vmatpush1.bf16.msra.mxu0 %v1072
  %1500 = vmatprep.subr.bf16.mxu0 %v1057
  %1501 = vmatpush1.bf16.msra.mxu0 %v1056
  %1502 = vmatprep.subr.bf16.mxu0 %v1041
  %1503 = vmatpush1.bf16.msra.mxu0 %v1040
  %1504 = vmatprep.subr.bf16.mxu0 %v1025
  %1505 = vmatpush1.bf16.msra.mxu0 %v1024
  %1506 = vmatprep.subr.bf16.mxu0 %v1009
  %1507 = vmatpush1.bf16.msra.mxu0 %v1008
  %1508 = vmatprep.subr.bf16.mxu0 %v993
  %1509 = vmatpush1.bf16.msra.mxu0 %v992
  %1510 = vmatprep.subr.bf16.mxu0 %v977
  %1511 = vmatpush1.bf16.msra.mxu0 %v976
  %1512 = vmatprep.subr.bf16.mxu0 %v961
  %1513 = vmatpush1.bf16.msra.mxu0 %v960
  %1514 = vmatprep.subr.bf16.mxu0 0
  %1515 = vmatpush2.bf16.msra.mxu0 0
  %1516 = vmatprep.subr.bf16.mxu0 0
  %1517 = vmatpush2.bf16.msra.mxu0 0
  %1518 = vmatprep.subr.bf16.mxu0 0
  %1519 = vmatpush2.bf16.msra.mxu0 0
  %1520 = vmatprep.subr.bf16.mxu0 0
  %1521 = vmatpush2.bf16.msra.mxu0 0
  %1522 = vmatprep.subr.bf16.mxu0 0
  %1523 = vmatpush2.bf16.msra.mxu0 0
  %1524 = vmatprep.subr.bf16.mxu0 %v1319
  %1525 = vmatpush2.bf16.msra.mxu0 %v1316
  %1526 = vmatprep.subr.bf16.mxu0 %v1105
  %1527 = vmatpush2.bf16.msra.mxu0 %v1104
  %1528 = vmatprep.subr.bf16.mxu0 %v1089
  %1529 = vmatpush2.bf16.msra.mxu0 %v1088
  %1530 = vmatprep.mubr.bf16.mxu0 %v1291
  %1531 = vmatmul.mubr.bf16.gmra.mxu0 %v278
  %v1532 = vpop.f32.mrf.mxu0
  %v1533 = vadd.f32 0.0, %v1532
  %v1534 = vpop.f32.mrf.mxu0
  %v1535 = vadd.f32 0.0, %v1534
  %v1536 = vpop.f32.mrf.mxu0
  %v1537 = vadd.f32 0.0, %v1536
  %v1538 = vpop.f32.mrf.mxu0
  %v1539 = vadd.f32 0.0, %v1538
  %1540 = vmatprep.mubr.bf16.mxu0 %v1294
  %1541 = vmatmul.mubr.bf16.gmra.mxu0 %v280
  %v1542 = vpop.f32.mrf.mxu0
  %v1543 = vadd.f32 0.0, %v1542
  %v1544 = vpop.f32.mrf.mxu0
  %v1545 = vadd.f32 0.0, %v1544
  %v1546 = vpop.f32.mrf.mxu0
  %v1547 = vpop.f32.mrf.mxu0
  %1548 = vdwg.mxu0
  %1549 = vmatprep.subr.bf16.mxu0 %v1075
  %1550 = vmatpush1.bf16.msra.mxu0 %v1074
  %1551 = vmatprep.subr.bf16.mxu0 %v1059
  %1552 = vmatpush1.bf16.msra.mxu0 %v1058
  %1553 = vmatprep.subr.bf16.mxu0 %v1043
  %1554 = vmatpush1.bf16.msra.mxu0 %v1042
  %1555 = vmatprep.subr.bf16.mxu0 %v1027
  %1556 = vmatpush1.bf16.msra.mxu0 %v1026
  %1557 = vmatprep.subr.bf16.mxu0 %v1011
  %1558 = vmatpush1.bf16.msra.mxu0 %v1010
  %1559 = vmatprep.subr.bf16.mxu0 %v995
  %1560 = vmatpush1.bf16.msra.mxu0 %v994
  %1561 = vmatprep.subr.bf16.mxu0 %v979
  %1562 = vmatpush1.bf16.msra.mxu0 %v978
  %1563 = vmatprep.subr.bf16.mxu0 %v963
  %1564 = vmatpush1.bf16.msra.mxu0 %v962
  %1565 = vmatprep.subr.bf16.mxu0 0
  %1566 = vmatpush2.bf16.msra.mxu0 0
  %1567 = vmatprep.subr.bf16.mxu0 0
  %1568 = vmatpush2.bf16.msra.mxu0 0
  %1569 = vmatprep.subr.bf16.mxu0 0
  %1570 = vmatpush2.bf16.msra.mxu0 0
  %1571 = vmatprep.subr.bf16.mxu0 0
  %1572 = vmatpush2.bf16.msra.mxu0 0
  %1573 = vmatprep.subr.bf16.mxu0 0
  %1574 = vmatpush2.bf16.msra.mxu0 0
  %1575 = vmatprep.subr.bf16.mxu0 %v1325
  %1576 = vmatpush2.bf16.msra.mxu0 %v1322
  %1577 = vmatprep.subr.bf16.mxu0 %v1107
  %1578 = vmatpush2.bf16.msra.mxu0 %v1106
  %1579 = vmatprep.subr.bf16.mxu0 %v1091
  %1580 = vmatpush2.bf16.msra.mxu0 %v1090
  %1581 = vmatprep.mubr.bf16.mxu0 %v1291
  %1582 = vmatmul.mubr.bf16.gmra.mxu0 %v278
  %v1583 = vpop.f32.mrf.mxu0
  %v1584 = vadd.f32 0.0, %v1583
  %v1585 = vpop.f32.mrf.mxu0
  %v1586 = vadd.f32 0.0, %v1585
  %v1587 = vpop.f32.mrf.mxu0
  %v1588 = vadd.f32 0.0, %v1587
  %v1589 = vpop.f32.mrf.mxu0
  %v1590 = vadd.f32 0.0, %v1589
  %1591 = vmatprep.mubr.bf16.mxu0 %v1294
  %1592 = vmatmul.mubr.bf16.gmra.mxu0 %v280
  %v1593 = vpop.f32.mrf.mxu0
  %v1594 = vadd.f32 0.0, %v1593
  %v1595 = vpop.f32.mrf.mxu0
  %v1596 = vadd.f32 0.0, %v1595
  %v1597 = vpop.f32.mrf.mxu0
  %v1598 = vpop.f32.mrf.mxu0
  %1599 = vdwg.mxu0
  %1600 = vmatprep.subr.bf16.mxu0 %v1077
  %1601 = vmatpush1.bf16.msra.mxu0 %v1076
  %1602 = vmatprep.subr.bf16.mxu0 %v1061
  %1603 = vmatpush1.bf16.msra.mxu0 %v1060
  %1604 = vmatprep.subr.bf16.mxu0 %v1045
  %1605 = vmatpush1.bf16.msra.mxu0 %v1044
  %1606 = vmatprep.subr.bf16.mxu0 %v1029
  %1607 = vmatpush1.bf16.msra.mxu0 %v1028
  %1608 = vmatprep.subr.bf16.mxu0 %v1013
  %1609 = vmatpush1.bf16.msra.mxu0 %v1012
  %1610 = vmatprep.subr.bf16.mxu0 %v997
  %1611 = vmatpush1.bf16.msra.mxu0 %v996
  %1612 = vmatprep.subr.bf16.mxu0 %v981
  %1613 = vmatpush1.bf16.msra.mxu0 %v980
  %1614 = vmatprep.subr.bf16.mxu0 %v965
  %1615 = vmatpush1.bf16.msra.mxu0 %v964
  %1616 = vmatprep.subr.bf16.mxu0 0
  %1617 = vmatpush2.bf16.msra.mxu0 0
  %1618 = vmatprep.subr.bf16.mxu0 0
  %1619 = vmatpush2.bf16.msra.mxu0 0
  %1620 = vmatprep.subr.bf16.mxu0 0
  %1621 = vmatpush2.bf16.msra.mxu0 0
  %1622 = vmatprep.subr.bf16.mxu0 0
  %1623 = vmatpush2.bf16.msra.mxu0 0
  %1624 = vmatprep.subr.bf16.mxu0 0
  %1625 = vmatpush2.bf16.msra.mxu0 0
  %1626 = vmatprep.subr.bf16.mxu0 %v1331
  %1627 = vmatpush2.bf16.msra.mxu0 %v1328
  %1628 = vmatprep.subr.bf16.mxu0 %v1109
  %1629 = vmatpush2.bf16.msra.mxu0 %v1108
  %1630 = vmatprep.subr.bf16.mxu0 %v1093
  %1631 = vmatpush2.bf16.msra.mxu0 %v1092
  %1632 = vmatprep.mubr.bf16.mxu0 %v1291
  %1633 = vmatmul.mubr.bf16.gmra.mxu0 %v278
  %v1634 = vpop.f32.mrf.mxu0
  %v1635 = vadd.f32 0.0, %v1634
  %v1636 = vpop.f32.mrf.mxu0
  %v1637 = vadd.f32 0.0, %v1636
  %v1638 = vpop.f32.mrf.mxu0
  %v1639 = vadd.f32 0.0, %v1638
  %v1640 = vpop.f32.mrf.mxu0
  %v1641 = vadd.f32 0.0, %v1640
  %1642 = vmatprep.mubr.bf16.mxu0 %v1294
  %1643 = vmatmul.mubr.bf16.gmra.mxu0 %v280
  %v1644 = vpop.f32.mrf.mxu0
  %v1645 = vadd.f32 0.0, %v1644
  %v1646 = vpop.f32.mrf.mxu0
  %v1647 = vadd.f32 0.0, %v1646
  %v1648 = vpop.f32.mrf.mxu0
  %v1649 = vpop.f32.mrf.mxu0
  %1650 = vdwg.mxu0
  %1651 = vmatprep.subr.bf16.mxu0 %v1079
  %1652 = vmatpush1.bf16.msra.mxu0 %v1078
  %1653 = vmatprep.subr.bf16.mxu0 %v1063
  %1654 = vmatpush1.bf16.msra.mxu0 %v1062
  %1655 = vmatprep.subr.bf16.mxu0 %v1047
  %1656 = vmatpush1.bf16.msra.mxu0 %v1046
  %1657 = vmatprep.subr.bf16.mxu0 %v1031
  %1658 = vmatpush1.bf16.msra.mxu0 %v1030
  %1659 = vmatprep.subr.bf16.mxu0 %v1015
  %1660 = vmatpush1.bf16.msra.mxu0 %v1014
  %1661 = vmatprep.subr.bf16.mxu0 %v999
  %1662 = vmatpush1.bf16.msra.mxu0 %v998
  %1663 = vmatprep.subr.bf16.mxu0 %v983
  %1664 = vmatpush1.bf16.msra.mxu0 %v982
  %1665 = vmatprep.subr.bf16.mxu0 %v967
  %1666 = vmatpush1.bf16.msra.mxu0 %v966
  %1667 = vmatprep.subr.bf16.mxu0 0
  %1668 = vmatpush2.bf16.msra.mxu0 0
  %1669 = vmatprep.subr.bf16.mxu0 0
  %1670 = vmatpush2.bf16.msra.mxu0 0
  %1671 = vmatprep.subr.bf16.mxu0 0
  %1672 = vmatpush2.bf16.msra.mxu0 0
  %1673 = vmatprep.subr.bf16.mxu0 0
  %1674 = vmatpush2.bf16.msra.mxu0 0
  %1675 = vmatprep.subr.bf16.mxu0 0
  %1676 = vmatpush2.bf16.msra.mxu0 0
  %1677 = vmatprep.subr.bf16.mxu0 %v1337
  %1678 = vmatpush2.bf16.msra.mxu0 %v1334
  %1679 = vmatprep.subr.bf16.mxu0 %v1111
  %1680 = vmatpush2.bf16.msra.mxu0 %v1110
  %1681 = vmatprep.subr.bf16.mxu0 %v1095
  %1682 = vmatpush2.bf16.msra.mxu0 %v1094
  %1683 = vmatprep.mubr.bf16.mxu0 %v1291
  %1684 = vmatmul.mubr.bf16.gmra.mxu0 %v278
  %v1685 = vpop.f32.mrf.mxu0
  %v1686 = vadd.f32 0.0, %v1685
  %v1687 = vpop.f32.mrf.mxu0
  %v1688 = vadd.f32 0.0, %v1687
  %v1689 = vpop.f32.mrf.mxu0
  %v1690 = vadd.f32 0.0, %v1689
  %v1691 = vpop.f32.mrf.mxu0
  %v1692 = vadd.f32 0.0, %v1691
  %1693 = vmatprep.mubr.bf16.mxu0 %v1294
  %1694 = vmatmul.mubr.bf16.gmra.mxu0 %v280
  %v1695 = vpop.f32.mrf.mxu0
  %v1696 = vadd.f32 0.0, %v1695
  %v1697 = vpop.f32.mrf.mxu0
  %v1698 = vadd.f32 0.0, %v1697
  %v1699 = vpop.f32.mrf.mxu0
  %v1700 = vpop.f32.mrf.mxu0
  %1701 = vdwg.mxu0
  %1702 = vmatprep.subr.bf16.mxu0 %v1081
  %1703 = vmatpush1.bf16.msra.mxu0 %v1080
  %1704 = vmatprep.subr.bf16.mxu0 %v1065
  %1705 = vmatpush1.bf16.msra.mxu0 %v1064
  %1706 = vmatprep.subr.bf16.mxu0 %v1049
  %1707 = vmatpush1.bf16.msra.mxu0 %v1048
  %1708 = vmatprep.subr.bf16.mxu0 %v1033
  %1709 = vmatpush1.bf16.msra.mxu0 %v1032
  %1710 = vmatprep.subr.bf16.mxu0 %v1017
  %1711 = vmatpush1.bf16.msra.mxu0 %v1016
  %1712 = vmatprep.subr.bf16.mxu0 %v1001
  %1713 = vmatpush1.bf16.msra.mxu0 %v1000
  %1714 = vmatprep.subr.bf16.mxu0 %v985
  %1715 = vmatpush1.bf16.msra.mxu0 %v984
  %1716 = vmatprep.subr.bf16.mxu0 %v969
  %1717 = vmatpush1.bf16.msra.mxu0 %v968
  %1718 = vmatprep.subr.bf16.mxu0 0
  %1719 = vmatpush2.bf16.msra.mxu0 0
  %1720 = vmatprep.subr.bf16.mxu0 0
  %1721 = vmatpush2.bf16.msra.mxu0 0
  %1722 = vmatprep.subr.bf16.mxu0 0
  %1723 = vmatpush2.bf16.msra.mxu0 0
  %1724 = vmatprep.subr.bf16.mxu0 0
  %1725 = vmatpush2.bf16.msra.mxu0 0
  %1726 = vmatprep.subr.bf16.mxu0 0
  %1727 = vmatpush2.bf16.msra.mxu0 0
  %1728 = vmatprep.subr.bf16.mxu0 %v1343
  %1729 = vmatpush2.bf16.msra.mxu0 %v1340
  %1730 = vmatprep.subr.bf16.mxu0 %v1113
  %1731 = vmatpush2.bf16.msra.mxu0 %v1112
  %1732 = vmatprep.subr.bf16.mxu0 %v1097
  %1733 = vmatpush2.bf16.msra.mxu0 %v1096
  %1734 = vmatprep.mubr.bf16.mxu0 %v1291
  %1735 = vmatmul.mubr.bf16.gmra.mxu0 %v278
  %v1736 = vpop.f32.mrf.mxu0
  %v1737 = vadd.f32 0.0, %v1736
  %v1738 = vpop.f32.mrf.mxu0
  %v1739 = vadd.f32 0.0, %v1738
  %v1740 = vpop.f32.mrf.mxu0
  %v1741 = vadd.f32 0.0, %v1740
  %v1742 = vpop.f32.mrf.mxu0
  %v1743 = vadd.f32 0.0, %v1742
  %1744 = vmatprep.mubr.bf16.mxu0 %v1294
  %1745 = vmatmul.mubr.bf16.gmra.mxu0 %v280
  %v1746 = vpop.f32.mrf.mxu0
  %v1747 = vadd.f32 0.0, %v1746
  %v1748 = vpop.f32.mrf.mxu0
  %v1749 = vadd.f32 0.0, %v1748
  %v1750 = vpop.f32.mrf.mxu0
  %v1751 = vpop.f32.mrf.mxu0
  %1752 = vdwg.mxu0
  %v1753 = vpack.c.bf16 %v1384, %v1380
  %v1754 = vpack.c.bf16 %v1386, %v1382
  %v1755 = vpack.c.bf16 %v1435, %v1431
  %v1756 = vpack.c.bf16 %v1437, %v1433
  %v1757 = vpack.c.bf16 %v1486, %v1482
  %v1758 = vpack.c.bf16 %v1488, %v1484
  %v1759 = vpack.c.bf16 %v1537, %v1533
  %v1760 = vpack.c.bf16 %v1539, %v1535
  %v1761 = vpack.c.bf16 %v1588, %v1584
  %v1762 = vpack.c.bf16 %v1590, %v1586
  %v1763 = vpack.c.bf16 %v1639, %v1635
  %v1764 = vpack.c.bf16 %v1641, %v1637
  %v1765 = vpack.c.bf16 %v1690, %v1686
  %v1766 = vpack.c.bf16 %v1692, %v1688
  %v1767 = vpack.c.bf16 %v1741, %v1737
  %v1768 = vpack.c.bf16 %v1743, %v1739
  %v1769 = vpack.c.bf16 %v1390, %v1390
  %v1770 = vpack.c.bf16 %v1392, %v1392
  %v1771 = vpack.c.bf16 %v1441, %v1441
  %v1772 = vpack.c.bf16 %v1443, %v1443
  %v1773 = vpack.c.bf16 %v1492, %v1492
  %v1774 = vpack.c.bf16 %v1494, %v1494
  %v1775 = vpack.c.bf16 %v1543, %v1543
  %v1776 = vpack.c.bf16 %v1545, %v1545
  %v1777 = vpack.c.bf16 %v1594, %v1594
  %v1778 = vpack.c.bf16 %v1596, %v1596
  %v1779 = vpack.c.bf16 %v1645, %v1645
  %v1780 = vpack.c.bf16 %v1647, %v1647
  %v1781 = vpack.c.bf16 %v1696, %v1696
  %v1782 = vpack.c.bf16 %v1698, %v1698
  %v1783 = vpack.c.bf16 %v1747, %v1747
  %v1784 = vpack.c.bf16 %v1749, %v1749
  %v1785 = vld [vmem:[%s3] sm:$0xf]
  %v1786 = vld [vmem:[%s3 + $0x4] sm:$0xf]
  %v1787 = vld [vmem:[%s3 + $0x8] sm:$0xf]
  %v1788 = vld [vmem:[%s3 + $0xc] sm:$0xf]
  %v1789 = vld [vmem:[%s3 + $0x10] sm:$0x3]
  %s1790 = scalar_lea.vmem %s3, 20
  %v1791 = vld [vmem:[%s1790] sm:$0xf]
  %v1792 = vld [vmem:[%s1790 + $0x4] sm:$0xf]
  %v1793 = vld [vmem:[%s1790 + $0x8] sm:$0xf]
  %v1794 = vld [vmem:[%s1790 + $0xc] sm:$0xf]
  %v1795 = vld [vmem:[%s1790 + $0x10] sm:$0x3]
  %v1801 = vunpack.c.l.b16 %v1791
  %v1802 = vunpack.c.l.b16 %v1792
  %v1803 = vunpack.c.l.b16 %v1793
  %v1804 = vunpack.c.l.b16 %v1794
  %v1805 = vunpack.c.l.b16 %v1795
  %v1806 = vpack.c.b16 %v1802, %v1801
  %v1807 = vpack.c.b16 %v1804, %v1803
  %v1808 = vpack.c.b16 %v1805, %v1805
  %vm1809 = vcmask 146432
  %v1811 = vsel %vm1809, %v1806, 0
  %v1814 = vsel %vm1809, %v1807, 0
  %v1817 = vsel %vm1809, %v1808, 0
  %v1820 = vsel %vm1296, %v1770, 0
  %1822 = vmatprep.subr.bf16.mxu0 0
  %1823 = vmatpush1.bf16.msra.mxu0 0
  %1824 = vmatprep.subr.bf16.mxu0 0
  %1825 = vmatpush1.bf16.msra.mxu0 0
  %1826 = vmatprep.subr.bf16.mxu0 0
  %1827 = vmatpush1.bf16.msra.mxu0 0
  %1828 = vmatprep.subr.bf16.mxu0 0
  %1829 = vmatpush1.bf16.msra.mxu0 0
  %1830 = vmatprep.subr.bf16.mxu0 0
  %1831 = vmatpush1.bf16.msra.mxu0 0
  %1832 = vmatprep.subr.bf16.mxu0 0
  %1833 = vmatpush1.bf16.msra.mxu0 0
  %1834 = vmatprep.subr.bf16.mxu0 0
  %1835 = vmatpush1.bf16.msra.mxu0 %v1820
  %1836 = vmatprep.subr.bf16.mxu0 0
  %1837 = vmatpush1.bf16.msra.mxu0 %v1754
  %1838 = vmatprep.subr.bf16.mxu0 0
  %1839 = vmatpush2.bf16.msra.mxu0 0
  %1840 = vmatprep.subr.bf16.mxu0 0
  %1841 = vmatpush2.bf16.msra.mxu0 0
  %1842 = vmatprep.subr.bf16.mxu0 0
  %1843 = vmatpush2.bf16.msra.mxu0 0
  %1844 = vmatprep.subr.bf16.mxu0 0
  %1845 = vmatpush2.bf16.msra.mxu0 0
  %1846 = vmatprep.subr.bf16.mxu0 0
  %1847 = vmatpush2.bf16.msra.mxu0 0
  %1848 = vmatprep.subr.bf16.mxu0 0
  %1849 = vmatpush2.bf16.msra.mxu0 0
  %1850 = vmatprep.subr.bf16.mxu0 0
  %1851 = vmatpush2.bf16.msra.mxu0 0
  %1852 = vmatprep.subr.bf16.mxu0 0
  %1853 = vmatpush2.bf16.msra.mxu0 0
  %1854 = vmatprep.mubr.bf16.mxu0 0
  %1855 = vmatmul.mubr.bf16.gmra.mxu0 %v1811
  %v1856 = vpop.f32.mrf.mxu0
  %v1857 = vadd.f32 0.0, %v1856
  %v1858 = vpop.f32.mrf.mxu0
  %v1859 = vpop.f32.mrf.mxu0
  %v1860 = vadd.f32 0.0, %v1859
  %v1861 = vpop.f32.mrf.mxu0
  %1862 = vmatprep.mubr.bf16.mxu0 0
  %1863 = vmatmul.mubr.bf16.gmra.mxu0 %v1814
  %v1864 = vpop.f32.mrf.mxu0
  %v1865 = vadd.f32 0.0, %v1864
  %v1866 = vpop.f32.mrf.mxu0
  %v1867 = vpop.f32.mrf.mxu0
  %v1868 = vadd.f32 0.0, %v1867
  %v1869 = vpop.f32.mrf.mxu0
  %1870 = vmatprep.mubr.bf16.mxu0 0
  %1871 = vmatmul.mubr.bf16.gmra.mxu0 %v1817
  %v1872 = vpop.f32.mrf.mxu0
  %v1873 = vadd.f32 0.0, %v1872
  %v1874 = vpop.f32.mrf.mxu0
  %v1875 = vpop.f32.mrf.mxu0
  %v1876 = vpop.f32.mrf.mxu0
  %1877 = vdwg.mxu0
  %v1883 = vunpack.c.l.b16 %v1785
  %v1884 = vunpack.c.l.b16 %v1786
  %v1885 = vunpack.c.l.b16 %v1787
  %v1886 = vunpack.c.l.b16 %v1788
  %v1887 = vunpack.c.l.b16 %v1789
  %v1888 = vpack.c.b16 %v1884, %v1883
  %v1889 = vpack.c.b16 %v1886, %v1885
  %v1890 = vpack.c.b16 %v1887, %v1887
  %v1892 = vsel %vm1809, %v1888, 0
  %v1895 = vsel %vm1809, %v1889, 0
  %v1898 = vsel %vm1809, %v1890, 0
  %v1901 = vsel %vm1296, %v1769, 0
  %1903 = vmatprep.subr.bf16.mxu0 0
  %1904 = vmatpush1.bf16.msra.mxu0 0
  %1905 = vmatprep.subr.bf16.mxu0 0
  %1906 = vmatpush1.bf16.msra.mxu0 0
  %1907 = vmatprep.subr.bf16.mxu0 0
  %1908 = vmatpush1.bf16.msra.mxu0 0
  %1909 = vmatprep.subr.bf16.mxu0 0
  %1910 = vmatpush1.bf16.msra.mxu0 0
  %1911 = vmatprep.subr.bf16.mxu0 0
  %1912 = vmatpush1.bf16.msra.mxu0 0
  %1913 = vmatprep.subr.bf16.mxu0 0
  %1914 = vmatpush1.bf16.msra.mxu0 0
  %1915 = vmatprep.subr.bf16.mxu0 0
  %1916 = vmatpush1.bf16.msra.mxu0 %v1901
  %1917 = vmatprep.subr.bf16.mxu0 0
  %1918 = vmatpush1.bf16.msra.mxu0 %v1753
  %1919 = vmatprep.subr.bf16.mxu0 0
  %1920 = vmatpush2.bf16.msra.mxu0 0
  %1921 = vmatprep.subr.bf16.mxu0 0
  %1922 = vmatpush2.bf16.msra.mxu0 0
  %1923 = vmatprep.subr.bf16.mxu0 0
  %1924 = vmatpush2.bf16.msra.mxu0 0
  %1925 = vmatprep.subr.bf16.mxu0 0
  %1926 = vmatpush2.bf16.msra.mxu0 0
  %1927 = vmatprep.subr.bf16.mxu0 0
  %1928 = vmatpush2.bf16.msra.mxu0 0
  %1929 = vmatprep.subr.bf16.mxu0 0
  %1930 = vmatpush2.bf16.msra.mxu0 0
  %1931 = vmatprep.subr.bf16.mxu0 0
  %1932 = vmatpush2.bf16.msra.mxu0 0
  %1933 = vmatprep.subr.bf16.mxu0 0
  %1934 = vmatpush2.bf16.msra.mxu0 0
  %1935 = vmatprep.mubr.bf16.mxu0 0
  %1936 = vmatmul.mubr.bf16.gmra.mxu0 %v1892
  %v1937 = vpop.f32.mrf.mxu0
  %v1938 = vadd.f32 %v1857, %v1937
  %v1939 = vpop.f32.mrf.mxu0
  %v1940 = vpop.f32.mrf.mxu0
  %v1941 = vadd.f32 %v1860, %v1940
  %v1942 = vpop.f32.mrf.mxu0
  %1943 = vmatprep.mubr.bf16.mxu0 0
  %1944 = vmatmul.mubr.bf16.gmra.mxu0 %v1895
  %v1945 = vpop.f32.mrf.mxu0
  %v1946 = vadd.f32 %v1865, %v1945
  %v1947 = vpop.f32.mrf.mxu0
  %v1948 = vpop.f32.mrf.mxu0
  %v1949 = vadd.f32 %v1868, %v1948
  %v1950 = vpop.f32.mrf.mxu0
  %1951 = vmatprep.mubr.bf16.mxu0 0
  %1952 = vmatmul.mubr.bf16.gmra.mxu0 %v1898
  %v1953 = vpop.f32.mrf.mxu0
  %v1954 = vadd.f32 %v1873, %v1953
  %v1955 = vpop.f32.mrf.mxu0
  %v1956 = vpop.f32.mrf.mxu0
  %v1957 = vpop.f32.mrf.mxu0
  %1958 = vdwg.mxu0
  %s1959 = scalar_lea.vmem %s3, 40
  %v1960 = vld [vmem:[%s1959] sm:$0xf]
  %v1961 = vld [vmem:[%s1959 + $0x4] sm:$0xf]
  %v1962 = vld [vmem:[%s1959 + $0x8] sm:$0xf]
  %v1963 = vld [vmem:[%s1959 + $0xc] sm:$0xf]
  %v1964 = vld [vmem:[%s1959 + $0x10] sm:$0x3]
  %v1970 = vunpack.c.l.b16 %v1960
  %v1971 = vunpack.c.l.b16 %v1961
  %v1972 = vunpack.c.l.b16 %v1962
  %v1973 = vunpack.c.l.b16 %v1963
  %v1974 = vunpack.c.l.b16 %v1964
  %v1975 = vpack.c.b16 %v1971, %v1970
  %v1976 = vpack.c.b16 %v1973, %v1972
  %v1977 = vpack.c.b16 %v1974, %v1974
  %v1979 = vsel %vm1809, %v1975, 0
  %v1982 = vsel %vm1809, %v1976, 0
  %v1985 = vsel %vm1809, %v1977, 0
  %v1988 = vsel %vm1296, %v1771, 0
  %1990 = vmatprep.subr.bf16.mxu0 0
  %1991 = vmatpush1.bf16.msra.mxu0 0
  %1992 = vmatprep.subr.bf16.mxu0 0
  %1993 = vmatpush1.bf16.msra.mxu0 0
  %1994 = vmatprep.subr.bf16.mxu0 0
  %1995 = vmatpush1.bf16.msra.mxu0 0
  %1996 = vmatprep.subr.bf16.mxu0 0
  %1997 = vmatpush1.bf16.msra.mxu0 0
  %1998 = vmatprep.subr.bf16.mxu0 0
  %1999 = vmatpush1.bf16.msra.mxu0 0
  %2000 = vmatprep.subr.bf16.mxu0 0
  %2001 = vmatpush1.bf16.msra.mxu0 0
  %2002 = vmatprep.subr.bf16.mxu0 0
  %2003 = vmatpush1.bf16.msra.mxu0 %v1988
  %2004 = vmatprep.subr.bf16.mxu0 0
  %2005 = vmatpush1.bf16.msra.mxu0 %v1755
  %2006 = vmatprep.subr.bf16.mxu0 0
  %2007 = vmatpush2.bf16.msra.mxu0 0
  %2008 = vmatprep.subr.bf16.mxu0 0
  %2009 = vmatpush2.bf16.msra.mxu0 0
  %2010 = vmatprep.subr.bf16.mxu0 0
  %2011 = vmatpush2.bf16.msra.mxu0 0
  %2012 = vmatprep.subr.bf16.mxu0 0
  %2013 = vmatpush2.bf16.msra.mxu0 0
  %2014 = vmatprep.subr.bf16.mxu0 0
  %2015 = vmatpush2.bf16.msra.mxu0 0
  %2016 = vmatprep.subr.bf16.mxu0 0
  %2017 = vmatpush2.bf16.msra.mxu0 0
  %2018 = vmatprep.subr.bf16.mxu0 0
  %2019 = vmatpush2.bf16.msra.mxu0 0
  %2020 = vmatprep.subr.bf16.mxu0 0
  %2021 = vmatpush2.bf16.msra.mxu0 0
  %2022 = vmatprep.mubr.bf16.mxu0 0
  %2023 = vmatmul.mubr.bf16.gmra.mxu0 %v1979
  %v2024 = vpop.f32.mrf.mxu0
  %v2025 = vadd.f32 0.0, %v2024
  %v2026 = vpop.f32.mrf.mxu0
  %v2027 = vpop.f32.mrf.mxu0
  %v2028 = vadd.f32 0.0, %v2027
  %v2029 = vpop.f32.mrf.mxu0
  %2030 = vmatprep.mubr.bf16.mxu0 0
  %2031 = vmatmul.mubr.bf16.gmra.mxu0 %v1982
  %v2032 = vpop.f32.mrf.mxu0
  %v2033 = vadd.f32 0.0, %v2032
  %v2034 = vpop.f32.mrf.mxu0
  %v2035 = vpop.f32.mrf.mxu0
  %v2036 = vadd.f32 0.0, %v2035
  %v2037 = vpop.f32.mrf.mxu0
  %2038 = vmatprep.mubr.bf16.mxu0 0
  %2039 = vmatmul.mubr.bf16.gmra.mxu0 %v1985
  %v2040 = vpop.f32.mrf.mxu0
  %v2041 = vadd.f32 0.0, %v2040
  %v2042 = vpop.f32.mrf.mxu0
  %v2043 = vpop.f32.mrf.mxu0
  %v2044 = vpop.f32.mrf.mxu0
  %2045 = vdwg.mxu0
  %v2046 = vadd.f32 %v1938, %v2025
  %v2047 = vadd.f32 %v1941, %v2028
  %v2048 = vadd.f32 %v1946, %v2033
  %v2049 = vadd.f32 %v1949, %v2036
  %v2050 = vadd.f32 %v1954, %v2041
  %s2051 = scalar_lea.vmem %s3, 60
  %v2052 = vld [vmem:[%s2051] sm:$0xf]
  %v2053 = vld [vmem:[%s2051 + $0x4] sm:$0xf]
  %v2054 = vld [vmem:[%s2051 + $0x8] sm:$0xf]
  %v2055 = vld [vmem:[%s2051 + $0xc] sm:$0xf]
  %v2056 = vld [vmem:[%s2051 + $0x10] sm:$0x3]
  %v2062 = vunpack.c.l.b16 %v2052
  %v2063 = vunpack.c.l.b16 %v2053
  %v2064 = vunpack.c.l.b16 %v2054
  %v2065 = vunpack.c.l.b16 %v2055
  %v2066 = vunpack.c.l.b16 %v2056
  %v2067 = vpack.c.b16 %v2063, %v2062
  %v2068 = vpack.c.b16 %v2065, %v2064
  %v2069 = vpack.c.b16 %v2066, %v2066
  %v2071 = vsel %vm1809, %v2067, 0
  %v2074 = vsel %vm1809, %v2068, 0
  %v2077 = vsel %vm1809, %v2069, 0
  %v2080 = vsel %vm1296, %v1772, 0
  %2082 = vmatprep.subr.bf16.mxu0 0
  %2083 = vmatpush1.bf16.msra.mxu0 0
  %2084 = vmatprep.subr.bf16.mxu0 0
  %2085 = vmatpush1.bf16.msra.mxu0 0
  %2086 = vmatprep.subr.bf16.mxu0 0
  %2087 = vmatpush1.bf16.msra.mxu0 0
  %2088 = vmatprep.subr.bf16.mxu0 0
  %2089 = vmatpush1.bf16.msra.mxu0 0
  %2090 = vmatprep.subr.bf16.mxu0 0
  %2091 = vmatpush1.bf16.msra.mxu0 0
  %2092 = vmatprep.subr.bf16.mxu0 0
  %2093 = vmatpush1.bf16.msra.mxu0 0
  %2094 = vmatprep.subr.bf16.mxu0 0
  %2095 = vmatpush1.bf16.msra.mxu0 %v2080
  %2096 = vmatprep.subr.bf16.mxu0 0
  %2097 = vmatpush1.bf16.msra.mxu0 %v1756
  %2098 = vmatprep.subr.bf16.mxu0 0
  %2099 = vmatpush2.bf16.msra.mxu0 0
  %2100 = vmatprep.subr.bf16.mxu0 0
  %2101 = vmatpush2.bf16.msra.mxu0 0
  %2102 = vmatprep.subr.bf16.mxu0 0
  %2103 = vmatpush2.bf16.msra.mxu0 0
  %2104 = vmatprep.subr.bf16.mxu0 0
  %2105 = vmatpush2.bf16.msra.mxu0 0
  %2106 = vmatprep.subr.bf16.mxu0 0
  %2107 = vmatpush2.bf16.msra.mxu0 0
  %2108 = vmatprep.subr.bf16.mxu0 0
  %2109 = vmatpush2.bf16.msra.mxu0 0
  %2110 = vmatprep.subr.bf16.mxu0 0
  %2111 = vmatpush2.bf16.msra.mxu0 0
  %2112 = vmatprep.subr.bf16.mxu0 0
  %2113 = vmatpush2.bf16.msra.mxu0 0
  %2114 = vmatprep.mubr.bf16.mxu0 0
  %2115 = vmatmul.mubr.bf16.gmra.mxu0 %v2071
  %v2116 = vpop.f32.mrf.mxu0
  %v2117 = vadd.f32 0.0, %v2116
  %v2118 = vpop.f32.mrf.mxu0
  %v2119 = vpop.f32.mrf.mxu0
  %v2120 = vadd.f32 0.0, %v2119
  %v2121 = vpop.f32.mrf.mxu0
  %2122 = vmatprep.mubr.bf16.mxu0 0
  %2123 = vmatmul.mubr.bf16.gmra.mxu0 %v2074
  %v2124 = vpop.f32.mrf.mxu0
  %v2125 = vadd.f32 0.0, %v2124
  %v2126 = vpop.f32.mrf.mxu0
  %v2127 = vpop.f32.mrf.mxu0
  %v2128 = vadd.f32 0.0, %v2127
  %v2129 = vpop.f32.mrf.mxu0
  %2130 = vmatprep.mubr.bf16.mxu0 0
  %2131 = vmatmul.mubr.bf16.gmra.mxu0 %v2077
  %v2132 = vpop.f32.mrf.mxu0
  %v2133 = vadd.f32 0.0, %v2132
  %v2134 = vpop.f32.mrf.mxu0
  %v2135 = vpop.f32.mrf.mxu0
  %v2136 = vpop.f32.mrf.mxu0
  %2137 = vdwg.mxu0
  %v2138 = vadd.f32 %v2046, %v2117
  %v2139 = vadd.f32 %v2047, %v2120
  %v2140 = vadd.f32 %v2048, %v2125
  %v2141 = vadd.f32 %v2049, %v2128
  %v2142 = vadd.f32 %v2050, %v2133
  %s2143 = scalar_lea.vmem %s3, 80
  %v2144 = vld [vmem:[%s2143] sm:$0xf]
  %v2145 = vld [vmem:[%s2143 + $0x4] sm:$0xf]
  %v2146 = vld [vmem:[%s2143 + $0x8] sm:$0xf]
  %v2147 = vld [vmem:[%s2143 + $0xc] sm:$0xf]
  %v2148 = vld [vmem:[%s2143 + $0x10] sm:$0x3]
  %v2154 = vunpack.c.l.b16 %v2144
  %v2155 = vunpack.c.l.b16 %v2145
  %v2156 = vunpack.c.l.b16 %v2146
  %v2157 = vunpack.c.l.b16 %v2147
  %v2158 = vunpack.c.l.b16 %v2148
  %v2159 = vpack.c.b16 %v2155, %v2154
  %v2160 = vpack.c.b16 %v2157, %v2156
  %v2161 = vpack.c.b16 %v2158, %v2158
  %v2163 = vsel %vm1809, %v2159, 0
  %v2166 = vsel %vm1809, %v2160, 0
  %v2169 = vsel %vm1809, %v2161, 0
  %v2172 = vsel %vm1296, %v1773, 0
  %2174 = vmatprep.subr.bf16.mxu0 0
  %2175 = vmatpush1.bf16.msra.mxu0 0
  %2176 = vmatprep.subr.bf16.mxu0 0
  %2177 = vmatpush1.bf16.msra.mxu0 0
  %2178 = vmatprep.subr.bf16.mxu0 0
  %2179 = vmatpush1.bf16.msra.mxu0 0
  %2180 = vmatprep.subr.bf16.mxu0 0
  %2181 = vmatpush1.bf16.msra.mxu0 0
  %2182 = vmatprep.subr.bf16.mxu0 0
  %2183 = vmatpush1.bf16.msra.mxu0 0
  %2184 = vmatprep.subr.bf16.mxu0 0
  %2185 = vmatpush1.bf16.msra.mxu0 0
  %2186 = vmatprep.subr.bf16.mxu0 0
  %2187 = vmatpush1.bf16.msra.mxu0 %v2172
  %2188 = vmatprep.subr.bf16.mxu0 0
  %2189 = vmatpush1.bf16.msra.mxu0 %v1757
  %2190 = vmatprep.subr.bf16.mxu0 0
  %2191 = vmatpush2.bf16.msra.mxu0 0
  %2192 = vmatprep.subr.bf16.mxu0 0
  %2193 = vmatpush2.bf16.msra.mxu0 0
  %2194 = vmatprep.subr.bf16.mxu0 0
  %2195 = vmatpush2.bf16.msra.mxu0 0
  %2196 = vmatprep.subr.bf16.mxu0 0
  %2197 = vmatpush2.bf16.msra.mxu0 0
  %2198 = vmatprep.subr.bf16.mxu0 0
  %2199 = vmatpush2.bf16.msra.mxu0 0
  %2200 = vmatprep.subr.bf16.mxu0 0
  %2201 = vmatpush2.bf16.msra.mxu0 0
  %2202 = vmatprep.subr.bf16.mxu0 0
  %2203 = vmatpush2.bf16.msra.mxu0 0
  %2204 = vmatprep.subr.bf16.mxu0 0
  %2205 = vmatpush2.bf16.msra.mxu0 0
  %2206 = vmatprep.mubr.bf16.mxu0 0
  %2207 = vmatmul.mubr.bf16.gmra.mxu0 %v2163
  %v2208 = vpop.f32.mrf.mxu0
  %v2209 = vadd.f32 0.0, %v2208
  %v2210 = vpop.f32.mrf.mxu0
  %v2211 = vpop.f32.mrf.mxu0
  %v2212 = vadd.f32 0.0, %v2211
  %v2213 = vpop.f32.mrf.mxu0
  %2214 = vmatprep.mubr.bf16.mxu0 0
  %2215 = vmatmul.mubr.bf16.gmra.mxu0 %v2166
  %v2216 = vpop.f32.mrf.mxu0
  %v2217 = vadd.f32 0.0, %v2216
  %v2218 = vpop.f32.mrf.mxu0
  %v2219 = vpop.f32.mrf.mxu0
  %v2220 = vadd.f32 0.0, %v2219
  %v2221 = vpop.f32.mrf.mxu0
  %2222 = vmatprep.mubr.bf16.mxu0 0
  %2223 = vmatmul.mubr.bf16.gmra.mxu0 %v2169
  %v2224 = vpop.f32.mrf.mxu0
  %v2225 = vadd.f32 0.0, %v2224
  %v2226 = vpop.f32.mrf.mxu0
  %v2227 = vpop.f32.mrf.mxu0
  %v2228 = vpop.f32.mrf.mxu0
  %2229 = vdwg.mxu0
  %v2230 = vadd.f32 %v2138, %v2209
  %v2231 = vadd.f32 %v2139, %v2212
  %v2232 = vadd.f32 %v2140, %v2217
  %v2233 = vadd.f32 %v2141, %v2220
  %v2234 = vadd.f32 %v2142, %v2225
  %s2235 = scalar_lea.vmem %s3, 100
  %v2236 = vld [vmem:[%s2235] sm:$0xf]
  %v2237 = vld [vmem:[%s2235 + $0x4] sm:$0xf]
  %v2238 = vld [vmem:[%s2235 + $0x8] sm:$0xf]
  %v2239 = vld [vmem:[%s2235 + $0xc] sm:$0xf]
  %v2240 = vld [vmem:[%s2235 + $0x10] sm:$0x3]
  %v2246 = vunpack.c.l.b16 %v2236
  %v2247 = vunpack.c.l.b16 %v2237
  %v2248 = vunpack.c.l.b16 %v2238
  %v2249 = vunpack.c.l.b16 %v2239
  %v2250 = vunpack.c.l.b16 %v2240
  %v2251 = vpack.c.b16 %v2247, %v2246
  %v2252 = vpack.c.b16 %v2249, %v2248
  %v2253 = vpack.c.b16 %v2250, %v2250
  %v2255 = vsel %vm1809, %v2251, 0
  %v2258 = vsel %vm1809, %v2252, 0
  %v2261 = vsel %vm1809, %v2253, 0
  %v2264 = vsel %vm1296, %v1774, 0
  %2266 = vmatprep.subr.bf16.mxu0 0
  %2267 = vmatpush1.bf16.msra.mxu0 0
  %2268 = vmatprep.subr.bf16.mxu0 0
  %2269 = vmatpush1.bf16.msra.mxu0 0
  %2270 = vmatprep.subr.bf16.mxu0 0
  %2271 = vmatpush1.bf16.msra.mxu0 0
  %2272 = vmatprep.subr.bf16.mxu0 0
  %2273 = vmatpush1.bf16.msra.mxu0 0
  %2274 = vmatprep.subr.bf16.mxu0 0
  %2275 = vmatpush1.bf16.msra.mxu0 0
  %2276 = vmatprep.subr.bf16.mxu0 0
  %2277 = vmatpush1.bf16.msra.mxu0 0
  %2278 = vmatprep.subr.bf16.mxu0 0
  %2279 = vmatpush1.bf16.msra.mxu0 %v2264
  %2280 = vmatprep.subr.bf16.mxu0 0
  %2281 = vmatpush1.bf16.msra.mxu0 %v1758
  %2282 = vmatprep.subr.bf16.mxu0 0
  %2283 = vmatpush2.bf16.msra.mxu0 0
  %2284 = vmatprep.subr.bf16.mxu0 0
  %2285 = vmatpush2.bf16.msra.mxu0 0
  %2286 = vmatprep.subr.bf16.mxu0 0
  %2287 = vmatpush2.bf16.msra.mxu0 0
  %2288 = vmatprep.subr.bf16.mxu0 0
  %2289 = vmatpush2.bf16.msra.mxu0 0
  %2290 = vmatprep.subr.bf16.mxu0 0
  %2291 = vmatpush2.bf16.msra.mxu0 0
  %2292 = vmatprep.subr.bf16.mxu0 0
  %2293 = vmatpush2.bf16.msra.mxu0 0
  %2294 = vmatprep.subr.bf16.mxu0 0
  %2295 = vmatpush2.bf16.msra.mxu0 0
  %2296 = vmatprep.subr.bf16.mxu0 0
  %2297 = vmatpush2.bf16.msra.mxu0 0
  %2298 = vmatprep.mubr.bf16.mxu0 0
  %2299 = vmatmul.mubr.bf16.gmra.mxu0 %v2255
  %v2300 = vpop.f32.mrf.mxu0
  %v2301 = vadd.f32 0.0, %v2300
  %v2302 = vpop.f32.mrf.mxu0
  %v2303 = vpop.f32.mrf.mxu0
  %v2304 = vadd.f32 0.0, %v2303
  %v2305 = vpop.f32.mrf.mxu0
  %2306 = vmatprep.mubr.bf16.mxu0 0
  %2307 = vmatmul.mubr.bf16.gmra.mxu0 %v2258
  %v2308 = vpop.f32.mrf.mxu0
  %v2309 = vadd.f32 0.0, %v2308
  %v2310 = vpop.f32.mrf.mxu0
  %v2311 = vpop.f32.mrf.mxu0
  %v2312 = vadd.f32 0.0, %v2311
  %v2313 = vpop.f32.mrf.mxu0
  %2314 = vmatprep.mubr.bf16.mxu0 0
  %2315 = vmatmul.mubr.bf16.gmra.mxu0 %v2261
  %v2316 = vpop.f32.mrf.mxu0
  %v2317 = vadd.f32 0.0, %v2316
  %v2318 = vpop.f32.mrf.mxu0
  %v2319 = vpop.f32.mrf.mxu0
  %v2320 = vpop.f32.mrf.mxu0
  %2321 = vdwg.mxu0
  %v2322 = vadd.f32 %v2230, %v2301
  %v2323 = vadd.f32 %v2231, %v2304
  %v2324 = vadd.f32 %v2232, %v2309
  %v2325 = vadd.f32 %v2233, %v2312
  %v2326 = vadd.f32 %v2234, %v2317
  %s2327 = scalar_lea.vmem %s3, 120
  %v2328 = vld [vmem:[%s2327] sm:$0xf]
  %v2329 = vld [vmem:[%s2327 + $0x4] sm:$0xf]
  %v2330 = vld [vmem:[%s2327 + $0x8] sm:$0xf]
  %v2331 = vld [vmem:[%s2327 + $0xc] sm:$0xf]
  %v2332 = vld [vmem:[%s2327 + $0x10] sm:$0x3]
  %v2338 = vunpack.c.l.b16 %v2328
  %v2339 = vunpack.c.l.b16 %v2329
  %v2340 = vunpack.c.l.b16 %v2330
  %v2341 = vunpack.c.l.b16 %v2331
  %v2342 = vunpack.c.l.b16 %v2332
  %v2343 = vpack.c.b16 %v2339, %v2338
  %v2344 = vpack.c.b16 %v2341, %v2340
  %v2345 = vpack.c.b16 %v2342, %v2342
  %v2347 = vsel %vm1809, %v2343, 0
  %v2350 = vsel %vm1809, %v2344, 0
  %v2353 = vsel %vm1809, %v2345, 0
  %v2356 = vsel %vm1296, %v1775, 0
  %2358 = vmatprep.subr.bf16.mxu0 0
  %2359 = vmatpush1.bf16.msra.mxu0 0
  %2360 = vmatprep.subr.bf16.mxu0 0
  %2361 = vmatpush1.bf16.msra.mxu0 0
  %2362 = vmatprep.subr.bf16.mxu0 0
  %2363 = vmatpush1.bf16.msra.mxu0 0
  %2364 = vmatprep.subr.bf16.mxu0 0
  %2365 = vmatpush1.bf16.msra.mxu0 0
  %2366 = vmatprep.subr.bf16.mxu0 0
  %2367 = vmatpush1.bf16.msra.mxu0 0
  %2368 = vmatprep.subr.bf16.mxu0 0
  %2369 = vmatpush1.bf16.msra.mxu0 0
  %2370 = vmatprep.subr.bf16.mxu0 0
  %2371 = vmatpush1.bf16.msra.mxu0 %v2356
  %2372 = vmatprep.subr.bf16.mxu0 0
  %2373 = vmatpush1.bf16.msra.mxu0 %v1759
  %2374 = vmatprep.subr.bf16.mxu0 0
  %2375 = vmatpush2.bf16.msra.mxu0 0
  %2376 = vmatprep.subr.bf16.mxu0 0
  %2377 = vmatpush2.bf16.msra.mxu0 0
  %2378 = vmatprep.subr.bf16.mxu0 0
  %2379 = vmatpush2.bf16.msra.mxu0 0
  %2380 = vmatprep.subr.bf16.mxu0 0
  %2381 = vmatpush2.bf16.msra.mxu0 0
  %2382 = vmatprep.subr.bf16.mxu0 0
  %2383 = vmatpush2.bf16.msra.mxu0 0
  %2384 = vmatprep.subr.bf16.mxu0 0
  %2385 = vmatpush2.bf16.msra.mxu0 0
  %2386 = vmatprep.subr.bf16.mxu0 0
  %2387 = vmatpush2.bf16.msra.mxu0 0
  %2388 = vmatprep.subr.bf16.mxu0 0
  %2389 = vmatpush2.bf16.msra.mxu0 0
  %2390 = vmatprep.mubr.bf16.mxu0 0
  %2391 = vmatmul.mubr.bf16.gmra.mxu0 %v2347
  %v2392 = vpop.f32.mrf.mxu0
  %v2393 = vadd.f32 0.0, %v2392
  %v2394 = vpop.f32.mrf.mxu0
  %v2395 = vpop.f32.mrf.mxu0
  %v2396 = vadd.f32 0.0, %v2395
  %v2397 = vpop.f32.mrf.mxu0
  %2398 = vmatprep.mubr.bf16.mxu0 0
  %2399 = vmatmul.mubr.bf16.gmra.mxu0 %v2350
  %v2400 = vpop.f32.mrf.mxu0
  %v2401 = vadd.f32 0.0, %v2400
  %v2402 = vpop.f32.mrf.mxu0
  %v2403 = vpop.f32.mrf.mxu0
  %v2404 = vadd.f32 0.0, %v2403
  %v2405 = vpop.f32.mrf.mxu0
  %2406 = vmatprep.mubr.bf16.mxu0 0
  %2407 = vmatmul.mubr.bf16.gmra.mxu0 %v2353
  %v2408 = vpop.f32.mrf.mxu0
  %v2409 = vadd.f32 0.0, %v2408
  %v2410 = vpop.f32.mrf.mxu0
  %v2411 = vpop.f32.mrf.mxu0
  %v2412 = vpop.f32.mrf.mxu0
  %2413 = vdwg.mxu0
  %v2414 = vadd.f32 %v2322, %v2393
  %v2415 = vadd.f32 %v2323, %v2396
  %v2416 = vadd.f32 %v2324, %v2401
  %v2417 = vadd.f32 %v2325, %v2404
  %v2418 = vadd.f32 %v2326, %v2409
  %s2419 = scalar_lea.vmem %s3, 140
  %v2420 = vld [vmem:[%s2419] sm:$0xf]
  %v2421 = vld [vmem:[%s2419 + $0x4] sm:$0xf]
  %v2422 = vld [vmem:[%s2419 + $0x8] sm:$0xf]
  %v2423 = vld [vmem:[%s2419 + $0xc] sm:$0xf]
  %v2424 = vld [vmem:[%s2419 + $0x10] sm:$0x3]
  %v2430 = vunpack.c.l.b16 %v2420
  %v2431 = vunpack.c.l.b16 %v2421
  %v2432 = vunpack.c.l.b16 %v2422
  %v2433 = vunpack.c.l.b16 %v2423
  %v2434 = vunpack.c.l.b16 %v2424
  %v2435 = vpack.c.b16 %v2431, %v2430
  %v2436 = vpack.c.b16 %v2433, %v2432
  %v2437 = vpack.c.b16 %v2434, %v2434
  %v2439 = vsel %vm1809, %v2435, 0
  %v2442 = vsel %vm1809, %v2436, 0
  %v2445 = vsel %vm1809, %v2437, 0
  %v2448 = vsel %vm1296, %v1776, 0
  %2450 = vmatprep.subr.bf16.mxu0 0
  %2451 = vmatpush1.bf16.msra.mxu0 0
  %2452 = vmatprep.subr.bf16.mxu0 0
  %2453 = vmatpush1.bf16.msra.mxu0 0
  %2454 = vmatprep.subr.bf16.mxu0 0
  %2455 = vmatpush1.bf16.msra.mxu0 0
  %2456 = vmatprep.subr.bf16.mxu0 0
  %2457 = vmatpush1.bf16.msra.mxu0 0
  %2458 = vmatprep.subr.bf16.mxu0 0
  %2459 = vmatpush1.bf16.msra.mxu0 0
  %2460 = vmatprep.subr.bf16.mxu0 0
  %2461 = vmatpush1.bf16.msra.mxu0 0
  %2462 = vmatprep.subr.bf16.mxu0 0
  %2463 = vmatpush1.bf16.msra.mxu0 %v2448
  %2464 = vmatprep.subr.bf16.mxu0 0
  %2465 = vmatpush1.bf16.msra.mxu0 %v1760
  %2466 = vmatprep.subr.bf16.mxu0 0
  %2467 = vmatpush2.bf16.msra.mxu0 0
  %2468 = vmatprep.subr.bf16.mxu0 0
  %2469 = vmatpush2.bf16.msra.mxu0 0
  %2470 = vmatprep.subr.bf16.mxu0 0
  %2471 = vmatpush2.bf16.msra.mxu0 0
  %2472 = vmatprep.subr.bf16.mxu0 0
  %2473 = vmatpush2.bf16.msra.mxu0 0
  %2474 = vmatprep.subr.bf16.mxu0 0
  %2475 = vmatpush2.bf16.msra.mxu0 0
  %2476 = vmatprep.subr.bf16.mxu0 0
  %2477 = vmatpush2.bf16.msra.mxu0 0
  %2478 = vmatprep.subr.bf16.mxu0 0
  %2479 = vmatpush2.bf16.msra.mxu0 0
  %2480 = vmatprep.subr.bf16.mxu0 0
  %2481 = vmatpush2.bf16.msra.mxu0 0
  %2482 = vmatprep.mubr.bf16.mxu0 0
  %2483 = vmatmul.mubr.bf16.gmra.mxu0 %v2439
  %v2484 = vpop.f32.mrf.mxu0
  %v2485 = vadd.f32 0.0, %v2484
  %v2486 = vpop.f32.mrf.mxu0
  %v2487 = vpop.f32.mrf.mxu0
  %v2488 = vadd.f32 0.0, %v2487
  %v2489 = vpop.f32.mrf.mxu0
  %2490 = vmatprep.mubr.bf16.mxu0 0
  %2491 = vmatmul.mubr.bf16.gmra.mxu0 %v2442
  %v2492 = vpop.f32.mrf.mxu0
  %v2493 = vadd.f32 0.0, %v2492
  %v2494 = vpop.f32.mrf.mxu0
  %v2495 = vpop.f32.mrf.mxu0
  %v2496 = vadd.f32 0.0, %v2495
  %v2497 = vpop.f32.mrf.mxu0
  %2498 = vmatprep.mubr.bf16.mxu0 0
  %2499 = vmatmul.mubr.bf16.gmra.mxu0 %v2445
  %v2500 = vpop.f32.mrf.mxu0
  %v2501 = vadd.f32 0.0, %v2500
  %v2502 = vpop.f32.mrf.mxu0
  %v2503 = vpop.f32.mrf.mxu0
  %v2504 = vpop.f32.mrf.mxu0
  %2505 = vdwg.mxu0
  %v2506 = vadd.f32 %v2414, %v2485
  %v2507 = vadd.f32 %v2415, %v2488
  %v2508 = vadd.f32 %v2416, %v2493
  %v2509 = vadd.f32 %v2417, %v2496
  %v2510 = vadd.f32 %v2418, %v2501
  %s2511 = scalar_lea.vmem %s3, 160
  %v2512 = vld [vmem:[%s2511] sm:$0xf]
  %v2513 = vld [vmem:[%s2511 + $0x4] sm:$0xf]
  %v2514 = vld [vmem:[%s2511 + $0x8] sm:$0xf]
  %v2515 = vld [vmem:[%s2511 + $0xc] sm:$0xf]
  %v2516 = vld [vmem:[%s2511 + $0x10] sm:$0x3]
  %v2522 = vunpack.c.l.b16 %v2512
  %v2523 = vunpack.c.l.b16 %v2513
  %v2524 = vunpack.c.l.b16 %v2514
  %v2525 = vunpack.c.l.b16 %v2515
  %v2526 = vunpack.c.l.b16 %v2516
  %v2527 = vpack.c.b16 %v2523, %v2522
  %v2528 = vpack.c.b16 %v2525, %v2524
  %v2529 = vpack.c.b16 %v2526, %v2526
  %v2531 = vsel %vm1809, %v2527, 0
  %v2534 = vsel %vm1809, %v2528, 0
  %v2537 = vsel %vm1809, %v2529, 0
  %v2540 = vsel %vm1296, %v1777, 0
  %2542 = vmatprep.subr.bf16.mxu0 0
  %2543 = vmatpush1.bf16.msra.mxu0 0
  %2544 = vmatprep.subr.bf16.mxu0 0
  %2545 = vmatpush1.bf16.msra.mxu0 0
  %2546 = vmatprep.subr.bf16.mxu0 0
  %2547 = vmatpush1.bf16.msra.mxu0 0
  %2548 = vmatprep.subr.bf16.mxu0 0
  %2549 = vmatpush1.bf16.msra.mxu0 0
  %2550 = vmatprep.subr.bf16.mxu0 0
  %2551 = vmatpush1.bf16.msra.mxu0 0
  %2552 = vmatprep.subr.bf16.mxu0 0
  %2553 = vmatpush1.bf16.msra.mxu0 0
  %2554 = vmatprep.subr.bf16.mxu0 0
  %2555 = vmatpush1.bf16.msra.mxu0 %v2540
  %2556 = vmatprep.subr.bf16.mxu0 0
  %2557 = vmatpush1.bf16.msra.mxu0 %v1761
  %2558 = vmatprep.subr.bf16.mxu0 0
  %2559 = vmatpush2.bf16.msra.mxu0 0
  %2560 = vmatprep.subr.bf16.mxu0 0
  %2561 = vmatpush2.bf16.msra.mxu0 0
  %2562 = vmatprep.subr.bf16.mxu0 0
  %2563 = vmatpush2.bf16.msra.mxu0 0
  %2564 = vmatprep.subr.bf16.mxu0 0
  %2565 = vmatpush2.bf16.msra.mxu0 0
  %2566 = vmatprep.subr.bf16.mxu0 0
  %2567 = vmatpush2.bf16.msra.mxu0 0
  %2568 = vmatprep.subr.bf16.mxu0 0
  %2569 = vmatpush2.bf16.msra.mxu0 0
  %2570 = vmatprep.subr.bf16.mxu0 0
  %2571 = vmatpush2.bf16.msra.mxu0 0
  %2572 = vmatprep.subr.bf16.mxu0 0
  %2573 = vmatpush2.bf16.msra.mxu0 0
  %2574 = vmatprep.mubr.bf16.mxu0 0
  %2575 = vmatmul.mubr.bf16.gmra.mxu0 %v2531
  %v2576 = vpop.f32.mrf.mxu0
  %v2577 = vadd.f32 0.0, %v2576
  %v2578 = vpop.f32.mrf.mxu0
  %v2579 = vpop.f32.mrf.mxu0
  %v2580 = vadd.f32 0.0, %v2579
  %v2581 = vpop.f32.mrf.mxu0
  %2582 = vmatprep.mubr.bf16.mxu0 0
  %2583 = vmatmul.mubr.bf16.gmra.mxu0 %v2534
  %v2584 = vpop.f32.mrf.mxu0
  %v2585 = vadd.f32 0.0, %v2584
  %v2586 = vpop.f32.mrf.mxu0
  %v2587 = vpop.f32.mrf.mxu0
  %v2588 = vadd.f32 0.0, %v2587
  %v2589 = vpop.f32.mrf.mxu0
  %2590 = vmatprep.mubr.bf16.mxu0 0
  %2591 = vmatmul.mubr.bf16.gmra.mxu0 %v2537
  %v2592 = vpop.f32.mrf.mxu0
  %v2593 = vadd.f32 0.0, %v2592
  %v2594 = vpop.f32.mrf.mxu0
  %v2595 = vpop.f32.mrf.mxu0
  %v2596 = vpop.f32.mrf.mxu0
  %2597 = vdwg.mxu0
  %v2598 = vadd.f32 %v2506, %v2577
  %v2599 = vadd.f32 %v2507, %v2580
  %v2600 = vadd.f32 %v2508, %v2585
  %v2601 = vadd.f32 %v2509, %v2588
  %v2602 = vadd.f32 %v2510, %v2593
  %s2603 = scalar_lea.vmem %s3, 180
  %v2604 = vld [vmem:[%s2603] sm:$0xf]
  %v2605 = vld [vmem:[%s2603 + $0x4] sm:$0xf]
  %v2606 = vld [vmem:[%s2603 + $0x8] sm:$0xf]
  %v2607 = vld [vmem:[%s2603 + $0xc] sm:$0xf]
  %v2608 = vld [vmem:[%s2603 + $0x10] sm:$0x3]
  %v2614 = vunpack.c.l.b16 %v2604
  %v2615 = vunpack.c.l.b16 %v2605
  %v2616 = vunpack.c.l.b16 %v2606
  %v2617 = vunpack.c.l.b16 %v2607
  %v2618 = vunpack.c.l.b16 %v2608
  %v2619 = vpack.c.b16 %v2615, %v2614
  %v2620 = vpack.c.b16 %v2617, %v2616
  %v2621 = vpack.c.b16 %v2618, %v2618
  %v2623 = vsel %vm1809, %v2619, 0
  %v2626 = vsel %vm1809, %v2620, 0
  %v2629 = vsel %vm1809, %v2621, 0
  %v2632 = vsel %vm1296, %v1778, 0
  %2634 = vmatprep.subr.bf16.mxu0 0
  %2635 = vmatpush1.bf16.msra.mxu0 0
  %2636 = vmatprep.subr.bf16.mxu0 0
  %2637 = vmatpush1.bf16.msra.mxu0 0
  %2638 = vmatprep.subr.bf16.mxu0 0
  %2639 = vmatpush1.bf16.msra.mxu0 0
  %2640 = vmatprep.subr.bf16.mxu0 0
  %2641 = vmatpush1.bf16.msra.mxu0 0
  %2642 = vmatprep.subr.bf16.mxu0 0
  %2643 = vmatpush1.bf16.msra.mxu0 0
  %2644 = vmatprep.subr.bf16.mxu0 0
  %2645 = vmatpush1.bf16.msra.mxu0 0
  %2646 = vmatprep.subr.bf16.mxu0 0
  %2647 = vmatpush1.bf16.msra.mxu0 %v2632
  %2648 = vmatprep.subr.bf16.mxu0 0
  %2649 = vmatpush1.bf16.msra.mxu0 %v1762
  %2650 = vmatprep.subr.bf16.mxu0 0
  %2651 = vmatpush2.bf16.msra.mxu0 0
  %2652 = vmatprep.subr.bf16.mxu0 0
  %2653 = vmatpush2.bf16.msra.mxu0 0
  %2654 = vmatprep.subr.bf16.mxu0 0
  %2655 = vmatpush2.bf16.msra.mxu0 0
  %2656 = vmatprep.subr.bf16.mxu0 0
  %2657 = vmatpush2.bf16.msra.mxu0 0
  %2658 = vmatprep.subr.bf16.mxu0 0
  %2659 = vmatpush2.bf16.msra.mxu0 0
  %2660 = vmatprep.subr.bf16.mxu0 0
  %2661 = vmatpush2.bf16.msra.mxu0 0
  %2662 = vmatprep.subr.bf16.mxu0 0
  %2663 = vmatpush2.bf16.msra.mxu0 0
  %2664 = vmatprep.subr.bf16.mxu0 0
  %2665 = vmatpush2.bf16.msra.mxu0 0
  %2666 = vmatprep.mubr.bf16.mxu0 0
  %2667 = vmatmul.mubr.bf16.gmra.mxu0 %v2623
  %v2668 = vpop.f32.mrf.mxu0
  %v2669 = vadd.f32 0.0, %v2668
  %v2670 = vpop.f32.mrf.mxu0
  %v2671 = vpop.f32.mrf.mxu0
  %v2672 = vadd.f32 0.0, %v2671
  %v2673 = vpop.f32.mrf.mxu0
  %2674 = vmatprep.mubr.bf16.mxu0 0
  %2675 = vmatmul.mubr.bf16.gmra.mxu0 %v2626
  %v2676 = vpop.f32.mrf.mxu0
  %v2677 = vadd.f32 0.0, %v2676
  %v2678 = vpop.f32.mrf.mxu0
  %v2679 = vpop.f32.mrf.mxu0
  %v2680 = vadd.f32 0.0, %v2679
  %v2681 = vpop.f32.mrf.mxu0
  %2682 = vmatprep.mubr.bf16.mxu0 0
  %2683 = vmatmul.mubr.bf16.gmra.mxu0 %v2629
  %v2684 = vpop.f32.mrf.mxu0
  %v2685 = vadd.f32 0.0, %v2684
  %v2686 = vpop.f32.mrf.mxu0
  %v2687 = vpop.f32.mrf.mxu0
  %v2688 = vpop.f32.mrf.mxu0
  %2689 = vdwg.mxu0
  %v2690 = vadd.f32 %v2598, %v2669
  %v2691 = vadd.f32 %v2599, %v2672
  %v2692 = vadd.f32 %v2600, %v2677
  %v2693 = vadd.f32 %v2601, %v2680
  %v2694 = vadd.f32 %v2602, %v2685
  %s2695 = scalar_lea.vmem %s3, 200
  %v2696 = vld [vmem:[%s2695] sm:$0xf]
  %v2697 = vld [vmem:[%s2695 + $0x4] sm:$0xf]
  %v2698 = vld [vmem:[%s2695 + $0x8] sm:$0xf]
  %v2699 = vld [vmem:[%s2695 + $0xc] sm:$0xf]
  %v2700 = vld [vmem:[%s2695 + $0x10] sm:$0x3]
  %v2706 = vunpack.c.l.b16 %v2696
  %v2707 = vunpack.c.l.b16 %v2697
  %v2708 = vunpack.c.l.b16 %v2698
  %v2709 = vunpack.c.l.b16 %v2699
  %v2710 = vunpack.c.l.b16 %v2700
  %v2711 = vpack.c.b16 %v2707, %v2706
  %v2712 = vpack.c.b16 %v2709, %v2708
  %v2713 = vpack.c.b16 %v2710, %v2710
  %v2715 = vsel %vm1809, %v2711, 0
  %v2718 = vsel %vm1809, %v2712, 0
  %v2721 = vsel %vm1809, %v2713, 0
  %v2724 = vsel %vm1296, %v1779, 0
  %2726 = vmatprep.subr.bf16.mxu0 0
  %2727 = vmatpush1.bf16.msra.mxu0 0
  %2728 = vmatprep.subr.bf16.mxu0 0
  %2729 = vmatpush1.bf16.msra.mxu0 0
  %2730 = vmatprep.subr.bf16.mxu0 0
  %2731 = vmatpush1.bf16.msra.mxu0 0
  %2732 = vmatprep.subr.bf16.mxu0 0
  %2733 = vmatpush1.bf16.msra.mxu0 0
  %2734 = vmatprep.subr.bf16.mxu0 0
  %2735 = vmatpush1.bf16.msra.mxu0 0
  %2736 = vmatprep.subr.bf16.mxu0 0
  %2737 = vmatpush1.bf16.msra.mxu0 0
  %2738 = vmatprep.subr.bf16.mxu0 0
  %2739 = vmatpush1.bf16.msra.mxu0 %v2724
  %2740 = vmatprep.subr.bf16.mxu0 0
  %2741 = vmatpush1.bf16.msra.mxu0 %v1763
  %2742 = vmatprep.subr.bf16.mxu0 0
  %2743 = vmatpush2.bf16.msra.mxu0 0
  %2744 = vmatprep.subr.bf16.mxu0 0
  %2745 = vmatpush2.bf16.msra.mxu0 0
  %2746 = vmatprep.subr.bf16.mxu0 0
  %2747 = vmatpush2.bf16.msra.mxu0 0
  %2748 = vmatprep.subr.bf16.mxu0 0
  %2749 = vmatpush2.bf16.msra.mxu0 0
  %2750 = vmatprep.subr.bf16.mxu0 0
  %2751 = vmatpush2.bf16.msra.mxu0 0
  %2752 = vmatprep.subr.bf16.mxu0 0
  %2753 = vmatpush2.bf16.msra.mxu0 0
  %2754 = vmatprep.subr.bf16.mxu0 0
  %2755 = vmatpush2.bf16.msra.mxu0 0
  %2756 = vmatprep.subr.bf16.mxu0 0
  %2757 = vmatpush2.bf16.msra.mxu0 0
  %2758 = vmatprep.mubr.bf16.mxu0 0
  %2759 = vmatmul.mubr.bf16.gmra.mxu0 %v2715
  %v2760 = vpop.f32.mrf.mxu0
  %v2761 = vadd.f32 0.0, %v2760
  %v2762 = vpop.f32.mrf.mxu0
  %v2763 = vpop.f32.mrf.mxu0
  %v2764 = vadd.f32 0.0, %v2763
  %v2765 = vpop.f32.mrf.mxu0
  %2766 = vmatprep.mubr.bf16.mxu0 0
  %2767 = vmatmul.mubr.bf16.gmra.mxu0 %v2718
  %v2768 = vpop.f32.mrf.mxu0
  %v2769 = vadd.f32 0.0, %v2768
  %v2770 = vpop.f32.mrf.mxu0
  %v2771 = vpop.f32.mrf.mxu0
  %v2772 = vadd.f32 0.0, %v2771
  %v2773 = vpop.f32.mrf.mxu0
  %2774 = vmatprep.mubr.bf16.mxu0 0
  %2775 = vmatmul.mubr.bf16.gmra.mxu0 %v2721
  %v2776 = vpop.f32.mrf.mxu0
  %v2777 = vadd.f32 0.0, %v2776
  %v2778 = vpop.f32.mrf.mxu0
  %v2779 = vpop.f32.mrf.mxu0
  %v2780 = vpop.f32.mrf.mxu0
  %2781 = vdwg.mxu0
  %v2782 = vadd.f32 %v2690, %v2761
  %v2783 = vadd.f32 %v2691, %v2764
  %v2784 = vadd.f32 %v2692, %v2769
  %v2785 = vadd.f32 %v2693, %v2772
  %v2786 = vadd.f32 %v2694, %v2777
  %s2787 = scalar_lea.vmem %s3, 220
  %v2788 = vld [vmem:[%s2787] sm:$0xf]
  %v2789 = vld [vmem:[%s2787 + $0x4] sm:$0xf]
  %v2790 = vld [vmem:[%s2787 + $0x8] sm:$0xf]
  %v2791 = vld [vmem:[%s2787 + $0xc] sm:$0xf]
  %v2792 = vld [vmem:[%s2787 + $0x10] sm:$0x3]
  %v2798 = vunpack.c.l.b16 %v2788
  %v2799 = vunpack.c.l.b16 %v2789
  %v2800 = vunpack.c.l.b16 %v2790
  %v2801 = vunpack.c.l.b16 %v2791
  %v2802 = vunpack.c.l.b16 %v2792
  %v2803 = vpack.c.b16 %v2799, %v2798
  %v2804 = vpack.c.b16 %v2801, %v2800
  %v2805 = vpack.c.b16 %v2802, %v2802
  %v2807 = vsel %vm1809, %v2803, 0
  %v2810 = vsel %vm1809, %v2804, 0
  %v2813 = vsel %vm1809, %v2805, 0
  %v2816 = vsel %vm1296, %v1780, 0
  %2818 = vmatprep.subr.bf16.mxu0 0
  %2819 = vmatpush1.bf16.msra.mxu0 0
  %2820 = vmatprep.subr.bf16.mxu0 0
  %2821 = vmatpush1.bf16.msra.mxu0 0
  %2822 = vmatprep.subr.bf16.mxu0 0
  %2823 = vmatpush1.bf16.msra.mxu0 0
  %2824 = vmatprep.subr.bf16.mxu0 0
  %2825 = vmatpush1.bf16.msra.mxu0 0
  %2826 = vmatprep.subr.bf16.mxu0 0
  %2827 = vmatpush1.bf16.msra.mxu0 0
  %2828 = vmatprep.subr.bf16.mxu0 0
  %2829 = vmatpush1.bf16.msra.mxu0 0
  %2830 = vmatprep.subr.bf16.mxu0 0
  %2831 = vmatpush1.bf16.msra.mxu0 %v2816
  %2832 = vmatprep.subr.bf16.mxu0 0
  %2833 = vmatpush1.bf16.msra.mxu0 %v1764
  %2834 = vmatprep.subr.bf16.mxu0 0
  %2835 = vmatpush2.bf16.msra.mxu0 0
  %2836 = vmatprep.subr.bf16.mxu0 0
  %2837 = vmatpush2.bf16.msra.mxu0 0
  %2838 = vmatprep.subr.bf16.mxu0 0
  %2839 = vmatpush2.bf16.msra.mxu0 0
  %2840 = vmatprep.subr.bf16.mxu0 0
  %2841 = vmatpush2.bf16.msra.mxu0 0
  %2842 = vmatprep.subr.bf16.mxu0 0
  %2843 = vmatpush2.bf16.msra.mxu0 0
  %2844 = vmatprep.subr.bf16.mxu0 0
  %2845 = vmatpush2.bf16.msra.mxu0 0
  %2846 = vmatprep.subr.bf16.mxu0 0
  %2847 = vmatpush2.bf16.msra.mxu0 0
  %2848 = vmatprep.subr.bf16.mxu0 0
  %2849 = vmatpush2.bf16.msra.mxu0 0
  %2850 = vmatprep.mubr.bf16.mxu0 0
  %2851 = vmatmul.mubr.bf16.gmra.mxu0 %v2807
  %v2852 = vpop.f32.mrf.mxu0
  %v2853 = vadd.f32 0.0, %v2852
  %v2854 = vpop.f32.mrf.mxu0
  %v2855 = vpop.f32.mrf.mxu0
  %v2856 = vadd.f32 0.0, %v2855
  %v2857 = vpop.f32.mrf.mxu0
  %2858 = vmatprep.mubr.bf16.mxu0 0
  %2859 = vmatmul.mubr.bf16.gmra.mxu0 %v2810
  %v2860 = vpop.f32.mrf.mxu0
  %v2861 = vadd.f32 0.0, %v2860
  %v2862 = vpop.f32.mrf.mxu0
  %v2863 = vpop.f32.mrf.mxu0
  %v2864 = vadd.f32 0.0, %v2863
  %v2865 = vpop.f32.mrf.mxu0
  %2866 = vmatprep.mubr.bf16.mxu0 0
  %2867 = vmatmul.mubr.bf16.gmra.mxu0 %v2813
  %v2868 = vpop.f32.mrf.mxu0
  %v2869 = vadd.f32 0.0, %v2868
  %v2870 = vpop.f32.mrf.mxu0
  %v2871 = vpop.f32.mrf.mxu0
  %v2872 = vpop.f32.mrf.mxu0
  %2873 = vdwg.mxu0
  %v2874 = vadd.f32 %v2782, %v2853
  %v2875 = vadd.f32 %v2783, %v2856
  %v2876 = vadd.f32 %v2784, %v2861
  %v2877 = vadd.f32 %v2785, %v2864
  %v2878 = vadd.f32 %v2786, %v2869
  %s2879 = scalar_lea.vmem %s3, 240
  %v2880 = vld [vmem:[%s2879] sm:$0xf]
  %v2881 = vld [vmem:[%s2879 + $0x4] sm:$0xf]
  %v2882 = vld [vmem:[%s2879 + $0x8] sm:$0xf]
  %v2883 = vld [vmem:[%s2879 + $0xc] sm:$0xf]
  %v2884 = vld [vmem:[%s2879 + $0x10] sm:$0x3]
  %v2890 = vunpack.c.l.b16 %v2880
  %v2891 = vunpack.c.l.b16 %v2881
  %v2892 = vunpack.c.l.b16 %v2882
  %v2893 = vunpack.c.l.b16 %v2883
  %v2894 = vunpack.c.l.b16 %v2884
  %v2895 = vpack.c.b16 %v2891, %v2890
  %v2896 = vpack.c.b16 %v2893, %v2892
  %v2897 = vpack.c.b16 %v2894, %v2894
  %v2899 = vsel %vm1809, %v2895, 0
  %v2902 = vsel %vm1809, %v2896, 0
  %v2905 = vsel %vm1809, %v2897, 0
  %v2908 = vsel %vm1296, %v1781, 0
  %2910 = vmatprep.subr.bf16.mxu0 0
  %2911 = vmatpush1.bf16.msra.mxu0 0
  %2912 = vmatprep.subr.bf16.mxu0 0
  %2913 = vmatpush1.bf16.msra.mxu0 0
  %2914 = vmatprep.subr.bf16.mxu0 0
  %2915 = vmatpush1.bf16.msra.mxu0 0
  %2916 = vmatprep.subr.bf16.mxu0 0
  %2917 = vmatpush1.bf16.msra.mxu0 0
  %2918 = vmatprep.subr.bf16.mxu0 0
  %2919 = vmatpush1.bf16.msra.mxu0 0
  %2920 = vmatprep.subr.bf16.mxu0 0
  %2921 = vmatpush1.bf16.msra.mxu0 0
  %2922 = vmatprep.subr.bf16.mxu0 0
  %2923 = vmatpush1.bf16.msra.mxu0 %v2908
  %2924 = vmatprep.subr.bf16.mxu0 0
  %2925 = vmatpush1.bf16.msra.mxu0 %v1765
  %2926 = vmatprep.subr.bf16.mxu0 0
  %2927 = vmatpush2.bf16.msra.mxu0 0
  %2928 = vmatprep.subr.bf16.mxu0 0
  %2929 = vmatpush2.bf16.msra.mxu0 0
  %2930 = vmatprep.subr.bf16.mxu0 0
  %2931 = vmatpush2.bf16.msra.mxu0 0
  %2932 = vmatprep.subr.bf16.mxu0 0
  %2933 = vmatpush2.bf16.msra.mxu0 0
  %2934 = vmatprep.subr.bf16.mxu0 0
  %2935 = vmatpush2.bf16.msra.mxu0 0
  %2936 = vmatprep.subr.bf16.mxu0 0
  %2937 = vmatpush2.bf16.msra.mxu0 0
  %2938 = vmatprep.subr.bf16.mxu0 0
  %2939 = vmatpush2.bf16.msra.mxu0 0
  %2940 = vmatprep.subr.bf16.mxu0 0
  %2941 = vmatpush2.bf16.msra.mxu0 0
  %2942 = vmatprep.mubr.bf16.mxu0 0
  %2943 = vmatmul.mubr.bf16.gmra.mxu0 %v2899
  %v2944 = vpop.f32.mrf.mxu0
  %v2945 = vadd.f32 0.0, %v2944
  %v2946 = vpop.f32.mrf.mxu0
  %v2947 = vpop.f32.mrf.mxu0
  %v2948 = vadd.f32 0.0, %v2947
  %v2949 = vpop.f32.mrf.mxu0
  %2950 = vmatprep.mubr.bf16.mxu0 0
  %2951 = vmatmul.mubr.bf16.gmra.mxu0 %v2902
  %v2952 = vpop.f32.mrf.mxu0
  %v2953 = vadd.f32 0.0, %v2952
  %v2954 = vpop.f32.mrf.mxu0
  %v2955 = vpop.f32.mrf.mxu0
  %v2956 = vadd.f32 0.0, %v2955
  %v2957 = vpop.f32.mrf.mxu0
  %2958 = vmatprep.mubr.bf16.mxu0 0
  %2959 = vmatmul.mubr.bf16.gmra.mxu0 %v2905
  %v2960 = vpop.f32.mrf.mxu0
  %v2961 = vadd.f32 0.0, %v2960
  %v2962 = vpop.f32.mrf.mxu0
  %v2963 = vpop.f32.mrf.mxu0
  %v2964 = vpop.f32.mrf.mxu0
  %2965 = vdwg.mxu0
  %v2966 = vadd.f32 %v2874, %v2945
  %v2967 = vadd.f32 %v2875, %v2948
  %v2968 = vadd.f32 %v2876, %v2953
  %v2969 = vadd.f32 %v2877, %v2956
  %v2970 = vadd.f32 %v2878, %v2961
  %s2971 = scalar_lea.vmem %s3, 260
  %v2972 = vld [vmem:[%s2971] sm:$0xf]
  %v2973 = vld [vmem:[%s2971 + $0x4] sm:$0xf]
  %v2974 = vld [vmem:[%s2971 + $0x8] sm:$0xf]
  %v2975 = vld [vmem:[%s2971 + $0xc] sm:$0xf]
  %v2976 = vld [vmem:[%s2971 + $0x10] sm:$0x3]
  %v2982 = vunpack.c.l.b16 %v2972
  %v2983 = vunpack.c.l.b16 %v2973
  %v2984 = vunpack.c.l.b16 %v2974
  %v2985 = vunpack.c.l.b16 %v2975
  %v2986 = vunpack.c.l.b16 %v2976
  %v2987 = vpack.c.b16 %v2983, %v2982
  %v2988 = vpack.c.b16 %v2985, %v2984
  %v2989 = vpack.c.b16 %v2986, %v2986
  %v2991 = vsel %vm1809, %v2987, 0
  %v2994 = vsel %vm1809, %v2988, 0
  %v2997 = vsel %vm1809, %v2989, 0
  %v3000 = vsel %vm1296, %v1782, 0
  %3002 = vmatprep.subr.bf16.mxu0 0
  %3003 = vmatpush1.bf16.msra.mxu0 0
  %3004 = vmatprep.subr.bf16.mxu0 0
  %3005 = vmatpush1.bf16.msra.mxu0 0
  %3006 = vmatprep.subr.bf16.mxu0 0
  %3007 = vmatpush1.bf16.msra.mxu0 0
  %3008 = vmatprep.subr.bf16.mxu0 0
  %3009 = vmatpush1.bf16.msra.mxu0 0
  %3010 = vmatprep.subr.bf16.mxu0 0
  %3011 = vmatpush1.bf16.msra.mxu0 0
  %3012 = vmatprep.subr.bf16.mxu0 0
  %3013 = vmatpush1.bf16.msra.mxu0 0
  %3014 = vmatprep.subr.bf16.mxu0 0
  %3015 = vmatpush1.bf16.msra.mxu0 %v3000
  %3016 = vmatprep.subr.bf16.mxu0 0
  %3017 = vmatpush1.bf16.msra.mxu0 %v1766
  %3018 = vmatprep.subr.bf16.mxu0 0
  %3019 = vmatpush2.bf16.msra.mxu0 0
  %3020 = vmatprep.subr.bf16.mxu0 0
  %3021 = vmatpush2.bf16.msra.mxu0 0
  %3022 = vmatprep.subr.bf16.mxu0 0
  %3023 = vmatpush2.bf16.msra.mxu0 0
  %3024 = vmatprep.subr.bf16.mxu0 0
  %3025 = vmatpush2.bf16.msra.mxu0 0
  %3026 = vmatprep.subr.bf16.mxu0 0
  %3027 = vmatpush2.bf16.msra.mxu0 0
  %3028 = vmatprep.subr.bf16.mxu0 0
  %3029 = vmatpush2.bf16.msra.mxu0 0
  %3030 = vmatprep.subr.bf16.mxu0 0
  %3031 = vmatpush2.bf16.msra.mxu0 0
  %3032 = vmatprep.subr.bf16.mxu0 0
  %3033 = vmatpush2.bf16.msra.mxu0 0
  %3034 = vmatprep.mubr.bf16.mxu0 0
  %3035 = vmatmul.mubr.bf16.gmra.mxu0 %v2991
  %v3036 = vpop.f32.mrf.mxu0
  %v3037 = vadd.f32 0.0, %v3036
  %v3038 = vpop.f32.mrf.mxu0
  %v3039 = vpop.f32.mrf.mxu0
  %v3040 = vadd.f32 0.0, %v3039
  %v3041 = vpop.f32.mrf.mxu0
  %3042 = vmatprep.mubr.bf16.mxu0 0
  %3043 = vmatmul.mubr.bf16.gmra.mxu0 %v2994
  %v3044 = vpop.f32.mrf.mxu0
  %v3045 = vadd.f32 0.0, %v3044
  %v3046 = vpop.f32.mrf.mxu0
  %v3047 = vpop.f32.mrf.mxu0
  %v3048 = vadd.f32 0.0, %v3047
  %v3049 = vpop.f32.mrf.mxu0
  %3050 = vmatprep.mubr.bf16.mxu0 0
  %3051 = vmatmul.mubr.bf16.gmra.mxu0 %v2997
  %v3052 = vpop.f32.mrf.mxu0
  %v3053 = vadd.f32 0.0, %v3052
  %v3054 = vpop.f32.mrf.mxu0
  %v3055 = vpop.f32.mrf.mxu0
  %v3056 = vpop.f32.mrf.mxu0
  %3057 = vdwg.mxu0
  %v3058 = vadd.f32 %v2966, %v3037
  %v3059 = vadd.f32 %v2967, %v3040
  %v3060 = vadd.f32 %v2968, %v3045
  %v3061 = vadd.f32 %v2969, %v3048
  %v3062 = vadd.f32 %v2970, %v3053
  %s3063 = scalar_lea.vmem %s3, 280
  %v3064 = vld [vmem:[%s3063] sm:$0xf]
  %v3065 = vld [vmem:[%s3063 + $0x4] sm:$0xf]
  %v3066 = vld [vmem:[%s3063 + $0x8] sm:$0xf]
  %v3067 = vld [vmem:[%s3063 + $0xc] sm:$0xf]
  %v3068 = vld [vmem:[%s3063 + $0x10] sm:$0x3]
  %v3074 = vunpack.c.l.b16 %v3064
  %v3075 = vunpack.c.l.b16 %v3065
  %v3076 = vunpack.c.l.b16 %v3066
  %v3077 = vunpack.c.l.b16 %v3067
  %v3078 = vunpack.c.l.b16 %v3068
  %v3079 = vpack.c.b16 %v3075, %v3074
  %v3080 = vpack.c.b16 %v3077, %v3076
  %v3081 = vpack.c.b16 %v3078, %v3078
  %v3083 = vsel %vm1809, %v3079, 0
  %v3086 = vsel %vm1809, %v3080, 0
  %v3089 = vsel %vm1809, %v3081, 0
  %v3092 = vsel %vm1296, %v1783, 0
  %3094 = vmatprep.subr.bf16.mxu0 0
  %3095 = vmatpush1.bf16.msra.mxu0 0
  %3096 = vmatprep.subr.bf16.mxu0 0
  %3097 = vmatpush1.bf16.msra.mxu0 0
  %3098 = vmatprep.subr.bf16.mxu0 0
  %3099 = vmatpush1.bf16.msra.mxu0 0
  %3100 = vmatprep.subr.bf16.mxu0 0
  %3101 = vmatpush1.bf16.msra.mxu0 0
  %3102 = vmatprep.subr.bf16.mxu0 0
  %3103 = vmatpush1.bf16.msra.mxu0 0
  %3104 = vmatprep.subr.bf16.mxu0 0
  %3105 = vmatpush1.bf16.msra.mxu0 0
  %3106 = vmatprep.subr.bf16.mxu0 0
  %3107 = vmatpush1.bf16.msra.mxu0 %v3092
  %3108 = vmatprep.subr.bf16.mxu0 0
  %3109 = vmatpush1.bf16.msra.mxu0 %v1767
  %3110 = vmatprep.subr.bf16.mxu0 0
  %3111 = vmatpush2.bf16.msra.mxu0 0
  %3112 = vmatprep.subr.bf16.mxu0 0
  %3113 = vmatpush2.bf16.msra.mxu0 0
  %3114 = vmatprep.subr.bf16.mxu0 0
  %3115 = vmatpush2.bf16.msra.mxu0 0
  %3116 = vmatprep.subr.bf16.mxu0 0
  %3117 = vmatpush2.bf16.msra.mxu0 0
  %3118 = vmatprep.subr.bf16.mxu0 0
  %3119 = vmatpush2.bf16.msra.mxu0 0
  %3120 = vmatprep.subr.bf16.mxu0 0
  %3121 = vmatpush2.bf16.msra.mxu0 0
  %3122 = vmatprep.subr.bf16.mxu0 0
  %3123 = vmatpush2.bf16.msra.mxu0 0
  %3124 = vmatprep.subr.bf16.mxu0 0
  %3125 = vmatpush2.bf16.msra.mxu0 0
  %3126 = vmatprep.mubr.bf16.mxu0 0
  %3127 = vmatmul.mubr.bf16.gmra.mxu0 %v3083
  %v3128 = vpop.f32.mrf.mxu0
  %v3129 = vadd.f32 0.0, %v3128
  %v3130 = vpop.f32.mrf.mxu0
  %v3131 = vpop.f32.mrf.mxu0
  %v3132 = vadd.f32 0.0, %v3131
  %v3133 = vpop.f32.mrf.mxu0
  %3134 = vmatprep.mubr.bf16.mxu0 0
  %3135 = vmatmul.mubr.bf16.gmra.mxu0 %v3086
  %v3136 = vpop.f32.mrf.mxu0
  %v3137 = vadd.f32 0.0, %v3136
  %v3138 = vpop.f32.mrf.mxu0
  %v3139 = vpop.f32.mrf.mxu0
  %v3140 = vadd.f32 0.0, %v3139
  %v3141 = vpop.f32.mrf.mxu0
  %3142 = vmatprep.mubr.bf16.mxu0 0
  %3143 = vmatmul.mubr.bf16.gmra.mxu0 %v3089
  %v3144 = vpop.f32.mrf.mxu0
  %v3145 = vadd.f32 0.0, %v3144
  %v3146 = vpop.f32.mrf.mxu0
  %v3147 = vpop.f32.mrf.mxu0
  %v3148 = vpop.f32.mrf.mxu0
  %3149 = vdwg.mxu0
  %v3150 = vadd.f32 %v3058, %v3129
  %v3151 = vadd.f32 %v3059, %v3132
  %v3152 = vadd.f32 %v3060, %v3137
  %v3153 = vadd.f32 %v3061, %v3140
  %v3154 = vadd.f32 %v3062, %v3145
  %s3155 = scalar_lea.vmem %s3, 300
  %v3156 = vld [vmem:[%s3155] sm:$0xf]
  %v3157 = vld [vmem:[%s3155 + $0x4] sm:$0xf]
  %v3158 = vld [vmem:[%s3155 + $0x8] sm:$0xf]
  %v3159 = vld [vmem:[%s3155 + $0xc] sm:$0xf]
  %v3160 = vld [vmem:[%s3155 + $0x10] sm:$0x3]
  %v3166 = vunpack.c.l.b16 %v3156
  %v3167 = vunpack.c.l.b16 %v3157
  %v3168 = vunpack.c.l.b16 %v3158
  %v3169 = vunpack.c.l.b16 %v3159
  %v3170 = vunpack.c.l.b16 %v3160
  %v3171 = vpack.c.b16 %v3167, %v3166
  %v3172 = vpack.c.b16 %v3169, %v3168
  %v3173 = vpack.c.b16 %v3170, %v3170
  %v3175 = vsel %vm1809, %v3171, 0
  %v3178 = vsel %vm1809, %v3172, 0
  %v3181 = vsel %vm1809, %v3173, 0
  %v3184 = vsel %vm1296, %v1784, 0
  %3186 = vmatprep.subr.bf16.mxu0 0
  %3187 = vmatpush1.bf16.msra.mxu0 0
  %3188 = vmatprep.subr.bf16.mxu0 0
  %3189 = vmatpush1.bf16.msra.mxu0 0
  %3190 = vmatprep.subr.bf16.mxu0 0
  %3191 = vmatpush1.bf16.msra.mxu0 0
  %3192 = vmatprep.subr.bf16.mxu0 0
  %3193 = vmatpush1.bf16.msra.mxu0 0
  %3194 = vmatprep.subr.bf16.mxu0 0
  %3195 = vmatpush1.bf16.msra.mxu0 0
  %3196 = vmatprep.subr.bf16.mxu0 0
  %3197 = vmatpush1.bf16.msra.mxu0 0
  %3198 = vmatprep.subr.bf16.mxu0 0
  %3199 = vmatpush1.bf16.msra.mxu0 %v3184
  %3200 = vmatprep.subr.bf16.mxu0 0
  %3201 = vmatpush1.bf16.msra.mxu0 %v1768
  %3202 = vmatprep.subr.bf16.mxu0 0
  %3203 = vmatpush2.bf16.msra.mxu0 0
  %3204 = vmatprep.subr.bf16.mxu0 0
  %3205 = vmatpush2.bf16.msra.mxu0 0
  %3206 = vmatprep.subr.bf16.mxu0 0
  %3207 = vmatpush2.bf16.msra.mxu0 0
  %3208 = vmatprep.subr.bf16.mxu0 0
  %3209 = vmatpush2.bf16.msra.mxu0 0
  %3210 = vmatprep.subr.bf16.mxu0 0
  %3211 = vmatpush2.bf16.msra.mxu0 0
  %3212 = vmatprep.subr.bf16.mxu0 0
  %3213 = vmatpush2.bf16.msra.mxu0 0
  %3214 = vmatprep.subr.bf16.mxu0 0
  %3215 = vmatpush2.bf16.msra.mxu0 0
  %3216 = vmatprep.subr.bf16.mxu0 0
  %3217 = vmatpush2.bf16.msra.mxu0 0
  %3218 = vmatprep.mubr.bf16.mxu0 0
  %3219 = vmatmul.mubr.bf16.gmra.mxu0 %v3175
  %v3220 = vpop.f32.mrf.mxu0
  %v3221 = vadd.f32 0.0, %v3220
  %v3222 = vpop.f32.mrf.mxu0
  %v3223 = vpop.f32.mrf.mxu0
  %v3224 = vadd.f32 0.0, %v3223
  %v3225 = vpop.f32.mrf.mxu0
  %3226 = vmatprep.mubr.bf16.mxu0 0
  %3227 = vmatmul.mubr.bf16.gmra.mxu0 %v3178
  %v3228 = vpop.f32.mrf.mxu0
  %v3229 = vadd.f32 0.0, %v3228
  %v3230 = vpop.f32.mrf.mxu0
  %v3231 = vpop.f32.mrf.mxu0
  %v3232 = vadd.f32 0.0, %v3231
  %v3233 = vpop.f32.mrf.mxu0
  %3234 = vmatprep.mubr.bf16.mxu0 0
  %3235 = vmatmul.mubr.bf16.gmra.mxu0 %v3181
  %v3236 = vpop.f32.mrf.mxu0
  %v3237 = vadd.f32 0.0, %v3236
  %v3238 = vpop.f32.mrf.mxu0
  %v3239 = vpop.f32.mrf.mxu0
  %v3240 = vpop.f32.mrf.mxu0
  %3241 = vdwg.mxu0
  %v3242 = vadd.f32 %v3150, %v3221
  %v3243 = vadd.f32 %v3151, %v3224
  %v3244 = vadd.f32 %v3152, %v3229
  %v3245 = vadd.f32 %v3153, %v3232
  %v3246 = vadd.f32 %v3154, %v3237
  %v3247 = vld [vmem:[%s7] sm:$0xff]
  %v3248 = vld [vmem:[%s7 + $0x8] sm:$0xff]
  %v3249 = vld [vmem:[%s7 + $0x10] sm:$0xff]
  %v3250 = vld [vmem:[%s7 + $0x18] sm:$0xff]
  %v3251 = vld [vmem:[%s7 + $0x20] sm:$0xf]
  %3252 = vadd.xlane.f32.xlu0 %v3242
  %v3253 = vpop.xlane.xlu0 %3252
  %3254 = vadd.xlane.f32.xlu0 %v3243
  %v3255 = vpop.xlane.xlu0 %3254
  %3256 = vadd.xlane.f32.xlu0 %v3244
  %v3257 = vpop.xlane.xlu0 %3256
  %3258 = vadd.xlane.f32.xlu0 %v3245
  %v3259 = vpop.xlane.xlu0 %3258
  %vm3260 = vcmask 1043456
  %v3261 = vsel %vm3260, %v3246, 0.0
  %3262 = vadd.xlane.f32.xlu0 %v3261
  %v3263 = vpop.xlane.xlu0 %3262
  %v3264 = vmul.f32 %v3253, 0.02
  %v3265 = vmul.f32 %v3255, 0.02
  %v3266 = vmul.f32 %v3257, 0.02
  %v3267 = vmul.f32 %v3259, 0.02
  %v3268 = vmul.f32 %v3263, 0.02
  %v3269 = vmul.f32 %v3242, %v3242
  %v3270 = vmul.f32 %v3243, %v3243
  %v3271 = vmul.f32 %v3244, %v3244
  %v3272 = vmul.f32 %v3245, %v3245
  %v3273 = vmul.f32 %v3246, %v3246
  %3274 = vadd.xlane.f32.xlu0 %v3269
  %v3275 = vpop.xlane.xlu0 %3274
  %3276 = vadd.xlane.f32.xlu0 %v3270
  %v3277 = vpop.xlane.xlu0 %3276
  %3278 = vadd.xlane.f32.xlu0 %v3271
  %v3279 = vpop.xlane.xlu0 %3278
  %3280 = vadd.xlane.f32.xlu0 %v3272
  %v3281 = vpop.xlane.xlu0 %3280
  %v3282 = vsel %vm3260, %v3273, 0.0
  %3283 = vadd.xlane.f32.xlu0 %v3282
  %v3284 = vpop.xlane.xlu0 %3283
  %v3285 = vmul.f32 %v3275, 0.02
  %v3286 = vmul.f32 %v3277, 0.02
  %v3287 = vmul.f32 %v3279, 0.02
  %v3288 = vmul.f32 %v3281, 0.02
  %v3289 = vmul.f32 %v3284, 0.02
  %v3290 = vmul.f32 %v3264, %v3264
  %v3291 = vmul.f32 %v3265, %v3265
  %v3292 = vmul.f32 %v3266, %v3266
  %v3293 = vmul.f32 %v3267, %v3267
  %v3294 = vmul.f32 %v3268, %v3268
  %v3295 = vsub.f32 %v3285, %v3290
  %v3296 = vsub.f32 %v3286, %v3291
  %v3297 = vsub.f32 %v3287, %v3292
  %v3298 = vsub.f32 %v3288, %v3293
  %v3299 = vsub.f32 %v3289, %v3294
  %v3300 = vsub.f32 %v3242, %v3264
  %v3301 = vsub.f32 %v3243, %v3265
  %v3302 = vsub.f32 %v3244, %v3266
  %v3303 = vsub.f32 %v3245, %v3267
  %v3304 = vsub.f32 %v3246, %v3268
  %v3305 = vadd.f32 %v3295, 1e-05
  %v3306 = vadd.f32 %v3296, 1e-05
  %v3307 = vadd.f32 %v3297, 1e-05
  %v3308 = vadd.f32 %v3298, 1e-05
  %v3309 = vadd.f32 %v3299, 1e-05
  %v3310 = vrsqrt.pop %v3305
  %v3311 = vrsqrt.pop %v3306
  %v3312 = vrsqrt.pop %v3307
  %v3313 = vrsqrt.pop %v3308
  %v3314 = vrsqrt.pop %v3309
  %v3315 = vmul.f32 %v3300, %v3310
  %v3316 = vmul.f32 %v3301, %v3311
  %v3317 = vmul.f32 %v3302, %v3312
  %v3318 = vmul.f32 %v3303, %v3313
  %v3319 = vmul.f32 %v3304, %v3314
  %3321 = vset.pattern.permute.xlu0 0
  %3322 = vperm.xlu0 %3321, %v3247
  %v3323 = vpop.permute.xlu0 %3322
  %3326 = vset.pattern.permute.xlu0 0
  %3327 = vperm.xlu0 %3326, %v3248
  %v3328 = vpop.permute.xlu0 %3327
  %3331 = vset.pattern.permute.xlu0 0
  %3332 = vperm.xlu0 %3331, %v3249
  %v3333 = vpop.permute.xlu0 %3332
  %3336 = vset.pattern.permute.xlu0 0
  %3337 = vperm.xlu0 %3336, %v3250
  %v3338 = vpop.permute.xlu0 %3337
  %3341 = vset.pattern.permute.xlu0 0
  %3342 = vperm.xlu0 %3341, %v3251
  %v3343 = vpop.permute.xlu0 %3342
  %v3345 = vmul.f32 %v3315, %v3323
  %v3346 = vmul.f32 %v3316, %v3328
  %v3347 = vmul.f32 %v3317, %v3333
  %v3348 = vmul.f32 %v3318, %v3338
  %v3349 = vmul.f32 %v3319, %v3343
  %3350 = vset.pattern.permute.xlu0 1
  %3351 = vperm.xlu0 %3350, %v3247
  %v3352 = vpop.permute.xlu0 %3351
  %3354 = vset.pattern.permute.xlu0 1
  %3355 = vperm.xlu0 %3354, %v3248
  %v3356 = vpop.permute.xlu0 %3355
  %3358 = vset.pattern.permute.xlu0 1
  %3359 = vperm.xlu0 %3358, %v3249
  %v3360 = vpop.permute.xlu0 %3359
  %3362 = vset.pattern.permute.xlu0 1
  %3363 = vperm.xlu0 %3362, %v3250
  %v3364 = vpop.permute.xlu0 %3363
  %3366 = vset.pattern.permute.xlu0 1
  %3367 = vperm.xlu0 %3366, %v3251
  %v3368 = vpop.permute.xlu0 %3367
  %v3370 = vadd.f32 %v3345, %v3352
  %v3371 = vadd.f32 %v3346, %v3356
  %v3372 = vadd.f32 %v3347, %v3360
  %v3373 = vadd.f32 %v3348, %v3364
  %v3374 = vadd.f32 %v3349, %v3368
  %vm3375 = vcmp.gt.f32.partialorder %v3370, 0.0
  %vm3376 = vcmp.gt.f32.partialorder %v3371, 0.0
  %vm3377 = vcmp.gt.f32.partialorder %v3372, 0.0
  %vm3378 = vcmp.gt.f32.partialorder %v3373, 0.0
  %vm3379 = vcmp.gt.f32.partialorder %v3374, 0.0
  %v3380 = vmul.f32 %v3370, 0.01
  %v3381 = vmul.f32 %v3371, 0.01
  %v3382 = vmul.f32 %v3372, 0.01
  %v3383 = vmul.f32 %v3373, 0.01
  %v3384 = vmul.f32 %v3374, 0.01
  %v3385 = vsel %vm3375, %v3370, %v3380
  %v3386 = vsel %vm3376, %v3371, %v3381
  %v3387 = vsel %vm3377, %v3372, %v3382
  %v3388 = vsel %vm3378, %v3373, %v3383
  %v3389 = vsel %vm3379, %v3374, %v3384
  %v3390 = vpack.c.bf16 %v3386, %v3385
  %v3391 = vpack.c.bf16 %v3388, %v3387
  %v3392 = vpack.c.bf16 %v3389, %v3389
  %v3393 = vld [vmem:[%s4] sm:$0xff]
  %v3394 = vld [vmem:[%s4 + $0x8] sm:$0xff]
  %v3395 = vld [vmem:[%s4 + $0x10] sm:$0xff]
  %v3396 = vld [vmem:[%s4 + $0x18] sm:$0xff]
  %v3397 = vld [vmem:[%s4 + $0x20] sm:$0xff]
  %v3398 = vld [vmem:[%s4 + $0x28] sm:$0xff]
  %v3399 = vld [vmem:[%s4 + $0x30] sm:$0xff]
  %v3400 = vld [vmem:[%s4 + $0x38] sm:$0xff]
  %v3401 = vld [vmem:[%s4 + $0x40] sm:$0xff]
  %v3402 = vld [vmem:[%s4 + $0x48] sm:$0xff]
  %v3403 = vld [vmem:[%s4 + $0x50] sm:$0xff]
  %v3404 = vld [vmem:[%s4 + $0x58] sm:$0xff]
  %v3405 = vld [vmem:[%s4 + $0x60] sm:$0xff]
  %v3406 = vld [vmem:[%s4 + $0x68] sm:$0xff]
  %v3407 = vld [vmem:[%s4 + $0x70] sm:$0xff]
  %v3408 = vld [vmem:[%s4 + $0x78] sm:$0xff]
  %v3409 = vld [vmem:[%s4 + $0x80] sm:$0xff]
  %v3410 = vld [vmem:[%s4 + $0x88] sm:$0xff]
  %v3411 = vld [vmem:[%s4 + $0x90] sm:$0xff]
  %v3412 = vld [vmem:[%s4 + $0x98] sm:$0xff]
  %v3413 = vld [vmem:[%s4 + $0xa0] sm:$0xff]
  %v3414 = vld [vmem:[%s4 + $0xa8] sm:$0xff]
  %v3415 = vld [vmem:[%s4 + $0xb0] sm:$0xff]
  %v3416 = vld [vmem:[%s4 + $0xb8] sm:$0xff]
  %v3417 = vld [vmem:[%s4 + $0xc0] sm:$0xff]
  %v3418 = vld [vmem:[%s4 + $0xc8] sm:$0xff]
  %v3419 = vld [vmem:[%s4 + $0xd0] sm:$0xff]
  %v3420 = vld [vmem:[%s4 + $0xd8] sm:$0xff]
  %v3421 = vld [vmem:[%s4 + $0xe0] sm:$0xff]
  %v3422 = vld [vmem:[%s4 + $0xe8] sm:$0xff]
  %v3423 = vld [vmem:[%s4 + $0xf0] sm:$0xff]
  %v3424 = vld [vmem:[%s4 + $0xf8] sm:$0xff]
  %v3425 = vld [vmem:[%s4 + $0x100] sm:$0xff]
  %v3426 = vld [vmem:[%s4 + $0x108] sm:$0xff]
  %v3427 = vld [vmem:[%s4 + $0x110] sm:$0xff]
  %v3428 = vld [vmem:[%s4 + $0x118] sm:$0xff]
  %v3429 = vld [vmem:[%s4 + $0x120] sm:$0xff]
  %v3430 = vld [vmem:[%s4 + $0x128] sm:$0xff]
  %v3431 = vld [vmem:[%s4 + $0x130] sm:$0xff]
  %v3432 = vld [vmem:[%s4 + $0x138] sm:$0xff]
  %v3433 = vld [vmem:[%s4 + $0x140] sm:$0xff]
  %v3434 = vld [vmem:[%s4 + $0x148] sm:$0xff]
  %v3435 = vld [vmem:[%s4 + $0x150] sm:$0xff]
  %v3436 = vld [vmem:[%s4 + $0x158] sm:$0xff]
  %v3437 = vld [vmem:[%s4 + $0x160] sm:$0xff]
  %v3438 = vld [vmem:[%s4 + $0x168] sm:$0xff]
  %v3439 = vld [vmem:[%s4 + $0x170] sm:$0xff]
  %v3440 = vld [vmem:[%s4 + $0x178] sm:$0xff]
  %v3441 = vld [vmem:[%s4 + $0x180] sm:$0xff]
  %v3442 = vld [vmem:[%s4 + $0x188] sm:$0xff]
  %v3443 = vld [vmem:[%s4 + $0x190] sm:$0xff]
  %v3444 = vld [vmem:[%s4 + $0x198] sm:$0xff]
  %v3445 = vld [vmem:[%s4 + $0x1a0] sm:$0xff]
  %v3446 = vld [vmem:[%s4 + $0x1a8] sm:$0xff]
  %v3447 = vld [vmem:[%s4 + $0x1b0] sm:$0xff]
  %v3448 = vld [vmem:[%s4 + $0x1b8] sm:$0xff]
  %v3449 = vld [vmem:[%s4 + $0x1c0] sm:$0xff]
  %v3450 = vld [vmem:[%s4 + $0x1c8] sm:$0xff]
  %v3451 = vld [vmem:[%s4 + $0x1d0] sm:$0xff]
  %v3452 = vld [vmem:[%s4 + $0x1d8] sm:$0xff]
  %v3453 = vld [vmem:[%s4 + $0x1e0] sm:$0xff]
  %v3454 = vld [vmem:[%s4 + $0x1e8] sm:$0xff]
  %v3455 = vld [vmem:[%s4 + $0x1f0] sm:$0xff]
  %v3456 = vld [vmem:[%s4 + $0x1f8] sm:$0xff]
  %v3457 = vld [vmem:[%s4 + $0x200] sm:$0xff]
  %v3458 = vld [vmem:[%s4 + $0x208] sm:$0xff]
  %v3459 = vld [vmem:[%s4 + $0x210] sm:$0xff]
  %v3460 = vld [vmem:[%s4 + $0x218] sm:$0xff]
  %v3461 = vld [vmem:[%s4 + $0x220] sm:$0xff]
  %v3462 = vld [vmem:[%s4 + $0x228] sm:$0xff]
  %v3463 = vld [vmem:[%s4 + $0x230] sm:$0xff]
  %v3464 = vld [vmem:[%s4 + $0x238] sm:$0xff]
  %v3465 = vld [vmem:[%s4 + $0x240] sm:$0xff]
  %v3466 = vld [vmem:[%s4 + $0x248] sm:$0xff]
  %v3467 = vld [vmem:[%s4 + $0x250] sm:$0xff]
  %v3468 = vld [vmem:[%s4 + $0x258] sm:$0xff]
  %v3469 = vld [vmem:[%s4 + $0x260] sm:$0xff]
  %v3470 = vld [vmem:[%s4 + $0x268] sm:$0xff]
  %v3471 = vld [vmem:[%s4 + $0x270] sm:$0xff]
  %v3472 = vld [vmem:[%s4 + $0x278] sm:$0xff]
  %v3473 = vld [vmem:[%s4 + $0x280] sm:$0xff]
  %v3474 = vld [vmem:[%s4 + $0x288] sm:$0xff]
  %v3475 = vld [vmem:[%s4 + $0x290] sm:$0xff]
  %v3476 = vld [vmem:[%s4 + $0x298] sm:$0xff]
  %v3477 = vld [vmem:[%s4 + $0x2a0] sm:$0xff]
  %v3478 = vld [vmem:[%s4 + $0x2a8] sm:$0xff]
  %v3479 = vld [vmem:[%s4 + $0x2b0] sm:$0xff]
  %v3480 = vld [vmem:[%s4 + $0x2b8] sm:$0xff]
  %v3481 = vld [vmem:[%s4 + $0x2c0] sm:$0xff]
  %v3482 = vld [vmem:[%s4 + $0x2c8] sm:$0xff]
  %v3483 = vld [vmem:[%s4 + $0x2d0] sm:$0xff]
  %v3484 = vld [vmem:[%s4 + $0x2d8] sm:$0xff]
  %v3485 = vld [vmem:[%s4 + $0x2e0] sm:$0xff]
  %v3486 = vld [vmem:[%s4 + $0x2e8] sm:$0xff]
  %v3487 = vld [vmem:[%s4 + $0x2f0] sm:$0xff]
  %v3488 = vld [vmem:[%s4 + $0x2f8] sm:$0xff]
  %v3489 = vld [vmem:[%s4 + $0x300] sm:$0xff]
  %v3490 = vld [vmem:[%s4 + $0x308] sm:$0xff]
  %v3491 = vld [vmem:[%s4 + $0x310] sm:$0xff]
  %v3492 = vld [vmem:[%s4 + $0x318] sm:$0xff]
  %v3493 = vld [vmem:[%s4 + $0x320] sm:$0xff]
  %v3494 = vld [vmem:[%s4 + $0x328] sm:$0xff]
  %v3495 = vld [vmem:[%s4 + $0x330] sm:$0xff]
  %v3496 = vld [vmem:[%s4 + $0x338] sm:$0xff]
  %v3497 = vld [vmem:[%s4 + $0x340] sm:$0xff]
  %v3498 = vld [vmem:[%s4 + $0x348] sm:$0xff]
  %v3499 = vld [vmem:[%s4 + $0x350] sm:$0xff]
  %v3500 = vld [vmem:[%s4 + $0x358] sm:$0xff]
  %v3501 = vld [vmem:[%s4 + $0x360] sm:$0xff]
  %v3502 = vld [vmem:[%s4 + $0x368] sm:$0xff]
  %v3503 = vld [vmem:[%s4 + $0x370] sm:$0xff]
  %v3504 = vld [vmem:[%s4 + $0x378] sm:$0xff]
  %v3505 = vld [vmem:[%s4 + $0x380] sm:$0xff]
  %v3506 = vld [vmem:[%s4 + $0x388] sm:$0xff]
  %v3507 = vld [vmem:[%s4 + $0x390] sm:$0xff]
  %v3508 = vld [vmem:[%s4 + $0x398] sm:$0xff]
  %v3509 = vld [vmem:[%s4 + $0x3a0] sm:$0xff]
  %v3510 = vld [vmem:[%s4 + $0x3a8] sm:$0xff]
  %v3511 = vld [vmem:[%s4 + $0x3b0] sm:$0xff]
  %v3512 = vld [vmem:[%s4 + $0x3b8] sm:$0xff]
  %v3513 = vld [vmem:[%s4 + $0x3c0] sm:$0xff]
  %v3514 = vld [vmem:[%s4 + $0x3c8] sm:$0xff]
  %v3515 = vld [vmem:[%s4 + $0x3d0] sm:$0xff]
  %v3516 = vld [vmem:[%s4 + $0x3d8] sm:$0xff]
  %v3517 = vld [vmem:[%s4 + $0x3e0] sm:$0xff]
  %v3518 = vld [vmem:[%s4 + $0x3e8] sm:$0xff]
  %v3519 = vld [vmem:[%s4 + $0x3f0] sm:$0xff]
  %v3520 = vld [vmem:[%s4 + $0x3f8] sm:$0xff]
  %v3649 = vunpack.c.l.b16 %v3393
  %v3650 = vunpack.c.h.b16 %v3393
  %v3651 = vunpack.c.l.b16 %v3394
  %v3652 = vunpack.c.h.b16 %v3394
  %v3653 = vunpack.c.l.b16 %v3395
  %v3654 = vunpack.c.h.b16 %v3395
  %v3655 = vunpack.c.l.b16 %v3396
  %v3656 = vunpack.c.h.b16 %v3396
  %v3657 = vunpack.c.l.b16 %v3397
  %v3658 = vunpack.c.h.b16 %v3397
  %v3659 = vunpack.c.l.b16 %v3398
  %v3660 = vunpack.c.h.b16 %v3398
  %v3661 = vunpack.c.l.b16 %v3399
  %v3662 = vunpack.c.h.b16 %v3399
  %v3663 = vunpack.c.l.b16 %v3400
  %v3664 = vunpack.c.h.b16 %v3400
  %v3665 = vunpack.c.l.b16 %v3401
  %v3666 = vunpack.c.h.b16 %v3401
  %v3667 = vunpack.c.l.b16 %v3402
  %v3668 = vunpack.c.h.b16 %v3402
  %v3669 = vunpack.c.l.b16 %v3403
  %v3670 = vunpack.c.h.b16 %v3403
  %v3671 = vunpack.c.l.b16 %v3404
  %v3672 = vunpack.c.h.b16 %v3404
  %v3673 = vunpack.c.l.b16 %v3405
  %v3674 = vunpack.c.h.b16 %v3405
  %v3675 = vunpack.c.l.b16 %v3406
  %v3676 = vunpack.c.h.b16 %v3406
  %v3677 = vunpack.c.l.b16 %v3407
  %v3678 = vunpack.c.h.b16 %v3407
  %v3679 = vunpack.c.l.b16 %v3408
  %v3680 = vunpack.c.h.b16 %v3408
  %v3681 = vunpack.c.l.b16 %v3409
  %v3682 = vunpack.c.h.b16 %v3409
  %v3683 = vunpack.c.l.b16 %v3410
  %v3684 = vunpack.c.h.b16 %v3410
  %v3685 = vunpack.c.l.b16 %v3411
  %v3686 = vunpack.c.h.b16 %v3411
  %v3687 = vunpack.c.l.b16 %v3412
  %v3688 = vunpack.c.h.b16 %v3412
  %v3689 = vunpack.c.l.b16 %v3413
  %v3690 = vunpack.c.h.b16 %v3413
  %v3691 = vunpack.c.l.b16 %v3414
  %v3692 = vunpack.c.h.b16 %v3414
  %v3693 = vunpack.c.l.b16 %v3415
  %v3694 = vunpack.c.h.b16 %v3415
  %v3695 = vunpack.c.l.b16 %v3416
  %v3696 = vunpack.c.h.b16 %v3416
  %v3697 = vunpack.c.l.b16 %v3417
  %v3698 = vunpack.c.h.b16 %v3417
  %v3699 = vunpack.c.l.b16 %v3418
  %v3700 = vunpack.c.h.b16 %v3418
  %v3701 = vunpack.c.l.b16 %v3419
  %v3702 = vunpack.c.h.b16 %v3419
  %v3703 = vunpack.c.l.b16 %v3420
  %v3704 = vunpack.c.h.b16 %v3420
  %v3705 = vunpack.c.l.b16 %v3421
  %v3706 = vunpack.c.h.b16 %v3421
  %v3707 = vunpack.c.l.b16 %v3422
  %v3708 = vunpack.c.h.b16 %v3422
  %v3709 = vunpack.c.l.b16 %v3423
  %v3710 = vunpack.c.h.b16 %v3423
  %v3711 = vunpack.c.l.b16 %v3424
  %v3712 = vunpack.c.h.b16 %v3424
  %v3713 = vunpack.c.l.b16 %v3425
  %v3714 = vunpack.c.h.b16 %v3425
  %v3715 = vunpack.c.l.b16 %v3426
  %v3716 = vunpack.c.h.b16 %v3426
  %v3717 = vunpack.c.l.b16 %v3427
  %v3718 = vunpack.c.h.b16 %v3427
  %v3719 = vunpack.c.l.b16 %v3428
  %v3720 = vunpack.c.h.b16 %v3428
  %v3721 = vunpack.c.l.b16 %v3429
  %v3722 = vunpack.c.h.b16 %v3429
  %v3723 = vunpack.c.l.b16 %v3430
  %v3724 = vunpack.c.h.b16 %v3430
  %v3725 = vunpack.c.l.b16 %v3431
  %v3726 = vunpack.c.h.b16 %v3431
  %v3727 = vunpack.c.l.b16 %v3432
  %v3728 = vunpack.c.h.b16 %v3432
  %v3729 = vunpack.c.l.b16 %v3433
  %v3730 = vunpack.c.h.b16 %v3433
  %v3731 = vunpack.c.l.b16 %v3434
  %v3732 = vunpack.c.h.b16 %v3434
  %v3733 = vunpack.c.l.b16 %v3435
  %v3734 = vunpack.c.h.b16 %v3435
  %v3735 = vunpack.c.l.b16 %v3436
  %v3736 = vunpack.c.h.b16 %v3436
  %v3737 = vunpack.c.l.b16 %v3437
  %v3738 = vunpack.c.h.b16 %v3437
  %v3739 = vunpack.c.l.b16 %v3438
  %v3740 = vunpack.c.h.b16 %v3438
  %v3741 = vunpack.c.l.b16 %v3439
  %v3742 = vunpack.c.h.b16 %v3439
  %v3743 = vunpack.c.l.b16 %v3440
  %v3744 = vunpack.c.h.b16 %v3440
  %v3745 = vunpack.c.l.b16 %v3441
  %v3746 = vunpack.c.h.b16 %v3441
  %v3747 = vunpack.c.l.b16 %v3442
  %v3748 = vunpack.c.h.b16 %v3442
  %v3749 = vunpack.c.l.b16 %v3443
  %v3750 = vunpack.c.h.b16 %v3443
  %v3751 = vunpack.c.l.b16 %v3444
  %v3752 = vunpack.c.h.b16 %v3444
  %v3753 = vunpack.c.l.b16 %v3445
  %v3754 = vunpack.c.h.b16 %v3445
  %v3755 = vunpack.c.l.b16 %v3446
  %v3756 = vunpack.c.h.b16 %v3446
  %v3757 = vunpack.c.l.b16 %v3447
  %v3758 = vunpack.c.h.b16 %v3447
  %v3759 = vunpack.c.l.b16 %v3448
  %v3760 = vunpack.c.h.b16 %v3448
  %v3761 = vunpack.c.l.b16 %v3449
  %v3762 = vunpack.c.h.b16 %v3449
  %v3763 = vunpack.c.l.b16 %v3450
  %v3764 = vunpack.c.h.b16 %v3450
  %v3765 = vunpack.c.l.b16 %v3451
  %v3766 = vunpack.c.h.b16 %v3451
  %v3767 = vunpack.c.l.b16 %v3452
  %v3768 = vunpack.c.h.b16 %v3452
  %v3769 = vunpack.c.l.b16 %v3453
  %v3770 = vunpack.c.h.b16 %v3453
  %v3771 = vunpack.c.l.b16 %v3454
  %v3772 = vunpack.c.h.b16 %v3454
  %v3773 = vunpack.c.l.b16 %v3455
  %v3774 = vunpack.c.h.b16 %v3455
  %v3775 = vunpack.c.l.b16 %v3456
  %v3776 = vunpack.c.h.b16 %v3456
  %v3777 = vunpack.c.l.b16 %v3457
  %v3778 = vunpack.c.h.b16 %v3457
  %v3779 = vunpack.c.l.b16 %v3458
  %v3780 = vunpack.c.h.b16 %v3458
  %v3781 = vunpack.c.l.b16 %v3459
  %v3782 = vunpack.c.h.b16 %v3459
  %v3783 = vunpack.c.l.b16 %v3460
  %v3784 = vunpack.c.h.b16 %v3460
  %v3785 = vunpack.c.l.b16 %v3461
  %v3786 = vunpack.c.h.b16 %v3461
  %v3787 = vunpack.c.l.b16 %v3462
  %v3788 = vunpack.c.h.b16 %v3462
  %v3789 = vunpack.c.l.b16 %v3463
  %v3790 = vunpack.c.h.b16 %v3463
  %v3791 = vunpack.c.l.b16 %v3464
  %v3792 = vunpack.c.h.b16 %v3464
  %v3793 = vunpack.c.l.b16 %v3465
  %v3794 = vunpack.c.h.b16 %v3465
  %v3795 = vunpack.c.l.b16 %v3466
  %v3796 = vunpack.c.h.b16 %v3466
  %v3797 = vunpack.c.l.b16 %v3467
  %v3798 = vunpack.c.h.b16 %v3467
  %v3799 = vunpack.c.l.b16 %v3468
  %v3800 = vunpack.c.h.b16 %v3468
  %v3801 = vunpack.c.l.b16 %v3469
  %v3802 = vunpack.c.h.b16 %v3469
  %v3803 = vunpack.c.l.b16 %v3470
  %v3804 = vunpack.c.h.b16 %v3470
  %v3805 = vunpack.c.l.b16 %v3471
  %v3806 = vunpack.c.h.b16 %v3471
  %v3807 = vunpack.c.l.b16 %v3472
  %v3808 = vunpack.c.h.b16 %v3472
  %v3809 = vunpack.c.l.b16 %v3473
  %v3810 = vunpack.c.h.b16 %v3473
  %v3811 = vunpack.c.l.b16 %v3474
  %v3812 = vunpack.c.h.b16 %v3474
  %v3813 = vunpack.c.l.b16 %v3475
  %v3814 = vunpack.c.h.b16 %v3475
  %v3815 = vunpack.c.l.b16 %v3476
  %v3816 = vunpack.c.h.b16 %v3476
  %v3817 = vunpack.c.l.b16 %v3477
  %v3818 = vunpack.c.h.b16 %v3477
  %v3819 = vunpack.c.l.b16 %v3478
  %v3820 = vunpack.c.h.b16 %v3478
  %v3821 = vunpack.c.l.b16 %v3479
  %v3822 = vunpack.c.h.b16 %v3479
  %v3823 = vunpack.c.l.b16 %v3480
  %v3824 = vunpack.c.h.b16 %v3480
  %v3825 = vunpack.c.l.b16 %v3481
  %v3826 = vunpack.c.h.b16 %v3481
  %v3827 = vunpack.c.l.b16 %v3482
  %v3828 = vunpack.c.h.b16 %v3482
  %v3829 = vunpack.c.l.b16 %v3483
  %v3830 = vunpack.c.h.b16 %v3483
  %v3831 = vunpack.c.l.b16 %v3484
  %v3832 = vunpack.c.h.b16 %v3484
  %v3833 = vunpack.c.l.b16 %v3485
  %v3834 = vunpack.c.h.b16 %v3485
  %v3835 = vunpack.c.l.b16 %v3486
  %v3836 = vunpack.c.h.b16 %v3486
  %v3837 = vunpack.c.l.b16 %v3487
  %v3838 = vunpack.c.h.b16 %v3487
  %v3839 = vunpack.c.l.b16 %v3488
  %v3840 = vunpack.c.h.b16 %v3488
  %v3841 = vunpack.c.l.b16 %v3489
  %v3842 = vunpack.c.h.b16 %v3489
  %v3843 = vunpack.c.l.b16 %v3490
  %v3844 = vunpack.c.h.b16 %v3490
  %v3845 = vunpack.c.l.b16 %v3491
  %v3846 = vunpack.c.h.b16 %v3491
  %v3847 = vunpack.c.l.b16 %v3492
  %v3848 = vunpack.c.h.b16 %v3492
  %v3849 = vunpack.c.l.b16 %v3493
  %v3850 = vunpack.c.h.b16 %v3493
  %v3851 = vunpack.c.l.b16 %v3494
  %v3852 = vunpack.c.h.b16 %v3494
  %v3853 = vunpack.c.l.b16 %v3495
  %v3854 = vunpack.c.h.b16 %v3495
  %v3855 = vunpack.c.l.b16 %v3496
  %v3856 = vunpack.c.h.b16 %v3496
  %v3857 = vunpack.c.l.b16 %v3497
  %v3858 = vunpack.c.h.b16 %v3497
  %v3859 = vunpack.c.l.b16 %v3498
  %v3860 = vunpack.c.h.b16 %v3498
  %v3861 = vunpack.c.l.b16 %v3499
  %v3862 = vunpack.c.h.b16 %v3499
  %v3863 = vunpack.c.l.b16 %v3500
  %v3864 = vunpack.c.h.b16 %v3500
  %v3865 = vunpack.c.l.b16 %v3501
  %v3866 = vunpack.c.h.b16 %v3501
  %v3867 = vunpack.c.l.b16 %v3502
  %v3868 = vunpack.c.h.b16 %v3502
  %v3869 = vunpack.c.l.b16 %v3503
  %v3870 = vunpack.c.h.b16 %v3503
  %v3871 = vunpack.c.l.b16 %v3504
  %v3872 = vunpack.c.h.b16 %v3504
  %v3873 = vunpack.c.l.b16 %v3505
  %v3874 = vunpack.c.h.b16 %v3505
  %v3875 = vunpack.c.l.b16 %v3506
  %v3876 = vunpack.c.h.b16 %v3506
  %v3877 = vunpack.c.l.b16 %v3507
  %v3878 = vunpack.c.h.b16 %v3507
  %v3879 = vunpack.c.l.b16 %v3508
  %v3880 = vunpack.c.h.b16 %v3508
  %v3881 = vunpack.c.l.b16 %v3509
  %v3882 = vunpack.c.h.b16 %v3509
  %v3883 = vunpack.c.l.b16 %v3510
  %v3884 = vunpack.c.h.b16 %v3510
  %v3885 = vunpack.c.l.b16 %v3511
  %v3886 = vunpack.c.h.b16 %v3511
  %v3887 = vunpack.c.l.b16 %v3512
  %v3888 = vunpack.c.h.b16 %v3512
  %v3889 = vunpack.c.l.b16 %v3513
  %v3890 = vunpack.c.h.b16 %v3513
  %v3891 = vunpack.c.l.b16 %v3514
  %v3892 = vunpack.c.h.b16 %v3514
  %v3893 = vunpack.c.l.b16 %v3515
  %v3894 = vunpack.c.h.b16 %v3515
  %v3895 = vunpack.c.l.b16 %v3516
  %v3896 = vunpack.c.h.b16 %v3516
  %v3897 = vunpack.c.l.b16 %v3517
  %v3898 = vunpack.c.h.b16 %v3517
  %v3899 = vunpack.c.l.b16 %v3518
  %v3900 = vunpack.c.h.b16 %v3518
  %v3901 = vunpack.c.l.b16 %v3519
  %v3902 = vunpack.c.h.b16 %v3519
  %v3903 = vunpack.c.l.b16 %v3520
  %v3904 = vunpack.c.h.b16 %v3520
  %v3905 = vpack.c.b16 %v3665, %v3649
  %v3906 = vpack.c.b16 %v3666, %v3650
  %v3907 = vpack.c.b16 %v3667, %v3651
  %v3908 = vpack.c.b16 %v3668, %v3652
  %v3909 = vpack.c.b16 %v3669, %v3653
  %v3910 = vpack.c.b16 %v3670, %v3654
  %v3911 = vpack.c.b16 %v3671, %v3655
  %v3912 = vpack.c.b16 %v3672, %v3656
  %v3913 = vpack.c.b16 %v3673, %v3657
  %v3914 = vpack.c.b16 %v3674, %v3658
  %v3915 = vpack.c.b16 %v3675, %v3659
  %v3916 = vpack.c.b16 %v3676, %v3660
  %v3917 = vpack.c.b16 %v3677, %v3661
  %v3918 = vpack.c.b16 %v3678, %v3662
  %v3919 = vpack.c.b16 %v3679, %v3663
  %v3920 = vpack.c.b16 %v3680, %v3664
  %v3921 = vpack.c.b16 %v3697, %v3681
  %v3922 = vpack.c.b16 %v3698, %v3682
  %v3923 = vpack.c.b16 %v3699, %v3683
  %v3924 = vpack.c.b16 %v3700, %v3684
  %v3925 = vpack.c.b16 %v3701, %v3685
  %v3926 = vpack.c.b16 %v3702, %v3686
  %v3927 = vpack.c.b16 %v3703, %v3687
  %v3928 = vpack.c.b16 %v3704, %v3688
  %v3929 = vpack.c.b16 %v3705, %v3689
  %v3930 = vpack.c.b16 %v3706, %v3690
  %v3931 = vpack.c.b16 %v3707, %v3691
  %v3932 = vpack.c.b16 %v3708, %v3692
  %v3933 = vpack.c.b16 %v3709, %v3693
  %v3934 = vpack.c.b16 %v3710, %v3694
  %v3935 = vpack.c.b16 %v3711, %v3695
  %v3936 = vpack.c.b16 %v3712, %v3696
  %v3937 = vpack.c.b16 %v3729, %v3713
  %v3938 = vpack.c.b16 %v3730, %v3714
  %v3939 = vpack.c.b16 %v3731, %v3715
  %v3940 = vpack.c.b16 %v3732, %v3716
  %v3941 = vpack.c.b16 %v3733, %v3717
  %v3942 = vpack.c.b16 %v3734, %v3718
  %v3943 = vpack.c.b16 %v3735, %v3719
  %v3944 = vpack.c.b16 %v3736, %v3720
  %v3945 = vpack.c.b16 %v3737, %v3721
  %v3946 = vpack.c.b16 %v3738, %v3722
  %v3947 = vpack.c.b16 %v3739, %v3723
  %v3948 = vpack.c.b16 %v3740, %v3724
  %v3949 = vpack.c.b16 %v3741, %v3725
  %v3950 = vpack.c.b16 %v3742, %v3726
  %v3951 = vpack.c.b16 %v3743, %v3727
  %v3952 = vpack.c.b16 %v3744, %v3728
  %v3953 = vpack.c.b16 %v3761, %v3745
  %v3954 = vpack.c.b16 %v3762, %v3746
  %v3955 = vpack.c.b16 %v3763, %v3747
  %v3956 = vpack.c.b16 %v3764, %v3748
  %v3957 = vpack.c.b16 %v3765, %v3749
  %v3958 = vpack.c.b16 %v3766, %v3750
  %v3959 = vpack.c.b16 %v3767, %v3751
  %v3960 = vpack.c.b16 %v3768, %v3752
  %v3961 = vpack.c.b16 %v3769, %v3753
  %v3962 = vpack.c.b16 %v3770, %v3754
  %v3963 = vpack.c.b16 %v3771, %v3755
  %v3964 = vpack.c.b16 %v3772, %v3756
  %v3965 = vpack.c.b16 %v3773, %v3757
  %v3966 = vpack.c.b16 %v3774, %v3758
  %v3967 = vpack.c.b16 %v3775, %v3759
  %v3968 = vpack.c.b16 %v3776, %v3760
  %v3969 = vpack.c.b16 %v3793, %v3777
  %v3970 = vpack.c.b16 %v3794, %v3778
  %v3971 = vpack.c.b16 %v3795, %v3779
  %v3972 = vpack.c.b16 %v3796, %v3780
  %v3973 = vpack.c.b16 %v3797, %v3781
  %v3974 = vpack.c.b16 %v3798, %v3782
  %v3975 = vpack.c.b16 %v3799, %v3783
  %v3976 = vpack.c.b16 %v3800, %v3784
  %v3977 = vpack.c.b16 %v3801, %v3785
  %v3978 = vpack.c.b16 %v3802, %v3786
  %v3979 = vpack.c.b16 %v3803, %v3787
  %v3980 = vpack.c.b16 %v3804, %v3788
  %v3981 = vpack.c.b16 %v3805, %v3789
  %v3982 = vpack.c.b16 %v3806, %v3790
  %v3983 = vpack.c.b16 %v3807, %v3791
  %v3984 = vpack.c.b16 %v3808, %v3792
  %v3985 = vpack.c.b16 %v3825, %v3809
  %v3986 = vpack.c.b16 %v3826, %v3810
  %v3987 = vpack.c.b16 %v3827, %v3811
  %v3988 = vpack.c.b16 %v3828, %v3812
  %v3989 = vpack.c.b16 %v3829, %v3813
  %v3990 = vpack.c.b16 %v3830, %v3814
  %v3991 = vpack.c.b16 %v3831, %v3815
  %v3992 = vpack.c.b16 %v3832, %v3816
  %v3993 = vpack.c.b16 %v3833, %v3817
  %v3994 = vpack.c.b16 %v3834, %v3818
  %v3995 = vpack.c.b16 %v3835, %v3819
  %v3996 = vpack.c.b16 %v3836, %v3820
  %v3997 = vpack.c.b16 %v3837, %v3821
  %v3998 = vpack.c.b16 %v3838, %v3822
  %v3999 = vpack.c.b16 %v3839, %v3823
  %v4000 = vpack.c.b16 %v3840, %v3824
  %v4001 = vpack.c.b16 %v3857, %v3841
  %v4002 = vpack.c.b16 %v3858, %v3842
  %v4003 = vpack.c.b16 %v3859, %v3843
  %v4004 = vpack.c.b16 %v3860, %v3844
  %v4005 = vpack.c.b16 %v3861, %v3845
  %v4006 = vpack.c.b16 %v3862, %v3846
  %v4007 = vpack.c.b16 %v3863, %v3847
  %v4008 = vpack.c.b16 %v3864, %v3848
  %v4009 = vpack.c.b16 %v3865, %v3849
  %v4010 = vpack.c.b16 %v3866, %v3850
  %v4011 = vpack.c.b16 %v3867, %v3851
  %v4012 = vpack.c.b16 %v3868, %v3852
  %v4013 = vpack.c.b16 %v3869, %v3853
  %v4014 = vpack.c.b16 %v3870, %v3854
  %v4015 = vpack.c.b16 %v3871, %v3855
  %v4016 = vpack.c.b16 %v3872, %v3856
  %v4017 = vpack.c.b16 %v3889, %v3873
  %v4018 = vpack.c.b16 %v3890, %v3874
  %v4019 = vpack.c.b16 %v3891, %v3875
  %v4020 = vpack.c.b16 %v3892, %v3876
  %v4021 = vpack.c.b16 %v3893, %v3877
  %v4022 = vpack.c.b16 %v3894, %v3878
  %v4023 = vpack.c.b16 %v3895, %v3879
  %v4024 = vpack.c.b16 %v3896, %v3880
  %v4025 = vpack.c.b16 %v3897, %v3881
  %v4026 = vpack.c.b16 %v3898, %v3882
  %v4027 = vpack.c.b16 %v3899, %v3883
  %v4028 = vpack.c.b16 %v3900, %v3884
  %v4029 = vpack.c.b16 %v3901, %v3885
  %v4030 = vpack.c.b16 %v3902, %v3886
  %v4031 = vpack.c.b16 %v3903, %v3887
  %v4032 = vpack.c.b16 %v3904, %v3888
  %4161 = vmatprep.subr.bf16.mxu0 %v4018
  %4162 = vmatpush1.bf16.msra.mxu0 %v4017
  %4163 = vmatprep.subr.bf16.mxu0 %v4002
  %4164 = vmatpush1.bf16.msra.mxu0 %v4001
  %4165 = vmatprep.subr.bf16.mxu0 %v3986
  %4166 = vmatpush1.bf16.msra.mxu0 %v3985
  %4167 = vmatprep.subr.bf16.mxu0 %v3970
  %4168 = vmatpush1.bf16.msra.mxu0 %v3969
  %4169 = vmatprep.subr.bf16.mxu0 %v3954
  %4170 = vmatpush1.bf16.msra.mxu0 %v3953
  %4171 = vmatprep.subr.bf16.mxu0 %v3938
  %4172 = vmatpush1.bf16.msra.mxu0 %v3937
  %4173 = vmatprep.subr.bf16.mxu0 %v3922
  %4174 = vmatpush1.bf16.msra.mxu0 %v3921
  %4175 = vmatprep.subr.bf16.mxu0 %v3906
  %4176 = vmatpush1.bf16.msra.mxu0 %v3905
  %4177 = vmatprep.subr.bf16.mxu0 0
  %4178 = vmatpush2.bf16.msra.mxu0 0
  %4179 = vmatprep.subr.bf16.mxu0 0
  %4180 = vmatpush2.bf16.msra.mxu0 0
  %4181 = vmatprep.subr.bf16.mxu0 0
  %4182 = vmatpush2.bf16.msra.mxu0 0
  %4183 = vmatprep.subr.bf16.mxu0 0
  %4184 = vmatpush2.bf16.msra.mxu0 0
  %4185 = vmatprep.subr.bf16.mxu0 0
  %4186 = vmatpush2.bf16.msra.mxu0 0
  %4187 = vmatprep.subr.bf16.mxu0 0
  %4188 = vmatpush2.bf16.msra.mxu0 0
  %4189 = vmatprep.subr.bf16.mxu0 0
  %4190 = vmatpush2.bf16.msra.mxu0 0
  %4191 = vmatprep.subr.bf16.mxu0 0
  %4192 = vmatpush2.bf16.msra.mxu0 0
  %4193 = vmatprep.mubr.bf16.mxu0 0
  %4194 = vmatmul.mubr.bf16.gmra.mxu0 %v3390
  %v4195 = vpop.f32.mrf.mxu0
  %v4196 = vadd.f32 0.0, %v4195
  %v4197 = vpop.f32.mrf.mxu0
  %v4198 = vadd.f32 0.0, %v4197
  %v4199 = vpop.f32.mrf.mxu0
  %v4200 = vadd.f32 0.0, %v4199
  %v4201 = vpop.f32.mrf.mxu0
  %v4202 = vadd.f32 0.0, %v4201
  %4203 = vmatprep.mubr.bf16.mxu0 0
  %4204 = vmatmul.mubr.bf16.gmra.mxu0 %v3391
  %v4205 = vpop.f32.mrf.mxu0
  %v4206 = vadd.f32 0.0, %v4205
  %v4207 = vpop.f32.mrf.mxu0
  %v4208 = vadd.f32 0.0, %v4207
  %v4209 = vpop.f32.mrf.mxu0
  %v4210 = vadd.f32 0.0, %v4209
  %v4211 = vpop.f32.mrf.mxu0
  %v4212 = vadd.f32 0.0, %v4211
  %4213 = vmatprep.mubr.bf16.mxu0 0
  %4214 = vmatmul.mubr.bf16.gmra.mxu0 %v3392
  %v4215 = vpop.f32.mrf.mxu0
  %v4216 = vadd.f32 0.0, %v4215
  %v4217 = vpop.f32.mrf.mxu0
  %v4218 = vadd.f32 0.0, %v4217
  %v4219 = vpop.f32.mrf.mxu0
  %v4220 = vpop.f32.mrf.mxu0
  %4221 = vdwg.mxu0
  %4222 = vmatprep.subr.bf16.mxu0 %v4020
  %4223 = vmatpush1.bf16.msra.mxu0 %v4019
  %4224 = vmatprep.subr.bf16.mxu0 %v4004
  %4225 = vmatpush1.bf16.msra.mxu0 %v4003
  %4226 = vmatprep.subr.bf16.mxu0 %v3988
  %4227 = vmatpush1.bf16.msra.mxu0 %v3987
  %4228 = vmatprep.subr.bf16.mxu0 %v3972
  %4229 = vmatpush1.bf16.msra.mxu0 %v3971
  %4230 = vmatprep.subr.bf16.mxu0 %v3956
  %4231 = vmatpush1.bf16.msra.mxu0 %v3955
  %4232 = vmatprep.subr.bf16.mxu0 %v3940
  %4233 = vmatpush1.bf16.msra.mxu0 %v3939
  %4234 = vmatprep.subr.bf16.mxu0 %v3924
  %4235 = vmatpush1.bf16.msra.mxu0 %v3923
  %4236 = vmatprep.subr.bf16.mxu0 %v3908
  %4237 = vmatpush1.bf16.msra.mxu0 %v3907
  %4238 = vmatprep.subr.bf16.mxu0 0
  %4239 = vmatpush2.bf16.msra.mxu0 0
  %4240 = vmatprep.subr.bf16.mxu0 0
  %4241 = vmatpush2.bf16.msra.mxu0 0
  %4242 = vmatprep.subr.bf16.mxu0 0
  %4243 = vmatpush2.bf16.msra.mxu0 0
  %4244 = vmatprep.subr.bf16.mxu0 0
  %4245 = vmatpush2.bf16.msra.mxu0 0
  %4246 = vmatprep.subr.bf16.mxu0 0
  %4247 = vmatpush2.bf16.msra.mxu0 0
  %4248 = vmatprep.subr.bf16.mxu0 0
  %4249 = vmatpush2.bf16.msra.mxu0 0
  %4250 = vmatprep.subr.bf16.mxu0 0
  %4251 = vmatpush2.bf16.msra.mxu0 0
  %4252 = vmatprep.subr.bf16.mxu0 0
  %4253 = vmatpush2.bf16.msra.mxu0 0
  %4254 = vmatprep.mubr.bf16.mxu0 0
  %4255 = vmatmul.mubr.bf16.gmra.mxu0 %v3390
  %v4256 = vpop.f32.mrf.mxu0
  %v4257 = vadd.f32 0.0, %v4256
  %v4258 = vpop.f32.mrf.mxu0
  %v4259 = vadd.f32 0.0, %v4258
  %v4260 = vpop.f32.mrf.mxu0
  %v4261 = vadd.f32 0.0, %v4260
  %v4262 = vpop.f32.mrf.mxu0
  %v4263 = vadd.f32 0.0, %v4262
  %4264 = vmatprep.mubr.bf16.mxu0 0
  %4265 = vmatmul.mubr.bf16.gmra.mxu0 %v3391
  %v4266 = vpop.f32.mrf.mxu0
  %v4267 = vadd.f32 0.0, %v4266
  %v4268 = vpop.f32.mrf.mxu0
  %v4269 = vadd.f32 0.0, %v4268
  %v4270 = vpop.f32.mrf.mxu0
  %v4271 = vadd.f32 0.0, %v4270
  %v4272 = vpop.f32.mrf.mxu0
  %v4273 = vadd.f32 0.0, %v4272
  %4274 = vmatprep.mubr.bf16.mxu0 0
  %4275 = vmatmul.mubr.bf16.gmra.mxu0 %v3392
  %v4276 = vpop.f32.mrf.mxu0
  %v4277 = vadd.f32 0.0, %v4276
  %v4278 = vpop.f32.mrf.mxu0
  %v4279 = vadd.f32 0.0, %v4278
  %v4280 = vpop.f32.mrf.mxu0
  %v4281 = vpop.f32.mrf.mxu0
  %4282 = vdwg.mxu0
  %4283 = vmatprep.subr.bf16.mxu0 %v4022
  %4284 = vmatpush1.bf16.msra.mxu0 %v4021
  %4285 = vmatprep.subr.bf16.mxu0 %v4006
  %4286 = vmatpush1.bf16.msra.mxu0 %v4005
  %4287 = vmatprep.subr.bf16.mxu0 %v3990
  %4288 = vmatpush1.bf16.msra.mxu0 %v3989
  %4289 = vmatprep.subr.bf16.mxu0 %v3974
  %4290 = vmatpush1.bf16.msra.mxu0 %v3973
  %4291 = vmatprep.subr.bf16.mxu0 %v3958
  %4292 = vmatpush1.bf16.msra.mxu0 %v3957
  %4293 = vmatprep.subr.bf16.mxu0 %v3942
  %4294 = vmatpush1.bf16.msra.mxu0 %v3941
  %4295 = vmatprep.subr.bf16.mxu0 %v3926
  %4296 = vmatpush1.bf16.msra.mxu0 %v3925
  %4297 = vmatprep.subr.bf16.mxu0 %v3910
  %4298 = vmatpush1.bf16.msra.mxu0 %v3909
  %4299 = vmatprep.subr.bf16.mxu0 0
  %4300 = vmatpush2.bf16.msra.mxu0 0
  %4301 = vmatprep.subr.bf16.mxu0 0
  %4302 = vmatpush2.bf16.msra.mxu0 0
  %4303 = vmatprep.subr.bf16.mxu0 0
  %4304 = vmatpush2.bf16.msra.mxu0 0
  %4305 = vmatprep.subr.bf16.mxu0 0
  %4306 = vmatpush2.bf16.msra.mxu0 0
  %4307 = vmatprep.subr.bf16.mxu0 0
  %4308 = vmatpush2.bf16.msra.mxu0 0
  %4309 = vmatprep.subr.bf16.mxu0 0
  %4310 = vmatpush2.bf16.msra.mxu0 0
  %4311 = vmatprep.subr.bf16.mxu0 0
  %4312 = vmatpush2.bf16.msra.mxu0 0
  %4313 = vmatprep.subr.bf16.mxu0 0
  %4314 = vmatpush2.bf16.msra.mxu0 0
  %4315 = vmatprep.mubr.bf16.mxu0 0
  %4316 = vmatmul.mubr.bf16.gmra.mxu0 %v3390
  %v4317 = vpop.f32.mrf.mxu0
  %v4318 = vadd.f32 0.0, %v4317
  %v4319 = vpop.f32.mrf.mxu0
  %v4320 = vadd.f32 0.0, %v4319
  %v4321 = vpop.f32.mrf.mxu0
  %v4322 = vadd.f32 0.0, %v4321
  %v4323 = vpop.f32.mrf.mxu0
  %v4324 = vadd.f32 0.0, %v4323
  %4325 = vmatprep.mubr.bf16.mxu0 0
  %4326 = vmatmul.mubr.bf16.gmra.mxu0 %v3391
  %v4327 = vpop.f32.mrf.mxu0
  %v4328 = vadd.f32 0.0, %v4327
  %v4329 = vpop.f32.mrf.mxu0
  %v4330 = vadd.f32 0.0, %v4329
  %v4331 = vpop.f32.mrf.mxu0
  %v4332 = vadd.f32 0.0, %v4331
  %v4333 = vpop.f32.mrf.mxu0
  %v4334 = vadd.f32 0.0, %v4333
  %4335 = vmatprep.mubr.bf16.mxu0 0
  %4336 = vmatmul.mubr.bf16.gmra.mxu0 %v3392
  %v4337 = vpop.f32.mrf.mxu0
  %v4338 = vadd.f32 0.0, %v4337
  %v4339 = vpop.f32.mrf.mxu0
  %v4340 = vadd.f32 0.0, %v4339
  %v4341 = vpop.f32.mrf.mxu0
  %v4342 = vpop.f32.mrf.mxu0
  %4343 = vdwg.mxu0
  %4344 = vmatprep.subr.bf16.mxu0 %v4024
  %4345 = vmatpush1.bf16.msra.mxu0 %v4023
  %4346 = vmatprep.subr.bf16.mxu0 %v4008
  %4347 = vmatpush1.bf16.msra.mxu0 %v4007
  %4348 = vmatprep.subr.bf16.mxu0 %v3992
  %4349 = vmatpush1.bf16.msra.mxu0 %v3991
  %4350 = vmatprep.subr.bf16.mxu0 %v3976
  %4351 = vmatpush1.bf16.msra.mxu0 %v3975
  %4352 = vmatprep.subr.bf16.mxu0 %v3960
  %4353 = vmatpush1.bf16.msra.mxu0 %v3959
  %4354 = vmatprep.subr.bf16.mxu0 %v3944
  %4355 = vmatpush1.bf16.msra.mxu0 %v3943
  %4356 = vmatprep.subr.bf16.mxu0 %v3928
  %4357 = vmatpush1.bf16.msra.mxu0 %v3927
  %4358 = vmatprep.subr.bf16.mxu0 %v3912
  %4359 = vmatpush1.bf16.msra.mxu0 %v3911
  %4360 = vmatprep.subr.bf16.mxu0 0
  %4361 = vmatpush2.bf16.msra.mxu0 0
  %4362 = vmatprep.subr.bf16.mxu0 0
  %4363 = vmatpush2.bf16.msra.mxu0 0
  %4364 = vmatprep.subr.bf16.mxu0 0
  %4365 = vmatpush2.bf16.msra.mxu0 0
  %4366 = vmatprep.subr.bf16.mxu0 0
  %4367 = vmatpush2.bf16.msra.mxu0 0
  %4368 = vmatprep.subr.bf16.mxu0 0
  %4369 = vmatpush2.bf16.msra.mxu0 0
  %4370 = vmatprep.subr.bf16.mxu0 0
  %4371 = vmatpush2.bf16.msra.mxu0 0
  %4372 = vmatprep.subr.bf16.mxu0 0
  %4373 = vmatpush2.bf16.msra.mxu0 0
  %4374 = vmatprep.subr.bf16.mxu0 0
  %4375 = vmatpush2.bf16.msra.mxu0 0
  %4376 = vmatprep.mubr.bf16.mxu0 0
  %4377 = vmatmul.mubr.bf16.gmra.mxu0 %v3390
  %v4378 = vpop.f32.mrf.mxu0
  %v4379 = vadd.f32 0.0, %v4378
  %v4380 = vpop.f32.mrf.mxu0
  %v4381 = vadd.f32 0.0, %v4380
  %v4382 = vpop.f32.mrf.mxu0
  %v4383 = vadd.f32 0.0, %v4382
  %v4384 = vpop.f32.mrf.mxu0
  %v4385 = vadd.f32 0.0, %v4384
  %4386 = vmatprep.mubr.bf16.mxu0 0
  %4387 = vmatmul.mubr.bf16.gmra.mxu0 %v3391
  %v4388 = vpop.f32.mrf.mxu0
  %v4389 = vadd.f32 0.0, %v4388
  %v4390 = vpop.f32.mrf.mxu0
  %v4391 = vadd.f32 0.0, %v4390
  %v4392 = vpop.f32.mrf.mxu0
  %v4393 = vadd.f32 0.0, %v4392
  %v4394 = vpop.f32.mrf.mxu0
  %v4395 = vadd.f32 0.0, %v4394
  %4396 = vmatprep.mubr.bf16.mxu0 0
  %4397 = vmatmul.mubr.bf16.gmra.mxu0 %v3392
  %v4398 = vpop.f32.mrf.mxu0
  %v4399 = vadd.f32 0.0, %v4398
  %v4400 = vpop.f32.mrf.mxu0
  %v4401 = vadd.f32 0.0, %v4400
  %v4402 = vpop.f32.mrf.mxu0
  %v4403 = vpop.f32.mrf.mxu0
  %4404 = vdwg.mxu0
  %4405 = vmatprep.subr.bf16.mxu0 %v4026
  %4406 = vmatpush1.bf16.msra.mxu0 %v4025
  %4407 = vmatprep.subr.bf16.mxu0 %v4010
  %4408 = vmatpush1.bf16.msra.mxu0 %v4009
  %4409 = vmatprep.subr.bf16.mxu0 %v3994
  %4410 = vmatpush1.bf16.msra.mxu0 %v3993
  %4411 = vmatprep.subr.bf16.mxu0 %v3978
  %4412 = vmatpush1.bf16.msra.mxu0 %v3977
  %4413 = vmatprep.subr.bf16.mxu0 %v3962
  %4414 = vmatpush1.bf16.msra.mxu0 %v3961
  %4415 = vmatprep.subr.bf16.mxu0 %v3946
  %4416 = vmatpush1.bf16.msra.mxu0 %v3945
  %4417 = vmatprep.subr.bf16.mxu0 %v3930
  %4418 = vmatpush1.bf16.msra.mxu0 %v3929
  %4419 = vmatprep.subr.bf16.mxu0 %v3914
  %4420 = vmatpush1.bf16.msra.mxu0 %v3913
  %4421 = vmatprep.subr.bf16.mxu0 0
  %4422 = vmatpush2.bf16.msra.mxu0 0
  %4423 = vmatprep.subr.bf16.mxu0 0
  %4424 = vmatpush2.bf16.msra.mxu0 0
  %4425 = vmatprep.subr.bf16.mxu0 0
  %4426 = vmatpush2.bf16.msra.mxu0 0
  %4427 = vmatprep.subr.bf16.mxu0 0
  %4428 = vmatpush2.bf16.msra.mxu0 0
  %4429 = vmatprep.subr.bf16.mxu0 0
  %4430 = vmatpush2.bf16.msra.mxu0 0
  %4431 = vmatprep.subr.bf16.mxu0 0
  %4432 = vmatpush2.bf16.msra.mxu0 0
  %4433 = vmatprep.subr.bf16.mxu0 0
  %4434 = vmatpush2.bf16.msra.mxu0 0
  %4435 = vmatprep.subr.bf16.mxu0 0
  %4436 = vmatpush2.bf16.msra.mxu0 0
  %4437 = vmatprep.mubr.bf16.mxu0 0
  %4438 = vmatmul.mubr.bf16.gmra.mxu0 %v3390
  %v4439 = vpop.f32.mrf.mxu0
  %v4440 = vadd.f32 0.0, %v4439
  %v4441 = vpop.f32.mrf.mxu0
  %v4442 = vadd.f32 0.0, %v4441
  %v4443 = vpop.f32.mrf.mxu0
  %v4444 = vadd.f32 0.0, %v4443
  %v4445 = vpop.f32.mrf.mxu0
  %v4446 = vadd.f32 0.0, %v4445
  %4447 = vmatprep.mubr.bf16.mxu0 0
  %4448 = vmatmul.mubr.bf16.gmra.mxu0 %v3391
  %v4449 = vpop.f32.mrf.mxu0
  %v4450 = vadd.f32 0.0, %v4449
  %v4451 = vpop.f32.mrf.mxu0
  %v4452 = vadd.f32 0.0, %v4451
  %v4453 = vpop.f32.mrf.mxu0
  %v4454 = vadd.f32 0.0, %v4453
  %v4455 = vpop.f32.mrf.mxu0
  %v4456 = vadd.f32 0.0, %v4455
  %4457 = vmatprep.mubr.bf16.mxu0 0
  %4458 = vmatmul.mubr.bf16.gmra.mxu0 %v3392
  %v4459 = vpop.f32.mrf.mxu0
  %v4460 = vadd.f32 0.0, %v4459
  %v4461 = vpop.f32.mrf.mxu0
  %v4462 = vadd.f32 0.0, %v4461
  %v4463 = vpop.f32.mrf.mxu0
  %v4464 = vpop.f32.mrf.mxu0
  %4465 = vdwg.mxu0
  %4466 = vmatprep.subr.bf16.mxu0 %v4028
  %4467 = vmatpush1.bf16.msra.mxu0 %v4027
  %4468 = vmatprep.subr.bf16.mxu0 %v4012
  %4469 = vmatpush1.bf16.msra.mxu0 %v4011
  %4470 = vmatprep.subr.bf16.mxu0 %v3996
  %4471 = vmatpush1.bf16.msra.mxu0 %v3995
  %4472 = vmatprep.subr.bf16.mxu0 %v3980
  %4473 = vmatpush1.bf16.msra.mxu0 %v3979
  %4474 = vmatprep.subr.bf16.mxu0 %v3964
  %4475 = vmatpush1.bf16.msra.mxu0 %v3963
  %4476 = vmatprep.subr.bf16.mxu0 %v3948
  %4477 = vmatpush1.bf16.msra.mxu0 %v3947
  %4478 = vmatprep.subr.bf16.mxu0 %v3932
  %4479 = vmatpush1.bf16.msra.mxu0 %v3931
  %4480 = vmatprep.subr.bf16.mxu0 %v3916
  %4481 = vmatpush1.bf16.msra.mxu0 %v3915
  %4482 = vmatprep.subr.bf16.mxu0 0
  %4483 = vmatpush2.bf16.msra.mxu0 0
  %4484 = vmatprep.subr.bf16.mxu0 0
  %4485 = vmatpush2.bf16.msra.mxu0 0
  %4486 = vmatprep.subr.bf16.mxu0 0
  %4487 = vmatpush2.bf16.msra.mxu0 0
  %4488 = vmatprep.subr.bf16.mxu0 0
  %4489 = vmatpush2.bf16.msra.mxu0 0
  %4490 = vmatprep.subr.bf16.mxu0 0
  %4491 = vmatpush2.bf16.msra.mxu0 0
  %4492 = vmatprep.subr.bf16.mxu0 0
  %4493 = vmatpush2.bf16.msra.mxu0 0
  %4494 = vmatprep.subr.bf16.mxu0 0
  %4495 = vmatpush2.bf16.msra.mxu0 0
  %4496 = vmatprep.subr.bf16.mxu0 0
  %4497 = vmatpush2.bf16.msra.mxu0 0
  %4498 = vmatprep.mubr.bf16.mxu0 0
  %4499 = vmatmul.mubr.bf16.gmra.mxu0 %v3390
  %v4500 = vpop.f32.mrf.mxu0
  %v4501 = vadd.f32 0.0, %v4500
  %v4502 = vpop.f32.mrf.mxu0
  %v4503 = vadd.f32 0.0, %v4502
  %v4504 = vpop.f32.mrf.mxu0
  %v4505 = vadd.f32 0.0, %v4504
  %v4506 = vpop.f32.mrf.mxu0
  %v4507 = vadd.f32 0.0, %v4506
  %4508 = vmatprep.mubr.bf16.mxu0 0
  %4509 = vmatmul.mubr.bf16.gmra.mxu0 %v3391
  %v4510 = vpop.f32.mrf.mxu0
  %v4511 = vadd.f32 0.0, %v4510
  %v4512 = vpop.f32.mrf.mxu0
  %v4513 = vadd.f32 0.0, %v4512
  %v4514 = vpop.f32.mrf.mxu0
  %v4515 = vadd.f32 0.0, %v4514
  %v4516 = vpop.f32.mrf.mxu0
  %v4517 = vadd.f32 0.0, %v4516
  %4518 = vmatprep.mubr.bf16.mxu0 0
  %4519 = vmatmul.mubr.bf16.gmra.mxu0 %v3392
  %v4520 = vpop.f32.mrf.mxu0
  %v4521 = vadd.f32 0.0, %v4520
  %v4522 = vpop.f32.mrf.mxu0
  %v4523 = vadd.f32 0.0, %v4522
  %v4524 = vpop.f32.mrf.mxu0
  %v4525 = vpop.f32.mrf.mxu0
  %4526 = vdwg.mxu0
  %4527 = vmatprep.subr.bf16.mxu0 %v4030
  %4528 = vmatpush1.bf16.msra.mxu0 %v4029
  %4529 = vmatprep.subr.bf16.mxu0 %v4014
  %4530 = vmatpush1.bf16.msra.mxu0 %v4013
  %4531 = vmatprep.subr.bf16.mxu0 %v3998
  %4532 = vmatpush1.bf16.msra.mxu0 %v3997
  %4533 = vmatprep.subr.bf16.mxu0 %v3982
  %4534 = vmatpush1.bf16.msra.mxu0 %v3981
  %4535 = vmatprep.subr.bf16.mxu0 %v3966
  %4536 = vmatpush1.bf16.msra.mxu0 %v3965
  %4537 = vmatprep.subr.bf16.mxu0 %v3950
  %4538 = vmatpush1.bf16.msra.mxu0 %v3949
  %4539 = vmatprep.subr.bf16.mxu0 %v3934
  %4540 = vmatpush1.bf16.msra.mxu0 %v3933
  %4541 = vmatprep.subr.bf16.mxu0 %v3918
  %4542 = vmatpush1.bf16.msra.mxu0 %v3917
  %4543 = vmatprep.subr.bf16.mxu0 0
  %4544 = vmatpush2.bf16.msra.mxu0 0
  %4545 = vmatprep.subr.bf16.mxu0 0
  %4546 = vmatpush2.bf16.msra.mxu0 0
  %4547 = vmatprep.subr.bf16.mxu0 0
  %4548 = vmatpush2.bf16.msra.mxu0 0
  %4549 = vmatprep.subr.bf16.mxu0 0
  %4550 = vmatpush2.bf16.msra.mxu0 0
  %4551 = vmatprep.subr.bf16.mxu0 0
  %4552 = vmatpush2.bf16.msra.mxu0 0
  %4553 = vmatprep.subr.bf16.mxu0 0
  %4554 = vmatpush2.bf16.msra.mxu0 0
  %4555 = vmatprep.subr.bf16.mxu0 0
  %4556 = vmatpush2.bf16.msra.mxu0 0
  %4557 = vmatprep.subr.bf16.mxu0 0
  %4558 = vmatpush2.bf16.msra.mxu0 0
  %4559 = vmatprep.mubr.bf16.mxu0 0
  %4560 = vmatmul.mubr.bf16.gmra.mxu0 %v3390
  %v4561 = vpop.f32.mrf.mxu0
  %v4562 = vadd.f32 0.0, %v4561
  %v4563 = vpop.f32.mrf.mxu0
  %v4564 = vadd.f32 0.0, %v4563
  %v4565 = vpop.f32.mrf.mxu0
  %v4566 = vadd.f32 0.0, %v4565
  %v4567 = vpop.f32.mrf.mxu0
  %v4568 = vadd.f32 0.0, %v4567
  %4569 = vmatprep.mubr.bf16.mxu0 0
  %4570 = vmatmul.mubr.bf16.gmra.mxu0 %v3391
  %v4571 = vpop.f32.mrf.mxu0
  %v4572 = vadd.f32 0.0, %v4571
  %v4573 = vpop.f32.mrf.mxu0
  %v4574 = vadd.f32 0.0, %v4573
  %v4575 = vpop.f32.mrf.mxu0
  %v4576 = vadd.f32 0.0, %v4575
  %v4577 = vpop.f32.mrf.mxu0
  %v4578 = vadd.f32 0.0, %v4577
  %4579 = vmatprep.mubr.bf16.mxu0 0
  %4580 = vmatmul.mubr.bf16.gmra.mxu0 %v3392
  %v4581 = vpop.f32.mrf.mxu0
  %v4582 = vadd.f32 0.0, %v4581
  %v4583 = vpop.f32.mrf.mxu0
  %v4584 = vadd.f32 0.0, %v4583
  %v4585 = vpop.f32.mrf.mxu0
  %v4586 = vpop.f32.mrf.mxu0
  %4587 = vdwg.mxu0
  %4588 = vmatprep.subr.bf16.mxu0 %v4032
  %4589 = vmatpush1.bf16.msra.mxu0 %v4031
  %4590 = vmatprep.subr.bf16.mxu0 %v4016
  %4591 = vmatpush1.bf16.msra.mxu0 %v4015
  %4592 = vmatprep.subr.bf16.mxu0 %v4000
  %4593 = vmatpush1.bf16.msra.mxu0 %v3999
  %4594 = vmatprep.subr.bf16.mxu0 %v3984
  %4595 = vmatpush1.bf16.msra.mxu0 %v3983
  %4596 = vmatprep.subr.bf16.mxu0 %v3968
  %4597 = vmatpush1.bf16.msra.mxu0 %v3967
  %4598 = vmatprep.subr.bf16.mxu0 %v3952
  %4599 = vmatpush1.bf16.msra.mxu0 %v3951
  %4600 = vmatprep.subr.bf16.mxu0 %v3936
  %4601 = vmatpush1.bf16.msra.mxu0 %v3935
  %4602 = vmatprep.subr.bf16.mxu0 %v3920
  %4603 = vmatpush1.bf16.msra.mxu0 %v3919
  %4604 = vmatprep.subr.bf16.mxu0 0
  %4605 = vmatpush2.bf16.msra.mxu0 0
  %4606 = vmatprep.subr.bf16.mxu0 0
  %4607 = vmatpush2.bf16.msra.mxu0 0
  %4608 = vmatprep.subr.bf16.mxu0 0
  %4609 = vmatpush2.bf16.msra.mxu0 0
  %4610 = vmatprep.subr.bf16.mxu0 0
  %4611 = vmatpush2.bf16.msra.mxu0 0
  %4612 = vmatprep.subr.bf16.mxu0 0
  %4613 = vmatpush2.bf16.msra.mxu0 0
  %4614 = vmatprep.subr.bf16.mxu0 0
  %4615 = vmatpush2.bf16.msra.mxu0 0
  %4616 = vmatprep.subr.bf16.mxu0 0
  %4617 = vmatpush2.bf16.msra.mxu0 0
  %4618 = vmatprep.subr.bf16.mxu0 0
  %4619 = vmatpush2.bf16.msra.mxu0 0
  %4620 = vmatprep.mubr.bf16.mxu0 0
  %4621 = vmatmul.mubr.bf16.gmra.mxu0 %v3390
  %v4622 = vpop.f32.mrf.mxu0
  %v4623 = vadd.f32 0.0, %v4622
  %v4624 = vpop.f32.mrf.mxu0
  %v4625 = vadd.f32 0.0, %v4624
  %v4626 = vpop.f32.mrf.mxu0
  %v4627 = vadd.f32 0.0, %v4626
  %v4628 = vpop.f32.mrf.mxu0
  %v4629 = vadd.f32 0.0, %v4628
  %4630 = vmatprep.mubr.bf16.mxu0 0
  %4631 = vmatmul.mubr.bf16.gmra.mxu0 %v3391
  %v4632 = vpop.f32.mrf.mxu0
  %v4633 = vadd.f32 0.0, %v4632
  %v4634 = vpop.f32.mrf.mxu0
  %v4635 = vadd.f32 0.0, %v4634
  %v4636 = vpop.f32.mrf.mxu0
  %v4637 = vadd.f32 0.0, %v4636
  %v4638 = vpop.f32.mrf.mxu0
  %v4639 = vadd.f32 0.0, %v4638
  %4640 = vmatprep.mubr.bf16.mxu0 0
  %4641 = vmatmul.mubr.bf16.gmra.mxu0 %v3392
  %v4642 = vpop.f32.mrf.mxu0
  %v4643 = vadd.f32 0.0, %v4642
  %v4644 = vpop.f32.mrf.mxu0
  %v4645 = vadd.f32 0.0, %v4644
  %v4646 = vpop.f32.mrf.mxu0
  %v4647 = vpop.f32.mrf.mxu0
  %4648 = vdwg.mxu0
  %v4649 = vpack.c.bf16 %v4200, %v4196
  %v4650 = vpack.c.bf16 %v4202, %v4198
  %v4651 = vpack.c.bf16 %v4261, %v4257
  %v4652 = vpack.c.bf16 %v4263, %v4259
  %v4653 = vpack.c.bf16 %v4322, %v4318
  %v4654 = vpack.c.bf16 %v4324, %v4320
  %v4655 = vpack.c.bf16 %v4383, %v4379
  %v4656 = vpack.c.bf16 %v4385, %v4381
  %v4657 = vpack.c.bf16 %v4444, %v4440
  %v4658 = vpack.c.bf16 %v4446, %v4442
  %v4659 = vpack.c.bf16 %v4505, %v4501
  %v4660 = vpack.c.bf16 %v4507, %v4503
  %v4661 = vpack.c.bf16 %v4566, %v4562
  %v4662 = vpack.c.bf16 %v4568, %v4564
  %v4663 = vpack.c.bf16 %v4627, %v4623
  %v4664 = vpack.c.bf16 %v4629, %v4625
  %v4665 = vpack.c.bf16 %v4210, %v4206
  %v4666 = vpack.c.bf16 %v4212, %v4208
  %v4667 = vpack.c.bf16 %v4271, %v4267
  %v4668 = vpack.c.bf16 %v4273, %v4269
  %v4669 = vpack.c.bf16 %v4332, %v4328
  %v4670 = vpack.c.bf16 %v4334, %v4330
  %v4671 = vpack.c.bf16 %v4393, %v4389
  %v4672 = vpack.c.bf16 %v4395, %v4391
  %v4673 = vpack.c.bf16 %v4454, %v4450
  %v4674 = vpack.c.bf16 %v4456, %v4452
  %v4675 = vpack.c.bf16 %v4515, %v4511
  %v4676 = vpack.c.bf16 %v4517, %v4513
  %v4677 = vpack.c.bf16 %v4576, %v4572
  %v4678 = vpack.c.bf16 %v4578, %v4574
  %v4679 = vpack.c.bf16 %v4637, %v4633
  %v4680 = vpack.c.bf16 %v4639, %v4635
  %v4681 = vpack.c.bf16 %v4216, %v4216
  %v4682 = vpack.c.bf16 %v4218, %v4218
  %v4683 = vpack.c.bf16 %v4277, %v4277
  %v4684 = vpack.c.bf16 %v4279, %v4279
  %v4685 = vpack.c.bf16 %v4338, %v4338
  %v4686 = vpack.c.bf16 %v4340, %v4340
  %v4687 = vpack.c.bf16 %v4399, %v4399
  %v4688 = vpack.c.bf16 %v4401, %v4401
  %v4689 = vpack.c.bf16 %v4460, %v4460
  %v4690 = vpack.c.bf16 %v4462, %v4462
  %v4691 = vpack.c.bf16 %v4521, %v4521
  %v4692 = vpack.c.bf16 %v4523, %v4523
  %v4693 = vpack.c.bf16 %v4582, %v4582
  %v4694 = vpack.c.bf16 %v4584, %v4584
  %v4695 = vpack.c.bf16 %v4643, %v4643
  %v4696 = vpack.c.bf16 %v4645, %v4645
  %v4697 = vld [vmem:[%s5] sm:$0xf]
  %v4698 = vld [vmem:[%s5 + $0x4] sm:$0xf]
  %v4699 = vld [vmem:[%s5 + $0x8] sm:$0x1]
  %s4700 = scalar_lea.vmem %s5, 12
  %v4701 = vld [vmem:[%s4700] sm:$0xf]
  %v4702 = vld [vmem:[%s4700 + $0x4] sm:$0xf]
  %v4703 = vld [vmem:[%s4700 + $0x8] sm:$0x1]
  %v4707 = vunpack.c.l.b16 %v4701
  %v4708 = vunpack.c.l.b16 %v4702
  %v4709 = vunpack.c.l.b16 %v4703
  %v4710 = vpack.c.b16 %v4708, %v4707
  %v4711 = vpack.c.b16 %v4709, %v4709
  %vm4712 = vcmask 293888
  %v4714 = vsel %vm4712, %v4710, 0
  %v4717 = vsel %vm4712, %v4711, 0
  %v4720 = vsel %vm165, %v4682, 0
  %4722 = vmatprep.subr.bf16.mxu0 0
  %4723 = vmatpush1.bf16.msra.mxu0 0
  %4724 = vmatprep.subr.bf16.mxu0 0
  %4725 = vmatpush1.bf16.msra.mxu0 0
  %4726 = vmatprep.subr.bf16.mxu0 0
  %4727 = vmatpush1.bf16.msra.mxu0 0
  %4728 = vmatprep.subr.bf16.mxu0 0
  %4729 = vmatpush1.bf16.msra.mxu0 0
  %4730 = vmatprep.subr.bf16.mxu0 0
  %4731 = vmatpush1.bf16.msra.mxu0 0
  %4732 = vmatprep.subr.bf16.mxu0 0
  %4733 = vmatpush1.bf16.msra.mxu0 %v4720
  %4734 = vmatprep.subr.bf16.mxu0 0
  %4735 = vmatpush1.bf16.msra.mxu0 %v4666
  %4736 = vmatprep.subr.bf16.mxu0 0
  %4737 = vmatpush1.bf16.msra.mxu0 %v4650
  %4738 = vmatprep.subr.bf16.mxu0 0
  %4739 = vmatpush2.bf16.msra.mxu0 0
  %4740 = vmatprep.subr.bf16.mxu0 0
  %4741 = vmatpush2.bf16.msra.mxu0 0
  %4742 = vmatprep.subr.bf16.mxu0 0
  %4743 = vmatpush2.bf16.msra.mxu0 0
  %4744 = vmatprep.subr.bf16.mxu0 0
  %4745 = vmatpush2.bf16.msra.mxu0 0
  %4746 = vmatprep.subr.bf16.mxu0 0
  %4747 = vmatpush2.bf16.msra.mxu0 0
  %4748 = vmatprep.subr.bf16.mxu0 0
  %4749 = vmatpush2.bf16.msra.mxu0 0
  %4750 = vmatprep.subr.bf16.mxu0 0
  %4751 = vmatpush2.bf16.msra.mxu0 0
  %4752 = vmatprep.subr.bf16.mxu0 0
  %4753 = vmatpush2.bf16.msra.mxu0 0
  %4754 = vmatprep.mubr.bf16.mxu0 0
  %4755 = vmatmul.mubr.bf16.gmra.mxu0 %v4714
  %v4756 = vpop.f32.mrf.mxu0
  %v4757 = vadd.f32 0.0, %v4756
  %v4758 = vpop.f32.mrf.mxu0
  %v4759 = vpop.f32.mrf.mxu0
  %v4760 = vadd.f32 0.0, %v4759
  %v4761 = vpop.f32.mrf.mxu0
  %4762 = vmatprep.mubr.bf16.mxu0 0
  %4763 = vmatmul.mubr.bf16.gmra.mxu0 %v4717
  %v4764 = vpop.f32.mrf.mxu0
  %v4765 = vadd.f32 0.0, %v4764
  %v4766 = vpop.f32.mrf.mxu0
  %v4767 = vpop.f32.mrf.mxu0
  %v4768 = vpop.f32.mrf.mxu0
  %4769 = vdwg.mxu0
  %v4773 = vunpack.c.l.b16 %v4697
  %v4774 = vunpack.c.l.b16 %v4698
  %v4775 = vunpack.c.l.b16 %v4699
  %v4776 = vpack.c.b16 %v4774, %v4773
  %v4777 = vpack.c.b16 %v4775, %v4775
  %v4779 = vsel %vm4712, %v4776, 0
  %v4782 = vsel %vm4712, %v4777, 0
  %v4785 = vsel %vm165, %v4681, 0
  %4787 = vmatprep.subr.bf16.mxu0 0
  %4788 = vmatpush1.bf16.msra.mxu0 0
  %4789 = vmatprep.subr.bf16.mxu0 0
  %4790 = vmatpush1.bf16.msra.mxu0 0
  %4791 = vmatprep.subr.bf16.mxu0 0
  %4792 = vmatpush1.bf16.msra.mxu0 0
  %4793 = vmatprep.subr.bf16.mxu0 0
  %4794 = vmatpush1.bf16.msra.mxu0 0
  %4795 = vmatprep.subr.bf16.mxu0 0
  %4796 = vmatpush1.bf16.msra.mxu0 0
  %4797 = vmatprep.subr.bf16.mxu0 0
  %4798 = vmatpush1.bf16.msra.mxu0 %v4785
  %4799 = vmatprep.subr.bf16.mxu0 0
  %4800 = vmatpush1.bf16.msra.mxu0 %v4665
  %4801 = vmatprep.subr.bf16.mxu0 0
  %4802 = vmatpush1.bf16.msra.mxu0 %v4649
  %4803 = vmatprep.subr.bf16.mxu0 0
  %4804 = vmatpush2.bf16.msra.mxu0 0
  %4805 = vmatprep.subr.bf16.mxu0 0
  %4806 = vmatpush2.bf16.msra.mxu0 0
  %4807 = vmatprep.subr.bf16.mxu0 0
  %4808 = vmatpush2.bf16.msra.mxu0 0
  %4809 = vmatprep.subr.bf16.mxu0 0
  %4810 = vmatpush2.bf16.msra.mxu0 0
  %4811 = vmatprep.subr.bf16.mxu0 0
  %4812 = vmatpush2.bf16.msra.mxu0 0
  %4813 = vmatprep.subr.bf16.mxu0 0
  %4814 = vmatpush2.bf16.msra.mxu0 0
  %4815 = vmatprep.subr.bf16.mxu0 0
  %4816 = vmatpush2.bf16.msra.mxu0 0
  %4817 = vmatprep.subr.bf16.mxu0 0
  %4818 = vmatpush2.bf16.msra.mxu0 0
  %4819 = vmatprep.mubr.bf16.mxu0 0
  %4820 = vmatmul.mubr.bf16.gmra.mxu0 %v4779
  %v4821 = vpop.f32.mrf.mxu0
  %v4822 = vadd.f32 %v4757, %v4821
  %v4823 = vpop.f32.mrf.mxu0
  %v4824 = vpop.f32.mrf.mxu0
  %v4825 = vadd.f32 %v4760, %v4824
  %v4826 = vpop.f32.mrf.mxu0
  %4827 = vmatprep.mubr.bf16.mxu0 0
  %4828 = vmatmul.mubr.bf16.gmra.mxu0 %v4782
  %v4829 = vpop.f32.mrf.mxu0
  %v4830 = vadd.f32 %v4765, %v4829
  %v4831 = vpop.f32.mrf.mxu0
  %v4832 = vpop.f32.mrf.mxu0
  %v4833 = vpop.f32.mrf.mxu0
  %4834 = vdwg.mxu0
  %s4835 = scalar_lea.vmem %s5, 24
  %v4836 = vld [vmem:[%s4835] sm:$0xf]
  %v4837 = vld [vmem:[%s4835 + $0x4] sm:$0xf]
  %v4838 = vld [vmem:[%s4835 + $0x8] sm:$0x1]
  %v4842 = vunpack.c.l.b16 %v4836
  %v4843 = vunpack.c.l.b16 %v4837
  %v4844 = vunpack.c.l.b16 %v4838
  %v4845 = vpack.c.b16 %v4843, %v4842
  %v4846 = vpack.c.b16 %v4844, %v4844
  %v4848 = vsel %vm4712, %v4845, 0
  %v4851 = vsel %vm4712, %v4846, 0
  %v4854 = vsel %vm165, %v4683, 0
  %4856 = vmatprep.subr.bf16.mxu0 0
  %4857 = vmatpush1.bf16.msra.mxu0 0
  %4858 = vmatprep.subr.bf16.mxu0 0
  %4859 = vmatpush1.bf16.msra.mxu0 0
  %4860 = vmatprep.subr.bf16.mxu0 0
  %4861 = vmatpush1.bf16.msra.mxu0 0
  %4862 = vmatprep.subr.bf16.mxu0 0
  %4863 = vmatpush1.bf16.msra.mxu0 0
  %4864 = vmatprep.subr.bf16.mxu0 0
  %4865 = vmatpush1.bf16.msra.mxu0 0
  %4866 = vmatprep.subr.bf16.mxu0 0
  %4867 = vmatpush1.bf16.msra.mxu0 %v4854
  %4868 = vmatprep.subr.bf16.mxu0 0
  %4869 = vmatpush1.bf16.msra.mxu0 %v4667
  %4870 = vmatprep.subr.bf16.mxu0 0
  %4871 = vmatpush1.bf16.msra.mxu0 %v4651
  %4872 = vmatprep.subr.bf16.mxu0 0
  %4873 = vmatpush2.bf16.msra.mxu0 0
  %4874 = vmatprep.subr.bf16.mxu0 0
  %4875 = vmatpush2.bf16.msra.mxu0 0
  %4876 = vmatprep.subr.bf16.mxu0 0
  %4877 = vmatpush2.bf16.msra.mxu0 0
  %4878 = vmatprep.subr.bf16.mxu0 0
  %4879 = vmatpush2.bf16.msra.mxu0 0
  %4880 = vmatprep.subr.bf16.mxu0 0
  %4881 = vmatpush2.bf16.msra.mxu0 0
  %4882 = vmatprep.subr.bf16.mxu0 0
  %4883 = vmatpush2.bf16.msra.mxu0 0
  %4884 = vmatprep.subr.bf16.mxu0 0
  %4885 = vmatpush2.bf16.msra.mxu0 0
  %4886 = vmatprep.subr.bf16.mxu0 0
  %4887 = vmatpush2.bf16.msra.mxu0 0
  %4888 = vmatprep.mubr.bf16.mxu0 0
  %4889 = vmatmul.mubr.bf16.gmra.mxu0 %v4848
  %v4890 = vpop.f32.mrf.mxu0
  %v4891 = vadd.f32 0.0, %v4890
  %v4892 = vpop.f32.mrf.mxu0
  %v4893 = vpop.f32.mrf.mxu0
  %v4894 = vadd.f32 0.0, %v4893
  %v4895 = vpop.f32.mrf.mxu0
  %4896 = vmatprep.mubr.bf16.mxu0 0
  %4897 = vmatmul.mubr.bf16.gmra.mxu0 %v4851
  %v4898 = vpop.f32.mrf.mxu0
  %v4899 = vadd.f32 0.0, %v4898
  %v4900 = vpop.f32.mrf.mxu0
  %v4901 = vpop.f32.mrf.mxu0
  %v4902 = vpop.f32.mrf.mxu0
  %4903 = vdwg.mxu0
  %v4904 = vadd.f32 %v4822, %v4891
  %v4905 = vadd.f32 %v4825, %v4894
  %v4906 = vadd.f32 %v4830, %v4899
  %s4907 = scalar_lea.vmem %s5, 36
  %v4908 = vld [vmem:[%s4907] sm:$0xf]
  %v4909 = vld [vmem:[%s4907 + $0x4] sm:$0xf]
  %v4910 = vld [vmem:[%s4907 + $0x8] sm:$0x1]
  %v4914 = vunpack.c.l.b16 %v4908
  %v4915 = vunpack.c.l.b16 %v4909
  %v4916 = vunpack.c.l.b16 %v4910
  %v4917 = vpack.c.b16 %v4915, %v4914
  %v4918 = vpack.c.b16 %v4916, %v4916
  %v4920 = vsel %vm4712, %v4917, 0
  %v4923 = vsel %vm4712, %v4918, 0
  %v4926 = vsel %vm165, %v4684, 0
  %4928 = vmatprep.subr.bf16.mxu0 0
  %4929 = vmatpush1.bf16.msra.mxu0 0
  %4930 = vmatprep.subr.bf16.mxu0 0
  %4931 = vmatpush1.bf16.msra.mxu0 0
  %4932 = vmatprep.subr.bf16.mxu0 0
  %4933 = vmatpush1.bf16.msra.mxu0 0
  %4934 = vmatprep.subr.bf16.mxu0 0
  %4935 = vmatpush1.bf16.msra.mxu0 0
  %4936 = vmatprep.subr.bf16.mxu0 0
  %4937 = vmatpush1.bf16.msra.mxu0 0
  %4938 = vmatprep.subr.bf16.mxu0 0
  %4939 = vmatpush1.bf16.msra.mxu0 %v4926
  %4940 = vmatprep.subr.bf16.mxu0 0
  %4941 = vmatpush1.bf16.msra.mxu0 %v4668
  %4942 = vmatprep.subr.bf16.mxu0 0
  %4943 = vmatpush1.bf16.msra.mxu0 %v4652
  %4944 = vmatprep.subr.bf16.mxu0 0
  %4945 = vmatpush2.bf16.msra.mxu0 0
  %4946 = vmatprep.subr.bf16.mxu0 0
  %4947 = vmatpush2.bf16.msra.mxu0 0
  %4948 = vmatprep.subr.bf16.mxu0 0
  %4949 = vmatpush2.bf16.msra.mxu0 0
  %4950 = vmatprep.subr.bf16.mxu0 0
  %4951 = vmatpush2.bf16.msra.mxu0 0
  %4952 = vmatprep.subr.bf16.mxu0 0
  %4953 = vmatpush2.bf16.msra.mxu0 0
  %4954 = vmatprep.subr.bf16.mxu0 0
  %4955 = vmatpush2.bf16.msra.mxu0 0
  %4956 = vmatprep.subr.bf16.mxu0 0
  %4957 = vmatpush2.bf16.msra.mxu0 0
  %4958 = vmatprep.subr.bf16.mxu0 0
  %4959 = vmatpush2.bf16.msra.mxu0 0
  %4960 = vmatprep.mubr.bf16.mxu0 0
  %4961 = vmatmul.mubr.bf16.gmra.mxu0 %v4920
  %v4962 = vpop.f32.mrf.mxu0
  %v4963 = vadd.f32 0.0, %v4962
  %v4964 = vpop.f32.mrf.mxu0
  %v4965 = vpop.f32.mrf.mxu0
  %v4966 = vadd.f32 0.0, %v4965
  %v4967 = vpop.f32.mrf.mxu0
  %4968 = vmatprep.mubr.bf16.mxu0 0
  %4969 = vmatmul.mubr.bf16.gmra.mxu0 %v4923
  %v4970 = vpop.f32.mrf.mxu0
  %v4971 = vadd.f32 0.0, %v4970
  %v4972 = vpop.f32.mrf.mxu0
  %v4973 = vpop.f32.mrf.mxu0
  %v4974 = vpop.f32.mrf.mxu0
  %4975 = vdwg.mxu0
  %v4976 = vadd.f32 %v4904, %v4963
  %v4977 = vadd.f32 %v4905, %v4966
  %v4978 = vadd.f32 %v4906, %v4971
  %s4979 = scalar_lea.vmem %s5, 48
  %v4980 = vld [vmem:[%s4979] sm:$0xf]
  %v4981 = vld [vmem:[%s4979 + $0x4] sm:$0xf]
  %v4982 = vld [vmem:[%s4979 + $0x8] sm:$0x1]
  %v4986 = vunpack.c.l.b16 %v4980
  %v4987 = vunpack.c.l.b16 %v4981
  %v4988 = vunpack.c.l.b16 %v4982
  %v4989 = vpack.c.b16 %v4987, %v4986
  %v4990 = vpack.c.b16 %v4988, %v4988
  %v4992 = vsel %vm4712, %v4989, 0
  %v4995 = vsel %vm4712, %v4990, 0
  %v4998 = vsel %vm165, %v4685, 0
  %5000 = vmatprep.subr.bf16.mxu0 0
  %5001 = vmatpush1.bf16.msra.mxu0 0
  %5002 = vmatprep.subr.bf16.mxu0 0
  %5003 = vmatpush1.bf16.msra.mxu0 0
  %5004 = vmatprep.subr.bf16.mxu0 0
  %5005 = vmatpush1.bf16.msra.mxu0 0
  %5006 = vmatprep.subr.bf16.mxu0 0
  %5007 = vmatpush1.bf16.msra.mxu0 0
  %5008 = vmatprep.subr.bf16.mxu0 0
  %5009 = vmatpush1.bf16.msra.mxu0 0
  %5010 = vmatprep.subr.bf16.mxu0 0
  %5011 = vmatpush1.bf16.msra.mxu0 %v4998
  %5012 = vmatprep.subr.bf16.mxu0 0
  %5013 = vmatpush1.bf16.msra.mxu0 %v4669
  %5014 = vmatprep.subr.bf16.mxu0 0
  %5015 = vmatpush1.bf16.msra.mxu0 %v4653
  %5016 = vmatprep.subr.bf16.mxu0 0
  %5017 = vmatpush2.bf16.msra.mxu0 0
  %5018 = vmatprep.subr.bf16.mxu0 0
  %5019 = vmatpush2.bf16.msra.mxu0 0
  %5020 = vmatprep.subr.bf16.mxu0 0
  %5021 = vmatpush2.bf16.msra.mxu0 0
  %5022 = vmatprep.subr.bf16.mxu0 0
  %5023 = vmatpush2.bf16.msra.mxu0 0
  %5024 = vmatprep.subr.bf16.mxu0 0
  %5025 = vmatpush2.bf16.msra.mxu0 0
  %5026 = vmatprep.subr.bf16.mxu0 0
  %5027 = vmatpush2.bf16.msra.mxu0 0
  %5028 = vmatprep.subr.bf16.mxu0 0
  %5029 = vmatpush2.bf16.msra.mxu0 0
  %5030 = vmatprep.subr.bf16.mxu0 0
  %5031 = vmatpush2.bf16.msra.mxu0 0
  %5032 = vmatprep.mubr.bf16.mxu0 0
  %5033 = vmatmul.mubr.bf16.gmra.mxu0 %v4992
  %v5034 = vpop.f32.mrf.mxu0
  %v5035 = vadd.f32 0.0, %v5034
  %v5036 = vpop.f32.mrf.mxu0
  %v5037 = vpop.f32.mrf.mxu0
  %v5038 = vadd.f32 0.0, %v5037
  %v5039 = vpop.f32.mrf.mxu0
  %5040 = vmatprep.mubr.bf16.mxu0 0
  %5041 = vmatmul.mubr.bf16.gmra.mxu0 %v4995
  %v5042 = vpop.f32.mrf.mxu0
  %v5043 = vadd.f32 0.0, %v5042
  %v5044 = vpop.f32.mrf.mxu0
  %v5045 = vpop.f32.mrf.mxu0
  %v5046 = vpop.f32.mrf.mxu0
  %5047 = vdwg.mxu0
  %v5048 = vadd.f32 %v4976, %v5035
  %v5049 = vadd.f32 %v4977, %v5038
  %v5050 = vadd.f32 %v4978, %v5043
  %s5051 = scalar_lea.vmem %s5, 60
  %v5052 = vld [vmem:[%s5051] sm:$0xf]
  %v5053 = vld [vmem:[%s5051 + $0x4] sm:$0xf]
  %v5054 = vld [vmem:[%s5051 + $0x8] sm:$0x1]
  %v5058 = vunpack.c.l.b16 %v5052
  %v5059 = vunpack.c.l.b16 %v5053
  %v5060 = vunpack.c.l.b16 %v5054
  %v5061 = vpack.c.b16 %v5059, %v5058
  %v5062 = vpack.c.b16 %v5060, %v5060
  %v5064 = vsel %vm4712, %v5061, 0
  %v5067 = vsel %vm4712, %v5062, 0
  %v5070 = vsel %vm165, %v4686, 0
  %5072 = vmatprep.subr.bf16.mxu0 0
  %5073 = vmatpush1.bf16.msra.mxu0 0
  %5074 = vmatprep.subr.bf16.mxu0 0
  %5075 = vmatpush1.bf16.msra.mxu0 0
  %5076 = vmatprep.subr.bf16.mxu0 0
  %5077 = vmatpush1.bf16.msra.mxu0 0
  %5078 = vmatprep.subr.bf16.mxu0 0
  %5079 = vmatpush1.bf16.msra.mxu0 0
  %5080 = vmatprep.subr.bf16.mxu0 0
  %5081 = vmatpush1.bf16.msra.mxu0 0
  %5082 = vmatprep.subr.bf16.mxu0 0
  %5083 = vmatpush1.bf16.msra.mxu0 %v5070
  %5084 = vmatprep.subr.bf16.mxu0 0
  %5085 = vmatpush1.bf16.msra.mxu0 %v4670
  %5086 = vmatprep.subr.bf16.mxu0 0
  %5087 = vmatpush1.bf16.msra.mxu0 %v4654
  %5088 = vmatprep.subr.bf16.mxu0 0
  %5089 = vmatpush2.bf16.msra.mxu0 0
  %5090 = vmatprep.subr.bf16.mxu0 0
  %5091 = vmatpush2.bf16.msra.mxu0 0
  %5092 = vmatprep.subr.bf16.mxu0 0
  %5093 = vmatpush2.bf16.msra.mxu0 0
  %5094 = vmatprep.subr.bf16.mxu0 0
  %5095 = vmatpush2.bf16.msra.mxu0 0
  %5096 = vmatprep.subr.bf16.mxu0 0
  %5097 = vmatpush2.bf16.msra.mxu0 0
  %5098 = vmatprep.subr.bf16.mxu0 0
  %5099 = vmatpush2.bf16.msra.mxu0 0
  %5100 = vmatprep.subr.bf16.mxu0 0
  %5101 = vmatpush2.bf16.msra.mxu0 0
  %5102 = vmatprep.subr.bf16.mxu0 0
  %5103 = vmatpush2.bf16.msra.mxu0 0
  %5104 = vmatprep.mubr.bf16.mxu0 0
  %5105 = vmatmul.mubr.bf16.gmra.mxu0 %v5064
  %v5106 = vpop.f32.mrf.mxu0
  %v5107 = vadd.f32 0.0, %v5106
  %v5108 = vpop.f32.mrf.mxu0
  %v5109 = vpop.f32.mrf.mxu0
  %v5110 = vadd.f32 0.0, %v5109
  %v5111 = vpop.f32.mrf.mxu0
  %5112 = vmatprep.mubr.bf16.mxu0 0
  %5113 = vmatmul.mubr.bf16.gmra.mxu0 %v5067
  %v5114 = vpop.f32.mrf.mxu0
  %v5115 = vadd.f32 0.0, %v5114
  %v5116 = vpop.f32.mrf.mxu0
  %v5117 = vpop.f32.mrf.mxu0
  %v5118 = vpop.f32.mrf.mxu0
  %5119 = vdwg.mxu0
  %v5120 = vadd.f32 %v5048, %v5107
  %v5121 = vadd.f32 %v5049, %v5110
  %v5122 = vadd.f32 %v5050, %v5115
  %s5123 = scalar_lea.vmem %s5, 72
  %v5124 = vld [vmem:[%s5123] sm:$0xf]
  %v5125 = vld [vmem:[%s5123 + $0x4] sm:$0xf]
  %v5126 = vld [vmem:[%s5123 + $0x8] sm:$0x1]
  %v5130 = vunpack.c.l.b16 %v5124
  %v5131 = vunpack.c.l.b16 %v5125
  %v5132 = vunpack.c.l.b16 %v5126
  %v5133 = vpack.c.b16 %v5131, %v5130
  %v5134 = vpack.c.b16 %v5132, %v5132
  %v5136 = vsel %vm4712, %v5133, 0
  %v5139 = vsel %vm4712, %v5134, 0
  %v5142 = vsel %vm165, %v4687, 0
  %5144 = vmatprep.subr.bf16.mxu0 0
  %5145 = vmatpush1.bf16.msra.mxu0 0
  %5146 = vmatprep.subr.bf16.mxu0 0
  %5147 = vmatpush1.bf16.msra.mxu0 0
  %5148 = vmatprep.subr.bf16.mxu0 0
  %5149 = vmatpush1.bf16.msra.mxu0 0
  %5150 = vmatprep.subr.bf16.mxu0 0
  %5151 = vmatpush1.bf16.msra.mxu0 0
  %5152 = vmatprep.subr.bf16.mxu0 0
  %5153 = vmatpush1.bf16.msra.mxu0 0
  %5154 = vmatprep.subr.bf16.mxu0 0
  %5155 = vmatpush1.bf16.msra.mxu0 %v5142
  %5156 = vmatprep.subr.bf16.mxu0 0
  %5157 = vmatpush1.bf16.msra.mxu0 %v4671
  %5158 = vmatprep.subr.bf16.mxu0 0
  %5159 = vmatpush1.bf16.msra.mxu0 %v4655
  %5160 = vmatprep.subr.bf16.mxu0 0
  %5161 = vmatpush2.bf16.msra.mxu0 0
  %5162 = vmatprep.subr.bf16.mxu0 0
  %5163 = vmatpush2.bf16.msra.mxu0 0
  %5164 = vmatprep.subr.bf16.mxu0 0
  %5165 = vmatpush2.bf16.msra.mxu0 0
  %5166 = vmatprep.subr.bf16.mxu0 0
  %5167 = vmatpush2.bf16.msra.mxu0 0
  %5168 = vmatprep.subr.bf16.mxu0 0
  %5169 = vmatpush2.bf16.msra.mxu0 0
  %5170 = vmatprep.subr.bf16.mxu0 0
  %5171 = vmatpush2.bf16.msra.mxu0 0
  %5172 = vmatprep.subr.bf16.mxu0 0
  %5173 = vmatpush2.bf16.msra.mxu0 0
  %5174 = vmatprep.subr.bf16.mxu0 0
  %5175 = vmatpush2.bf16.msra.mxu0 0
  %5176 = vmatprep.mubr.bf16.mxu0 0
  %5177 = vmatmul.mubr.bf16.gmra.mxu0 %v5136
  %v5178 = vpop.f32.mrf.mxu0
  %v5179 = vadd.f32 0.0, %v5178
  %v5180 = vpop.f32.mrf.mxu0
  %v5181 = vpop.f32.mrf.mxu0
  %v5182 = vadd.f32 0.0, %v5181
  %v5183 = vpop.f32.mrf.mxu0
  %5184 = vmatprep.mubr.bf16.mxu0 0
  %5185 = vmatmul.mubr.bf16.gmra.mxu0 %v5139
  %v5186 = vpop.f32.mrf.mxu0
  %v5187 = vadd.f32 0.0, %v5186
  %v5188 = vpop.f32.mrf.mxu0
  %v5189 = vpop.f32.mrf.mxu0
  %v5190 = vpop.f32.mrf.mxu0
  %5191 = vdwg.mxu0
  %v5192 = vadd.f32 %v5120, %v5179
  %v5193 = vadd.f32 %v5121, %v5182
  %v5194 = vadd.f32 %v5122, %v5187
  %s5195 = scalar_lea.vmem %s5, 84
  %v5196 = vld [vmem:[%s5195] sm:$0xf]
  %v5197 = vld [vmem:[%s5195 + $0x4] sm:$0xf]
  %v5198 = vld [vmem:[%s5195 + $0x8] sm:$0x1]
  %v5202 = vunpack.c.l.b16 %v5196
  %v5203 = vunpack.c.l.b16 %v5197
  %v5204 = vunpack.c.l.b16 %v5198
  %v5205 = vpack.c.b16 %v5203, %v5202
  %v5206 = vpack.c.b16 %v5204, %v5204
  %v5208 = vsel %vm4712, %v5205, 0
  %v5211 = vsel %vm4712, %v5206, 0
  %v5214 = vsel %vm165, %v4688, 0
  %5216 = vmatprep.subr.bf16.mxu0 0
  %5217 = vmatpush1.bf16.msra.mxu0 0
  %5218 = vmatprep.subr.bf16.mxu0 0
  %5219 = vmatpush1.bf16.msra.mxu0 0
  %5220 = vmatprep.subr.bf16.mxu0 0
  %5221 = vmatpush1.bf16.msra.mxu0 0
  %5222 = vmatprep.subr.bf16.mxu0 0
  %5223 = vmatpush1.bf16.msra.mxu0 0
  %5224 = vmatprep.subr.bf16.mxu0 0
  %5225 = vmatpush1.bf16.msra.mxu0 0
  %5226 = vmatprep.subr.bf16.mxu0 0
  %5227 = vmatpush1.bf16.msra.mxu0 %v5214
  %5228 = vmatprep.subr.bf16.mxu0 0
  %5229 = vmatpush1.bf16.msra.mxu0 %v4672
  %5230 = vmatprep.subr.bf16.mxu0 0
  %5231 = vmatpush1.bf16.msra.mxu0 %v4656
  %5232 = vmatprep.subr.bf16.mxu0 0
  %5233 = vmatpush2.bf16.msra.mxu0 0
  %5234 = vmatprep.subr.bf16.mxu0 0
  %5235 = vmatpush2.bf16.msra.mxu0 0
  %5236 = vmatprep.subr.bf16.mxu0 0
  %5237 = vmatpush2.bf16.msra.mxu0 0
  %5238 = vmatprep.subr.bf16.mxu0 0
  %5239 = vmatpush2.bf16.msra.mxu0 0
  %5240 = vmatprep.subr.bf16.mxu0 0
  %5241 = vmatpush2.bf16.msra.mxu0 0
  %5242 = vmatprep.subr.bf16.mxu0 0
  %5243 = vmatpush2.bf16.msra.mxu0 0
  %5244 = vmatprep.subr.bf16.mxu0 0
  %5245 = vmatpush2.bf16.msra.mxu0 0
  %5246 = vmatprep.subr.bf16.mxu0 0
  %5247 = vmatpush2.bf16.msra.mxu0 0
  %5248 = vmatprep.mubr.bf16.mxu0 0
  %5249 = vmatmul.mubr.bf16.gmra.mxu0 %v5208
  %v5250 = vpop.f32.mrf.mxu0
  %v5251 = vadd.f32 0.0, %v5250
  %v5252 = vpop.f32.mrf.mxu0
  %v5253 = vpop.f32.mrf.mxu0
  %v5254 = vadd.f32 0.0, %v5253
  %v5255 = vpop.f32.mrf.mxu0
  %5256 = vmatprep.mubr.bf16.mxu0 0
  %5257 = vmatmul.mubr.bf16.gmra.mxu0 %v5211
  %v5258 = vpop.f32.mrf.mxu0
  %v5259 = vadd.f32 0.0, %v5258
  %v5260 = vpop.f32.mrf.mxu0
  %v5261 = vpop.f32.mrf.mxu0
  %v5262 = vpop.f32.mrf.mxu0
  %5263 = vdwg.mxu0
  %v5264 = vadd.f32 %v5192, %v5251
  %v5265 = vadd.f32 %v5193, %v5254
  %v5266 = vadd.f32 %v5194, %v5259
  %s5267 = scalar_lea.vmem %s5, 96
  %v5268 = vld [vmem:[%s5267] sm:$0xf]
  %v5269 = vld [vmem:[%s5267 + $0x4] sm:$0xf]
  %v5270 = vld [vmem:[%s5267 + $0x8] sm:$0x1]
  %v5274 = vunpack.c.l.b16 %v5268
  %v5275 = vunpack.c.l.b16 %v5269
  %v5276 = vunpack.c.l.b16 %v5270
  %v5277 = vpack.c.b16 %v5275, %v5274
  %v5278 = vpack.c.b16 %v5276, %v5276
  %v5280 = vsel %vm4712, %v5277, 0
  %v5283 = vsel %vm4712, %v5278, 0
  %v5286 = vsel %vm165, %v4689, 0
  %5288 = vmatprep.subr.bf16.mxu0 0
  %5289 = vmatpush1.bf16.msra.mxu0 0
  %5290 = vmatprep.subr.bf16.mxu0 0
  %5291 = vmatpush1.bf16.msra.mxu0 0
  %5292 = vmatprep.subr.bf16.mxu0 0
  %5293 = vmatpush1.bf16.msra.mxu0 0
  %5294 = vmatprep.subr.bf16.mxu0 0
  %5295 = vmatpush1.bf16.msra.mxu0 0
  %5296 = vmatprep.subr.bf16.mxu0 0
  %5297 = vmatpush1.bf16.msra.mxu0 0
  %5298 = vmatprep.subr.bf16.mxu0 0
  %5299 = vmatpush1.bf16.msra.mxu0 %v5286
  %5300 = vmatprep.subr.bf16.mxu0 0
  %5301 = vmatpush1.bf16.msra.mxu0 %v4673
  %5302 = vmatprep.subr.bf16.mxu0 0
  %5303 = vmatpush1.bf16.msra.mxu0 %v4657
  %5304 = vmatprep.subr.bf16.mxu0 0
  %5305 = vmatpush2.bf16.msra.mxu0 0
  %5306 = vmatprep.subr.bf16.mxu0 0
  %5307 = vmatpush2.bf16.msra.mxu0 0
  %5308 = vmatprep.subr.bf16.mxu0 0
  %5309 = vmatpush2.bf16.msra.mxu0 0
  %5310 = vmatprep.subr.bf16.mxu0 0
  %5311 = vmatpush2.bf16.msra.mxu0 0
  %5312 = vmatprep.subr.bf16.mxu0 0
  %5313 = vmatpush2.bf16.msra.mxu0 0
  %5314 = vmatprep.subr.bf16.mxu0 0
  %5315 = vmatpush2.bf16.msra.mxu0 0
  %5316 = vmatprep.subr.bf16.mxu0 0
  %5317 = vmatpush2.bf16.msra.mxu0 0
  %5318 = vmatprep.subr.bf16.mxu0 0
  %5319 = vmatpush2.bf16.msra.mxu0 0
  %5320 = vmatprep.mubr.bf16.mxu0 0
  %5321 = vmatmul.mubr.bf16.gmra.mxu0 %v5280
  %v5322 = vpop.f32.mrf.mxu0
  %v5323 = vadd.f32 0.0, %v5322
  %v5324 = vpop.f32.mrf.mxu0
  %v5325 = vpop.f32.mrf.mxu0
  %v5326 = vadd.f32 0.0, %v5325
  %v5327 = vpop.f32.mrf.mxu0
  %5328 = vmatprep.mubr.bf16.mxu0 0
  %5329 = vmatmul.mubr.bf16.gmra.mxu0 %v5283
  %v5330 = vpop.f32.mrf.mxu0
  %v5331 = vadd.f32 0.0, %v5330
  %v5332 = vpop.f32.mrf.mxu0
  %v5333 = vpop.f32.mrf.mxu0
  %v5334 = vpop.f32.mrf.mxu0
  %5335 = vdwg.mxu0
  %v5336 = vadd.f32 %v5264, %v5323
  %v5337 = vadd.f32 %v5265, %v5326
  %v5338 = vadd.f32 %v5266, %v5331
  %s5339 = scalar_lea.vmem %s5, 108
  %v5340 = vld [vmem:[%s5339] sm:$0xf]
  %v5341 = vld [vmem:[%s5339 + $0x4] sm:$0xf]
  %v5342 = vld [vmem:[%s5339 + $0x8] sm:$0x1]
  %v5346 = vunpack.c.l.b16 %v5340
  %v5347 = vunpack.c.l.b16 %v5341
  %v5348 = vunpack.c.l.b16 %v5342
  %v5349 = vpack.c.b16 %v5347, %v5346
  %v5350 = vpack.c.b16 %v5348, %v5348
  %v5352 = vsel %vm4712, %v5349, 0
  %v5355 = vsel %vm4712, %v5350, 0
  %v5358 = vsel %vm165, %v4690, 0
  %5360 = vmatprep.subr.bf16.mxu0 0
  %5361 = vmatpush1.bf16.msra.mxu0 0
  %5362 = vmatprep.subr.bf16.mxu0 0
  %5363 = vmatpush1.bf16.msra.mxu0 0
  %5364 = vmatprep.subr.bf16.mxu0 0
  %5365 = vmatpush1.bf16.msra.mxu0 0
  %5366 = vmatprep.subr.bf16.mxu0 0
  %5367 = vmatpush1.bf16.msra.mxu0 0
  %5368 = vmatprep.subr.bf16.mxu0 0
  %5369 = vmatpush1.bf16.msra.mxu0 0
  %5370 = vmatprep.subr.bf16.mxu0 0
  %5371 = vmatpush1.bf16.msra.mxu0 %v5358
  %5372 = vmatprep.subr.bf16.mxu0 0
  %5373 = vmatpush1.bf16.msra.mxu0 %v4674
  %5374 = vmatprep.subr.bf16.mxu0 0
  %5375 = vmatpush1.bf16.msra.mxu0 %v4658
  %5376 = vmatprep.subr.bf16.mxu0 0
  %5377 = vmatpush2.bf16.msra.mxu0 0
  %5378 = vmatprep.subr.bf16.mxu0 0
  %5379 = vmatpush2.bf16.msra.mxu0 0
  %5380 = vmatprep.subr.bf16.mxu0 0
  %5381 = vmatpush2.bf16.msra.mxu0 0
  %5382 = vmatprep.subr.bf16.mxu0 0
  %5383 = vmatpush2.bf16.msra.mxu0 0
  %5384 = vmatprep.subr.bf16.mxu0 0
  %5385 = vmatpush2.bf16.msra.mxu0 0
  %5386 = vmatprep.subr.bf16.mxu0 0
  %5387 = vmatpush2.bf16.msra.mxu0 0
  %5388 = vmatprep.subr.bf16.mxu0 0
  %5389 = vmatpush2.bf16.msra.mxu0 0
  %5390 = vmatprep.subr.bf16.mxu0 0
  %5391 = vmatpush2.bf16.msra.mxu0 0
  %5392 = vmatprep.mubr.bf16.mxu0 0
  %5393 = vmatmul.mubr.bf16.gmra.mxu0 %v5352
  %v5394 = vpop.f32.mrf.mxu0
  %v5395 = vadd.f32 0.0, %v5394
  %v5396 = vpop.f32.mrf.mxu0
  %v5397 = vpop.f32.mrf.mxu0
  %v5398 = vadd.f32 0.0, %v5397
  %v5399 = vpop.f32.mrf.mxu0
  %5400 = vmatprep.mubr.bf16.mxu0 0
  %5401 = vmatmul.mubr.bf16.gmra.mxu0 %v5355
  %v5402 = vpop.f32.mrf.mxu0
  %v5403 = vadd.f32 0.0, %v5402
  %v5404 = vpop.f32.mrf.mxu0
  %v5405 = vpop.f32.mrf.mxu0
  %v5406 = vpop.f32.mrf.mxu0
  %5407 = vdwg.mxu0
  %v5408 = vadd.f32 %v5336, %v5395
  %v5409 = vadd.f32 %v5337, %v5398
  %v5410 = vadd.f32 %v5338, %v5403
  %s5411 = scalar_lea.vmem %s5, 120
  %v5412 = vld [vmem:[%s5411] sm:$0xf]
  %v5413 = vld [vmem:[%s5411 + $0x4] sm:$0xf]
  %v5414 = vld [vmem:[%s5411 + $0x8] sm:$0x1]
  %v5418 = vunpack.c.l.b16 %v5412
  %v5419 = vunpack.c.l.b16 %v5413
  %v5420 = vunpack.c.l.b16 %v5414
  %v5421 = vpack.c.b16 %v5419, %v5418
  %v5422 = vpack.c.b16 %v5420, %v5420
  %v5424 = vsel %vm4712, %v5421, 0
  %v5427 = vsel %vm4712, %v5422, 0
  %v5430 = vsel %vm165, %v4691, 0
  %5432 = vmatprep.subr.bf16.mxu0 0
  %5433 = vmatpush1.bf16.msra.mxu0 0
  %5434 = vmatprep.subr.bf16.mxu0 0
  %5435 = vmatpush1.bf16.msra.mxu0 0
  %5436 = vmatprep.subr.bf16.mxu0 0
  %5437 = vmatpush1.bf16.msra.mxu0 0
  %5438 = vmatprep.subr.bf16.mxu0 0
  %5439 = vmatpush1.bf16.msra.mxu0 0
  %5440 = vmatprep.subr.bf16.mxu0 0
  %5441 = vmatpush1.bf16.msra.mxu0 0
  %5442 = vmatprep.subr.bf16.mxu0 0
  %5443 = vmatpush1.bf16.msra.mxu0 %v5430
  %5444 = vmatprep.subr.bf16.mxu0 0
  %5445 = vmatpush1.bf16.msra.mxu0 %v4675
  %5446 = vmatprep.subr.bf16.mxu0 0
  %5447 = vmatpush1.bf16.msra.mxu0 %v4659
  %5448 = vmatprep.subr.bf16.mxu0 0
  %5449 = vmatpush2.bf16.msra.mxu0 0
  %5450 = vmatprep.subr.bf16.mxu0 0
  %5451 = vmatpush2.bf16.msra.mxu0 0
  %5452 = vmatprep.subr.bf16.mxu0 0
  %5453 = vmatpush2.bf16.msra.mxu0 0
  %5454 = vmatprep.subr.bf16.mxu0 0
  %5455 = vmatpush2.bf16.msra.mxu0 0
  %5456 = vmatprep.subr.bf16.mxu0 0
  %5457 = vmatpush2.bf16.msra.mxu0 0
  %5458 = vmatprep.subr.bf16.mxu0 0
  %5459 = vmatpush2.bf16.msra.mxu0 0
  %5460 = vmatprep.subr.bf16.mxu0 0
  %5461 = vmatpush2.bf16.msra.mxu0 0
  %5462 = vmatprep.subr.bf16.mxu0 0
  %5463 = vmatpush2.bf16.msra.mxu0 0
  %5464 = vmatprep.mubr.bf16.mxu0 0
  %5465 = vmatmul.mubr.bf16.gmra.mxu0 %v5424
  %v5466 = vpop.f32.mrf.mxu0
  %v5467 = vadd.f32 0.0, %v5466
  %v5468 = vpop.f32.mrf.mxu0
  %v5469 = vpop.f32.mrf.mxu0
  %v5470 = vadd.f32 0.0, %v5469
  %v5471 = vpop.f32.mrf.mxu0
  %5472 = vmatprep.mubr.bf16.mxu0 0
  %5473 = vmatmul.mubr.bf16.gmra.mxu0 %v5427
  %v5474 = vpop.f32.mrf.mxu0
  %v5475 = vadd.f32 0.0, %v5474
  %v5476 = vpop.f32.mrf.mxu0
  %v5477 = vpop.f32.mrf.mxu0
  %v5478 = vpop.f32.mrf.mxu0
  %5479 = vdwg.mxu0
  %v5480 = vadd.f32 %v5408, %v5467
  %v5481 = vadd.f32 %v5409, %v5470
  %v5482 = vadd.f32 %v5410, %v5475
  %s5483 = scalar_lea.vmem %s5, 132
  %v5484 = vld [vmem:[%s5483] sm:$0xf]
  %v5485 = vld [vmem:[%s5483 + $0x4] sm:$0xf]
  %v5486 = vld [vmem:[%s5483 + $0x8] sm:$0x1]
  %v5490 = vunpack.c.l.b16 %v5484
  %v5491 = vunpack.c.l.b16 %v5485
  %v5492 = vunpack.c.l.b16 %v5486
  %v5493 = vpack.c.b16 %v5491, %v5490
  %v5494 = vpack.c.b16 %v5492, %v5492
  %v5496 = vsel %vm4712, %v5493, 0
  %v5499 = vsel %vm4712, %v5494, 0
  %v5502 = vsel %vm165, %v4692, 0
  %5504 = vmatprep.subr.bf16.mxu0 0
  %5505 = vmatpush1.bf16.msra.mxu0 0
  %5506 = vmatprep.subr.bf16.mxu0 0
  %5507 = vmatpush1.bf16.msra.mxu0 0
  %5508 = vmatprep.subr.bf16.mxu0 0
  %5509 = vmatpush1.bf16.msra.mxu0 0
  %5510 = vmatprep.subr.bf16.mxu0 0
  %5511 = vmatpush1.bf16.msra.mxu0 0
  %5512 = vmatprep.subr.bf16.mxu0 0
  %5513 = vmatpush1.bf16.msra.mxu0 0
  %5514 = vmatprep.subr.bf16.mxu0 0
  %5515 = vmatpush1.bf16.msra.mxu0 %v5502
  %5516 = vmatprep.subr.bf16.mxu0 0
  %5517 = vmatpush1.bf16.msra.mxu0 %v4676
  %5518 = vmatprep.subr.bf16.mxu0 0
  %5519 = vmatpush1.bf16.msra.mxu0 %v4660
  %5520 = vmatprep.subr.bf16.mxu0 0
  %5521 = vmatpush2.bf16.msra.mxu0 0
  %5522 = vmatprep.subr.bf16.mxu0 0
  %5523 = vmatpush2.bf16.msra.mxu0 0
  %5524 = vmatprep.subr.bf16.mxu0 0
  %5525 = vmatpush2.bf16.msra.mxu0 0
  %5526 = vmatprep.subr.bf16.mxu0 0
  %5527 = vmatpush2.bf16.msra.mxu0 0
  %5528 = vmatprep.subr.bf16.mxu0 0
  %5529 = vmatpush2.bf16.msra.mxu0 0
  %5530 = vmatprep.subr.bf16.mxu0 0
  %5531 = vmatpush2.bf16.msra.mxu0 0
  %5532 = vmatprep.subr.bf16.mxu0 0
  %5533 = vmatpush2.bf16.msra.mxu0 0
  %5534 = vmatprep.subr.bf16.mxu0 0
  %5535 = vmatpush2.bf16.msra.mxu0 0
  %5536 = vmatprep.mubr.bf16.mxu0 0
  %5537 = vmatmul.mubr.bf16.gmra.mxu0 %v5496
  %v5538 = vpop.f32.mrf.mxu0
  %v5539 = vadd.f32 0.0, %v5538
  %v5540 = vpop.f32.mrf.mxu0
  %v5541 = vpop.f32.mrf.mxu0
  %v5542 = vadd.f32 0.0, %v5541
  %v5543 = vpop.f32.mrf.mxu0
  %5544 = vmatprep.mubr.bf16.mxu0 0
  %5545 = vmatmul.mubr.bf16.gmra.mxu0 %v5499
  %v5546 = vpop.f32.mrf.mxu0
  %v5547 = vadd.f32 0.0, %v5546
  %v5548 = vpop.f32.mrf.mxu0
  %v5549 = vpop.f32.mrf.mxu0
  %v5550 = vpop.f32.mrf.mxu0
  %5551 = vdwg.mxu0
  %v5552 = vadd.f32 %v5480, %v5539
  %v5553 = vadd.f32 %v5481, %v5542
  %v5554 = vadd.f32 %v5482, %v5547
  %s5555 = scalar_lea.vmem %s5, 144
  %v5556 = vld [vmem:[%s5555] sm:$0xf]
  %v5557 = vld [vmem:[%s5555 + $0x4] sm:$0xf]
  %v5558 = vld [vmem:[%s5555 + $0x8] sm:$0x1]
  %v5562 = vunpack.c.l.b16 %v5556
  %v5563 = vunpack.c.l.b16 %v5557
  %v5564 = vunpack.c.l.b16 %v5558
  %v5565 = vpack.c.b16 %v5563, %v5562
  %v5566 = vpack.c.b16 %v5564, %v5564
  %v5568 = vsel %vm4712, %v5565, 0
  %v5571 = vsel %vm4712, %v5566, 0
  %v5574 = vsel %vm165, %v4693, 0
  %5576 = vmatprep.subr.bf16.mxu0 0
  %5577 = vmatpush1.bf16.msra.mxu0 0
  %5578 = vmatprep.subr.bf16.mxu0 0
  %5579 = vmatpush1.bf16.msra.mxu0 0
  %5580 = vmatprep.subr.bf16.mxu0 0
  %5581 = vmatpush1.bf16.msra.mxu0 0
  %5582 = vmatprep.subr.bf16.mxu0 0
  %5583 = vmatpush1.bf16.msra.mxu0 0
  %5584 = vmatprep.subr.bf16.mxu0 0
  %5585 = vmatpush1.bf16.msra.mxu0 0
  %5586 = vmatprep.subr.bf16.mxu0 0
  %5587 = vmatpush1.bf16.msra.mxu0 %v5574
  %5588 = vmatprep.subr.bf16.mxu0 0
  %5589 = vmatpush1.bf16.msra.mxu0 %v4677
  %5590 = vmatprep.subr.bf16.mxu0 0
  %5591 = vmatpush1.bf16.msra.mxu0 %v4661
  %5592 = vmatprep.subr.bf16.mxu0 0
  %5593 = vmatpush2.bf16.msra.mxu0 0
  %5594 = vmatprep.subr.bf16.mxu0 0
  %5595 = vmatpush2.bf16.msra.mxu0 0
  %5596 = vmatprep.subr.bf16.mxu0 0
  %5597 = vmatpush2.bf16.msra.mxu0 0
  %5598 = vmatprep.subr.bf16.mxu0 0
  %5599 = vmatpush2.bf16.msra.mxu0 0
  %5600 = vmatprep.subr.bf16.mxu0 0
  %5601 = vmatpush2.bf16.msra.mxu0 0
  %5602 = vmatprep.subr.bf16.mxu0 0
  %5603 = vmatpush2.bf16.msra.mxu0 0
  %5604 = vmatprep.subr.bf16.mxu0 0
  %5605 = vmatpush2.bf16.msra.mxu0 0
  %5606 = vmatprep.subr.bf16.mxu0 0
  %5607 = vmatpush2.bf16.msra.mxu0 0
  %5608 = vmatprep.mubr.bf16.mxu0 0
  %5609 = vmatmul.mubr.bf16.gmra.mxu0 %v5568
  %v5610 = vpop.f32.mrf.mxu0
  %v5611 = vadd.f32 0.0, %v5610
  %v5612 = vpop.f32.mrf.mxu0
  %v5613 = vpop.f32.mrf.mxu0
  %v5614 = vadd.f32 0.0, %v5613
  %v5615 = vpop.f32.mrf.mxu0
  %5616 = vmatprep.mubr.bf16.mxu0 0
  %5617 = vmatmul.mubr.bf16.gmra.mxu0 %v5571
  %v5618 = vpop.f32.mrf.mxu0
  %v5619 = vadd.f32 0.0, %v5618
  %v5620 = vpop.f32.mrf.mxu0
  %v5621 = vpop.f32.mrf.mxu0
  %v5622 = vpop.f32.mrf.mxu0
  %5623 = vdwg.mxu0
  %v5624 = vadd.f32 %v5552, %v5611
  %v5625 = vadd.f32 %v5553, %v5614
  %v5626 = vadd.f32 %v5554, %v5619
  %s5627 = scalar_lea.vmem %s5, 156
  %v5628 = vld [vmem:[%s5627] sm:$0xf]
  %v5629 = vld [vmem:[%s5627 + $0x4] sm:$0xf]
  %v5630 = vld [vmem:[%s5627 + $0x8] sm:$0x1]
  %v5634 = vunpack.c.l.b16 %v5628
  %v5635 = vunpack.c.l.b16 %v5629
  %v5636 = vunpack.c.l.b16 %v5630
  %v5637 = vpack.c.b16 %v5635, %v5634
  %v5638 = vpack.c.b16 %v5636, %v5636
  %v5640 = vsel %vm4712, %v5637, 0
  %v5643 = vsel %vm4712, %v5638, 0
  %v5646 = vsel %vm165, %v4694, 0
  %5648 = vmatprep.subr.bf16.mxu0 0
  %5649 = vmatpush1.bf16.msra.mxu0 0
  %5650 = vmatprep.subr.bf16.mxu0 0
  %5651 = vmatpush1.bf16.msra.mxu0 0
  %5652 = vmatprep.subr.bf16.mxu0 0
  %5653 = vmatpush1.bf16.msra.mxu0 0
  %5654 = vmatprep.subr.bf16.mxu0 0
  %5655 = vmatpush1.bf16.msra.mxu0 0
  %5656 = vmatprep.subr.bf16.mxu0 0
  %5657 = vmatpush1.bf16.msra.mxu0 0
  %5658 = vmatprep.subr.bf16.mxu0 0
  %5659 = vmatpush1.bf16.msra.mxu0 %v5646
  %5660 = vmatprep.subr.bf16.mxu0 0
  %5661 = vmatpush1.bf16.msra.mxu0 %v4678
  %5662 = vmatprep.subr.bf16.mxu0 0
  %5663 = vmatpush1.bf16.msra.mxu0 %v4662
  %5664 = vmatprep.subr.bf16.mxu0 0
  %5665 = vmatpush2.bf16.msra.mxu0 0
  %5666 = vmatprep.subr.bf16.mxu0 0
  %5667 = vmatpush2.bf16.msra.mxu0 0
  %5668 = vmatprep.subr.bf16.mxu0 0
  %5669 = vmatpush2.bf16.msra.mxu0 0
  %5670 = vmatprep.subr.bf16.mxu0 0
  %5671 = vmatpush2.bf16.msra.mxu0 0
  %5672 = vmatprep.subr.bf16.mxu0 0
  %5673 = vmatpush2.bf16.msra.mxu0 0
  %5674 = vmatprep.subr.bf16.mxu0 0
  %5675 = vmatpush2.bf16.msra.mxu0 0
  %5676 = vmatprep.subr.bf16.mxu0 0
  %5677 = vmatpush2.bf16.msra.mxu0 0
  %5678 = vmatprep.subr.bf16.mxu0 0
  %5679 = vmatpush2.bf16.msra.mxu0 0
  %5680 = vmatprep.mubr.bf16.mxu0 0
  %5681 = vmatmul.mubr.bf16.gmra.mxu0 %v5640
  %v5682 = vpop.f32.mrf.mxu0
  %v5683 = vadd.f32 0.0, %v5682
  %v5684 = vpop.f32.mrf.mxu0
  %v5685 = vpop.f32.mrf.mxu0
  %v5686 = vadd.f32 0.0, %v5685
  %v5687 = vpop.f32.mrf.mxu0
  %5688 = vmatprep.mubr.bf16.mxu0 0
  %5689 = vmatmul.mubr.bf16.gmra.mxu0 %v5643
  %v5690 = vpop.f32.mrf.mxu0
  %v5691 = vadd.f32 0.0, %v5690
  %v5692 = vpop.f32.mrf.mxu0
  %v5693 = vpop.f32.mrf.mxu0
  %v5694 = vpop.f32.mrf.mxu0
  %5695 = vdwg.mxu0
  %v5696 = vadd.f32 %v5624, %v5683
  %v5697 = vadd.f32 %v5625, %v5686
  %v5698 = vadd.f32 %v5626, %v5691
  %s5699 = scalar_lea.vmem %s5, 168
  %v5700 = vld [vmem:[%s5699] sm:$0xf]
  %v5701 = vld [vmem:[%s5699 + $0x4] sm:$0xf]
  %v5702 = vld [vmem:[%s5699 + $0x8] sm:$0x1]
  %v5706 = vunpack.c.l.b16 %v5700
  %v5707 = vunpack.c.l.b16 %v5701
  %v5708 = vunpack.c.l.b16 %v5702
  %v5709 = vpack.c.b16 %v5707, %v5706
  %v5710 = vpack.c.b16 %v5708, %v5708
  %v5712 = vsel %vm4712, %v5709, 0
  %v5715 = vsel %vm4712, %v5710, 0
  %v5718 = vsel %vm165, %v4695, 0
  %5720 = vmatprep.subr.bf16.mxu0 0
  %5721 = vmatpush1.bf16.msra.mxu0 0
  %5722 = vmatprep.subr.bf16.mxu0 0
  %5723 = vmatpush1.bf16.msra.mxu0 0
  %5724 = vmatprep.subr.bf16.mxu0 0
  %5725 = vmatpush1.bf16.msra.mxu0 0
  %5726 = vmatprep.subr.bf16.mxu0 0
  %5727 = vmatpush1.bf16.msra.mxu0 0
  %5728 = vmatprep.subr.bf16.mxu0 0
  %5729 = vmatpush1.bf16.msra.mxu0 0
  %5730 = vmatprep.subr.bf16.mxu0 0
  %5731 = vmatpush1.bf16.msra.mxu0 %v5718
  %5732 = vmatprep.subr.bf16.mxu0 0
  %5733 = vmatpush1.bf16.msra.mxu0 %v4679
  %5734 = vmatprep.subr.bf16.mxu0 0
  %5735 = vmatpush1.bf16.msra.mxu0 %v4663
  %5736 = vmatprep.subr.bf16.mxu0 0
  %5737 = vmatpush2.bf16.msra.mxu0 0
  %5738 = vmatprep.subr.bf16.mxu0 0
  %5739 = vmatpush2.bf16.msra.mxu0 0
  %5740 = vmatprep.subr.bf16.mxu0 0
  %5741 = vmatpush2.bf16.msra.mxu0 0
  %5742 = vmatprep.subr.bf16.mxu0 0
  %5743 = vmatpush2.bf16.msra.mxu0 0
  %5744 = vmatprep.subr.bf16.mxu0 0
  %5745 = vmatpush2.bf16.msra.mxu0 0
  %5746 = vmatprep.subr.bf16.mxu0 0
  %5747 = vmatpush2.bf16.msra.mxu0 0
  %5748 = vmatprep.subr.bf16.mxu0 0
  %5749 = vmatpush2.bf16.msra.mxu0 0
  %5750 = vmatprep.subr.bf16.mxu0 0
  %5751 = vmatpush2.bf16.msra.mxu0 0
  %5752 = vmatprep.mubr.bf16.mxu0 0
  %5753 = vmatmul.mubr.bf16.gmra.mxu0 %v5712
  %v5754 = vpop.f32.mrf.mxu0
  %v5755 = vadd.f32 0.0, %v5754
  %v5756 = vpop.f32.mrf.mxu0
  %v5757 = vpop.f32.mrf.mxu0
  %v5758 = vadd.f32 0.0, %v5757
  %v5759 = vpop.f32.mrf.mxu0
  %5760 = vmatprep.mubr.bf16.mxu0 0
  %5761 = vmatmul.mubr.bf16.gmra.mxu0 %v5715
  %v5762 = vpop.f32.mrf.mxu0
  %v5763 = vadd.f32 0.0, %v5762
  %v5764 = vpop.f32.mrf.mxu0
  %v5765 = vpop.f32.mrf.mxu0
  %v5766 = vpop.f32.mrf.mxu0
  %5767 = vdwg.mxu0
  %v5768 = vadd.f32 %v5696, %v5755
  %v5769 = vadd.f32 %v5697, %v5758
  %v5770 = vadd.f32 %v5698, %v5763
  %s5771 = scalar_lea.vmem %s5, 180
  %v5772 = vld [vmem:[%s5771] sm:$0xf]
  %v5773 = vld [vmem:[%s5771 + $0x4] sm:$0xf]
  %v5774 = vld [vmem:[%s5771 + $0x8] sm:$0x1]
  %v5778 = vunpack.c.l.b16 %v5772
  %v5779 = vunpack.c.l.b16 %v5773
  %v5780 = vunpack.c.l.b16 %v5774
  %v5781 = vpack.c.b16 %v5779, %v5778
  %v5782 = vpack.c.b16 %v5780, %v5780
  %v5784 = vsel %vm4712, %v5781, 0
  %v5787 = vsel %vm4712, %v5782, 0
  %v5790 = vsel %vm165, %v4696, 0
  %5792 = vmatprep.subr.bf16.mxu0 0
  %5793 = vmatpush1.bf16.msra.mxu0 0
  %5794 = vmatprep.subr.bf16.mxu0 0
  %5795 = vmatpush1.bf16.msra.mxu0 0
  %5796 = vmatprep.subr.bf16.mxu0 0
  %5797 = vmatpush1.bf16.msra.mxu0 0
  %5798 = vmatprep.subr.bf16.mxu0 0
  %5799 = vmatpush1.bf16.msra.mxu0 0
  %5800 = vmatprep.subr.bf16.mxu0 0
  %5801 = vmatpush1.bf16.msra.mxu0 0
  %5802 = vmatprep.subr.bf16.mxu0 0
  %5803 = vmatpush1.bf16.msra.mxu0 %v5790
  %5804 = vmatprep.subr.bf16.mxu0 0
  %5805 = vmatpush1.bf16.msra.mxu0 %v4680
  %5806 = vmatprep.subr.bf16.mxu0 0
  %5807 = vmatpush1.bf16.msra.mxu0 %v4664
  %5808 = vmatprep.subr.bf16.mxu0 0
  %5809 = vmatpush2.bf16.msra.mxu0 0
  %5810 = vmatprep.subr.bf16.mxu0 0
  %5811 = vmatpush2.bf16.msra.mxu0 0
  %5812 = vmatprep.subr.bf16.mxu0 0
  %5813 = vmatpush2.bf16.msra.mxu0 0
  %5814 = vmatprep.subr.bf16.mxu0 0
  %5815 = vmatpush2.bf16.msra.mxu0 0
  %5816 = vmatprep.subr.bf16.mxu0 0
  %5817 = vmatpush2.bf16.msra.mxu0 0
  %5818 = vmatprep.subr.bf16.mxu0 0
  %5819 = vmatpush2.bf16.msra.mxu0 0
  %5820 = vmatprep.subr.bf16.mxu0 0
  %5821 = vmatpush2.bf16.msra.mxu0 0
  %5822 = vmatprep.subr.bf16.mxu0 0
  %5823 = vmatpush2.bf16.msra.mxu0 0
  %5824 = vmatprep.mubr.bf16.mxu0 0
  %5825 = vmatmul.mubr.bf16.gmra.mxu0 %v5784
  %v5826 = vpop.f32.mrf.mxu0
  %v5827 = vadd.f32 0.0, %v5826
  %v5828 = vpop.f32.mrf.mxu0
  %v5829 = vpop.f32.mrf.mxu0
  %v5830 = vadd.f32 0.0, %v5829
  %v5831 = vpop.f32.mrf.mxu0
  %5832 = vmatprep.mubr.bf16.mxu0 0
  %5833 = vmatmul.mubr.bf16.gmra.mxu0 %v5787
  %v5834 = vpop.f32.mrf.mxu0
  %v5835 = vadd.f32 0.0, %v5834
  %v5836 = vpop.f32.mrf.mxu0
  %v5837 = vpop.f32.mrf.mxu0
  %v5838 = vpop.f32.mrf.mxu0
  %5839 = vdwg.mxu0
  %v5840 = vadd.f32 %v5768, %v5827
  %v5841 = vadd.f32 %v5769, %v5830
  %v5842 = vadd.f32 %v5770, %v5835
  %v5843 = vlaneseq
  %v5844 = vand.u32 %v5843, 127
  %vm5845 = vcmp.ge.s32.totalorder %v5844, 0
  %vm5846 = vcmp.lt.s32.totalorder %v5844, 9
  %vm5847 = vmand %vm5845, %vm5846
  %v5848 = vsel %vm5847, %v5840, -1e+30
  %v5849 = vsel %vm5847, %v5841, -1e+30
  %v5850 = vsel %vm5847, %v5842, -1e+30
  %5851 = vmax.xlane.f32.xlu0 %v5848
  %v5852 = vpop.xlane.xlu0 %5851
  %5853 = vmax.xlane.f32.xlu0 %v5849
  %v5854 = vpop.xlane.xlu0 %5853
  %v5855 = vsel %vm165, %v5850, -inf
  %5856 = vmax.xlane.f32.xlu0 %v5855
  %v5857 = vpop.xlane.xlu0 %5856
  %vm5858 = vcmp.ge.s32.totalorder %v5844, 9
  %vm5859 = vcmp.lt.s32.totalorder %v5844, 18
  %vm5860 = vmand %vm5858, %vm5859
  %v5861 = vsel %vm5860, %v5840, -1e+30
  %v5862 = vsel %vm5860, %v5841, -1e+30
  %v5863 = vsel %vm5860, %v5842, -1e+30
  %5864 = vmax.xlane.f32.xlu0 %v5861
  %v5865 = vpop.xlane.xlu0 %5864
  %5866 = vmax.xlane.f32.xlu0 %v5862
  %v5867 = vpop.xlane.xlu0 %5866
  %v5868 = vsel %vm165, %v5863, -inf
  %5869 = vmax.xlane.f32.xlu0 %v5868
  %v5870 = vpop.xlane.xlu0 %5869
  %vm5871 = vcmask 7168
  %v5872 = vsel %vm5871, %v5852, %v5865
  %v5873 = vsel %vm5871, %v5854, %v5867
  %v5874 = vsel %vm5871, %v5857, %v5870
  %v5875 = vld [vmem:[%s8] sm:$0x3]
  %v5876 = vld [vmem:[%s9] sm:$0x3]
  %5878 = vset.pattern.permute.xlu0 0
  %5879 = vperm.xlu0 %5878, %v5876
  %v5880 = vpop.permute.xlu0 %5879
  %v5883 = vsel %vm1809, %v5875, 0
  %v5886 = vsel %vm165, %v5874, 0
  %5888 = vmatprep.subr.mxu0 0.0
  %5889 = vmatpush1.msra.mxu0 0.0
  %5890 = vmatprep.subr.mxu0 0.0
  %5891 = vmatpush1.msra.mxu0 0.0
  %5892 = vmatprep.subr.mxu0 0.0
  %5893 = vmatpush1.msra.mxu0 0.0
  %5894 = vmatprep.subr.mxu0 0.0
  %5895 = vmatpush1.msra.mxu0 0.0
  %5896 = vmatprep.subr.mxu0 0.0
  %5897 = vmatpush1.msra.mxu0 0.0
  %5898 = vmatprep.subr.mxu0 0.0
  %5899 = vmatpush1.msra.mxu0 0.0
  %5900 = vmatprep.subr.mxu0 0.0
  %5901 = vmatpush1.msra.mxu0 0.0
  %5902 = vmatprep.subr.mxu0 0.0
  %5903 = vmatpush1.msra.mxu0 0.0
  %5904 = vmatprep.subr.mxu0 0.0
  %5905 = vmatpush1.msra.mxu0 0.0
  %5906 = vmatprep.subr.mxu0 0.0
  %5907 = vmatpush1.msra.mxu0 0.0
  %5908 = vmatprep.subr.mxu0 0.0
  %5909 = vmatpush1.msra.mxu0 0.0
  %5910 = vmatprep.subr.mxu0 0.0
  %5911 = vmatpush1.msra.mxu0 0.0
  %5912 = vmatprep.subr.mxu0 0.0
  %5913 = vmatpush1.msra.mxu0 0.0
  %5914 = vmatprep.subr.mxu0 0.0
  %5915 = vmatpush1.msra.mxu0 %v5886
  %5916 = vmatprep.subr.mxu0 0.0
  %5917 = vmatpush1.msra.mxu0 %v5873
  %5918 = vmatprep.subr.mxu0 0.0
  %5919 = vmatpush1.msra.mxu0 %v5872
  %5920 = vmatprep.subr.mxu0 0.0
  %5921 = vmatpush2.msra.mxu0 0.0
  %5922 = vmatprep.subr.mxu0 0.0
  %5923 = vmatpush2.msra.mxu0 0.0
  %5924 = vmatprep.subr.mxu0 0.0
  %5925 = vmatpush2.msra.mxu0 0.0
  %5926 = vmatprep.subr.mxu0 0.0
  %5927 = vmatpush2.msra.mxu0 0.0
  %5928 = vmatprep.subr.mxu0 0.0
  %5929 = vmatpush2.msra.mxu0 0.0
  %5930 = vmatprep.subr.mxu0 0.0
  %5931 = vmatpush2.msra.mxu0 0.0
  %5932 = vmatprep.subr.mxu0 0.0
  %5933 = vmatpush2.msra.mxu0 0.0
  %5934 = vmatprep.subr.mxu0 0.0
  %5935 = vmatpush2.msra.mxu0 0.0
  %5936 = vmatprep.subr.mxu0 0.0
  %5937 = vmatpush2.msra.mxu0 0.0
  %5938 = vmatprep.subr.mxu0 0.0
  %5939 = vmatpush2.msra.mxu0 0.0
  %5940 = vmatprep.subr.mxu0 0.0
  %5941 = vmatpush2.msra.mxu0 0.0
  %5942 = vmatprep.subr.mxu0 0.0
  %5943 = vmatpush2.msra.mxu0 0.0
  %5944 = vmatprep.subr.mxu0 0.0
  %5945 = vmatpush2.msra.mxu0 0.0
  %5946 = vmatprep.subr.mxu0 0.0
  %5947 = vmatpush2.msra.mxu0 0.0
  %5948 = vmatprep.subr.mxu0 0.0
  %5949 = vmatpush2.msra.mxu0 0.0
  %5950 = vmatprep.subr.mxu0 0.0
  %5951 = vmatpush2.msra.mxu0 0.0
  %5952 = vmatprep.mubr.f32.mxu0 0.0
  %5953 = vmatmul.mubr.f32.gmra.mxu0 %v5883
  %v5954 = vpop.f32.mrf.mxu0
  %v5955 = vadd.f32 %v5880, %v5954
  %v5956 = vpop.f32.mrf.mxu0
  %5957 = vdwg.mxu0
  %vm5958 = vcmask 9216
  %5959 = vst.msk [vmem:[%s10] sm:$0x3] %vm5958, %v5955
  // Predicated region
  $region42: #{upps_net_forward.1} parent=0 // pred_check
    _
  $region43: #{upps_net_forward.1} parent=0 // pred_check_branch
    %5961 = sbr.rel (0) target = $region45
  $region44: #{upps_net_forward.1} parent=0 // pred_region
    _
  $region45: #{upps_net_forward.1} parent=0 // pred_fallthru
    _
  // Predicated region
  $region46: #{upps_net_forward.1} parent=0 // pred_check
    _
  $region47: #{upps_net_forward.1} parent=0 // pred_check_branch
    %5963 = sbr.rel (0) target = $region49
  $region48: #{upps_net_forward.1} parent=0 // pred_region
    _
  $region49: #{upps_net_forward.1} parent=0 // pred_fallthru
    _

</llo_original>
